<compile_context>
chip_gen: v6e
topology: v6e:2x2x1
jax: 0.10.0
libtpu: 0.0.40
codegen_flags: <defaults>
</compile_context>

<pallas_src>
import functools

import jax
import jax.numpy as jnp
from jax.experimental import pallas as pl
from jax.experimental.pallas import tpu as pltpu


def _fast_rope_layer_kernel(src_ref, sin_ref, cos_ref, wqkv_ref, wo_ref,
                            w1_ref, b1_ref, w2_ref, b2_ref,
                            g1_ref, be1_ref, g2_ref, be2_ref,
                            out_ref, *, nhead, eps):
    x = src_ref[0].astype(jnp.float32)                       # [S, D]
    S, D = x.shape
    hd = D // nhead
    bf16 = jnp.bfloat16

    # ---- fused q / q_rot / k / k_rot / v projection: one wide bf16 MXU pass, f32 accum ----
    qkv = jnp.dot(x.astype(bf16), wqkv_ref[...],
                  preferred_element_type=jnp.float32)        # [S, 5D]
    q, qrot = qkv[:, 0 * D:1 * D], qkv[:, 1 * D:2 * D]       # lane-aligned D-wide slices
    k, krot = qkv[:, 2 * D:3 * D], qkv[:, 3 * D:4 * D]
    v = qkv[:, 4 * D:5 * D]

    # ---- RoPE at full [S, D] width (rotate_half already folded into qrot/krot cols) ----
    sin = sin_ref[...]                                       # [S, D] f32
    cos = cos_ref[...]
    qr = q * cos + qrot * sin                                # 1/sqrt(hd) folded into Wq
    kr = k * cos + krot * sin

    # ---- batched multi-head attention (heads as a dot_general batch dim) ----
    q3 = jnp.transpose(qr.astype(bf16).reshape(S, nhead, hd), (1, 0, 2))   # [H, S, hd]
    k3 = jnp.transpose(kr.astype(bf16).reshape(S, nhead, hd), (1, 0, 2))
    v3 = jnp.transpose(v.astype(bf16).reshape(S, nhead, hd), (1, 0, 2))

    s = jnp.einsum('hqd,hkd->hqk', q3, k3,
                   preferred_element_type=jnp.float32)       # [H, S, S] f32
    s = s - jnp.max(s, axis=-1, keepdims=True)
    p = jnp.exp(s)
    denom = jnp.sum(p, axis=-1, keepdims=True)               # [H, S, 1]
    ctx = jnp.einsum('hqk,hkd->hqd', p.astype(bf16), v3,
                     preferred_element_type=jnp.float32)     # [H, S, hd]
    ctx = ctx * pl.reciprocal(denom, approx=True)            # EUP reciprocal, not VPU divide
    ctx = jnp.transpose(ctx, (1, 0, 2)).reshape(S, D)        # [S, D]
    attn = jnp.dot(ctx.astype(bf16), wo_ref[...],
                   preferred_element_type=jnp.float32)       # [S, D]

    def layer_norm(t, g, b):
        mu = jnp.mean(t, axis=-1, keepdims=True)
        var = jnp.mean(jnp.square(t - mu), axis=-1, keepdims=True)
        return (t - mu) * jax.lax.rsqrt(var + eps) * g + b

    # ---- post-LN residual structure; dropouts are identity (inference semantics) ----
    x1 = layer_norm(x + attn, g1_ref[...], be1_ref[...])     # [S, D]
    h1 = jnp.dot(x1.astype(bf16), w1_ref[...],
                 preferred_element_type=jnp.float32) + b1_ref[...]
    h1 = jnp.maximum(h1, 0.0)                                # relu
    ff = jnp.dot(h1.astype(bf16), w2_ref[...],
                 preferred_element_type=jnp.float32) + b2_ref[...]
    out = layer_norm(x1 + ff, g2_ref[...], be2_ref[...])
    out_ref[0] = out.astype(out_ref.dtype)


def fast_rope_encoder_layer(src, params, *, nhead, rotate_fraction=0.5,
                            rope_base=10000.0, eps=1e-5):
    B, S, D = src.shape
    assert D % nhead == 0
    hd = D // nhead
    n_rotate = int(hd * rotate_fraction)
    assert n_rotate % 2 == 0, "rotate_half pairing requires an even n_rotate"
    half = n_rotate // 2
    F = params["w1"].shape[1]
    scale = 1.0 / (hd ** 0.5)
    bf16 = jnp.bfloat16

    # ---- full-width RoPE tables [S, D]: sin=0 / cos=1 on non-rotated dims ----
    inv_freq = rope_base ** (-(jnp.arange(half, dtype=jnp.float32) * 2.0) / n_rotate)
    ang = jnp.arange(S, dtype=jnp.float32)[:, None] * inv_freq[None, :]    # [S, half]
    sin_h = jnp.concatenate([jnp.sin(ang), jnp.sin(ang)], axis=-1)         # [S, n_rotate]
    cos_h = jnp.concatenate([jnp.cos(ang), jnp.cos(ang)], axis=-1)
    pad = hd - n_rotate
    sin_head = jnp.pad(sin_h, ((0, 0), (0, pad)))                          # [S, hd]
    cos_head = jnp.pad(cos_h, ((0, 0), (0, pad)), constant_values=1.0)
    sin_full = jnp.tile(sin_head, (1, nhead))                              # [S, D]
    cos_full = jnp.tile(cos_head, (1, nhead))

    # ---- fold rotate_half (per-head signed permutation R) and q-scale into the weights ----
    idx = jnp.arange(half)
    R = jnp.zeros((hd, hd), jnp.float32)
    R = R.at[idx + half, idx].set(-1.0)      # col j < half reads        -q[j + half]
    R = R.at[idx, idx + half].set(1.0)       # col j in [half,n_rot) reads +q[j - half]

    def rotate_cols(w):                      # apply R to each head's output columns
        return jnp.einsum('dhi,ij->dhj', w.reshape(D, nhead, hd), R).reshape(D, D)

    wq = params["wq"] * scale
    wk = params["wk"]
    wqkv = jnp.concatenate(
        [wq, rotate_cols(wq), wk, rotate_cols(wk), params["wv"]], axis=1).astype(bf16)

    args = (src, sin_full, cos_full, wqkv,
            params["wo"].astype(bf16),
            params["w1"].astype(bf16), params["b1"].reshape(1, F),
            params["w2"].astype(bf16), params["b2"].reshape(1, D),
            params["g1"].reshape(1, D), params["be1"].reshape(1, D),
            params["g2"].reshape(1, D), params["be2"].reshape(1, D))

    def full2d(a):
        return pl.BlockSpec(a.shape, lambda b: (0, 0))

    in_specs = [pl.BlockSpec((1, S, D), lambda b: (b, 0, 0))] + [full2d(a) for a in args[1:]]

    flops = 2 * B * S * D * (5 * D + D + 2 * F) + 4 * B * S * S * D
    bytes_accessed = (2 * 4 * B * S * D                      # src + out (f32)
                      + 2 * (6 * D * D + 2 * D * F)          # bf16 weights
                      + 2 * 4 * S * D                        # rope tables (f32)
                      + 4 * (F + 5 * D))                     # biases + LN params

    kernel = functools.partial(_fast_rope_layer_kernel, nhead=nhead, eps=eps)
    return pl.pallas_call(
        kernel,
        out_shape=jax.ShapeDtypeStruct((B, S, D), src.dtype),
        grid=(B,),
        in_specs=in_specs,
        out_specs=pl.BlockSpec((1, S, D), lambda b: (b, 0, 0)),
        compiler_params=pltpu.CompilerParams(
            dimension_semantics=("parallel",)),
        cost_estimate=pl.CostEstimate(flops=flops,
                                      transcendentals=B * nhead * S * S,
                                      bytes_accessed=bytes_accessed),
    )(*args)


def init_params(key, d_model, dim_feedforward):
    ks = jax.random.split(key, 6)
    D, F = d_model, dim_feedforward
    s_attn = 1.0 / (D ** 0.5)
    xavier_n_relu = (2.0 ** 0.5) * (2.0 / (D + F)) ** 0.5    # xavier_normal_, relu gain
    xavier_u = (6.0 / (F + D)) ** 0.5                        # xavier_uniform_
    return {
        "wq": jax.random.normal(ks[0], (D, D), jnp.float32) * s_attn,
        "wk": jax.random.normal(ks[1], (D, D), jnp.float32) * s_attn,
        "wv": jax.random.normal(ks[2], (D, D), jnp.float32) * s_attn,
        "wo": jax.random.normal(ks[3], (D, D), jnp.float32) * s_attn,
        "w1": jax.random.normal(ks[4], (D, F), jnp.float32) * xavier_n_relu,
        "b1": jnp.zeros((F,), jnp.float32),
        "w2": jax.random.uniform(ks[5], (F, D), jnp.float32, -xavier_u, xavier_u),
        "b2": jnp.zeros((D,), jnp.float32),
        "g1": jnp.ones((D,), jnp.float32),
        "be1": jnp.zeros((D,), jnp.float32),
        "g2": jnp.ones((D,), jnp.float32),
        "be2": jnp.zeros((D,), jnp.float32),
    }


def _reference(src, params, *, nhead, rotate_fraction, rope_base, eps=1e-5):
    """Plain-JAX reference (slice-based RoPE, per-head loop), bf16 matmul operands to
    mirror the kernel's mixed precision."""
    B, S, D = src.shape
    hd = D // nhead
    n_rotate = int(hd * rotate_fraction)
    half = n_rotate // 2
    scale = 1.0 / (hd ** 0.5)
    bf16 = jnp.bfloat16

    inv_freq = rope_base ** (-(jnp.arange(half, dtype=jnp.float32) * 2.0) / n_rotate)
    ang = jnp.arange(S, dtype=jnp.float32)[:, None] * inv_freq[None, :]
    sin = jnp.concatenate([jnp.sin(ang), jnp.sin(ang)], axis=-1)
    cos = jnp.concatenate([jnp.cos(ang), jnp.cos(ang)], axis=-1)

    def rope(t):
        tr, tp = t[:, :n_rotate], t[:, n_rotate:]
        rot = jnp.concatenate([-tr[:, half:], tr[:, :half]], axis=-1)
        return jnp.concatenate([tr * cos + rot * sin, tp], axis=-1)

    def q16(w):  # match the kernel's bf16 weight storage
        return w.astype(bf16).astype(jnp.float32)

    def mmb(a, b):  # bf16 matmul with f32 accumulation, like the kernel
        return jnp.dot(a.astype(bf16), b.astype(bf16), preferred_element_type=jnp.float32)

    wq_s = q16(params["wq"] * scale)
    wk_q, wv_q, wo_q = q16(params["wk"]), q16(params["wv"]), q16(params["wo"])
    w1_q, w2_q = q16(params["w1"]), q16(params["w2"])

    def ln(t, g, b):
        mu = t.mean(-1, keepdims=True)
        var = ((t - mu) ** 2).mean(-1, keepdims=True)
        return (t - mu) * jax.lax.rsqrt(var + eps) * g + b

    outs = []
    for bi in range(B):
        x = src[bi]
        q, k, v = mmb(x, wq_s), mmb(x, wk_q), mmb(x, wv_q)
        heads = []
        for h in range(nhead):
            sl = slice(h * hd, (h + 1) * hd)
            qh = rope(q[:, sl])          # scale already folded into wq_s
            kh = rope(k[:, sl])
            sc = mmb(qh, kh.T)
            sc = sc - sc.max(-1, keepdims=True)
            p = jnp.exp(sc)
            p = p / p.sum(-1, keepdims=True)
            heads.append(mmb(p, v[:, sl]))
        attn = mmb(jnp.concatenate(heads, axis=-1), wo_q)
        x1 = ln(x + attn, params["g1"], params["be1"])
        h1 = jnp.maximum(mmb(x1, w1_q) + params["b1"], 0.0)
        ff = mmb(h1, w2_q) + params["b2"]
        outs.append(ln(x1 + ff, params["g2"], params["be2"]))
    return jnp.stack(outs)


if __name__ == "__main__":
    # small shapes: d_model=256 split into 2 heads (head_dim=128), dim_feedforward=512
    B, S, D, nhead, dff = 2, 16, 256, 2, 512
    key = jax.random.PRNGKey(0)
    kx, kp = jax.random.split(key)
    src = jax.random.normal(kx, (B, S, D), jnp.float32)
    params = init_params(kp, D, dff)

    out = fast_rope_encoder_layer(src, params, nhead=nhead,
                                  rotate_fraction=0.5, rope_base=10000.0)
    out = jax.block_until_ready(out)
    assert out.shape == (B, S, D)

    ref = _reference(src, params, nhead=nhead, rotate_fraction=0.5, rope_base=10000.0)
    max_err = float(jnp.max(jnp.abs(out - ref)))
    assert max_err < 5e-2, f"max abs error vs reference: {max_err}"
    print("KERNEL_OK")
</pallas_src>

<mosaic_0001>
module attributes {stable_mosaic.version = 11 : i64} {
  func.func @_fast_rope_layer_kernel(%arg0: i32, %arg1: memref<1x16x256xf32, #tpu.memory_space<vmem>>, %arg2: memref<16x256xf32, #tpu.memory_space<vmem>>, %arg3: memref<16x256xf32, #tpu.memory_space<vmem>>, %arg4: memref<256x1280xbf16, #tpu.memory_space<vmem>>, %arg5: memref<256x256xbf16, #tpu.memory_space<vmem>>, %arg6: memref<256x512xbf16, #tpu.memory_space<vmem>>, %arg7: memref<1x512xf32, #tpu.memory_space<vmem>>, %arg8: memref<512x256xbf16, #tpu.memory_space<vmem>>, %arg9: memref<1x256xf32, #tpu.memory_space<vmem>>, %arg10: memref<1x256xf32, #tpu.memory_space<vmem>>, %arg11: memref<1x256xf32, #tpu.memory_space<vmem>>, %arg12: memref<1x256xf32, #tpu.memory_space<vmem>>, %arg13: memref<1x256xf32, #tpu.memory_space<vmem>>, %arg14: memref<1x16x256xf32, #tpu.memory_space<vmem>>) attributes {dimension_semantics = [#tpu.dimension_semantics<parallel>], iteration_bounds = array<i64: 2>, scalar_prefetch = 0 : i64, scratch_operands = 0 : i64, tpu.core_type = #tpu.core_type<tc>, window_params = [{transform_indices = @transform_0, window_bounds = array<i64: 1, 16, 256>}, {pipeline_mode = #tpu.pipeline_mode<synchronous>, transform_indices = @transform_1, window_bounds = array<i64: 16, 256>}, {pipeline_mode = #tpu.pipeline_mode<synchronous>, transform_indices = @transform_2, window_bounds = array<i64: 16, 256>}, {pipeline_mode = #tpu.pipeline_mode<synchronous>, transform_indices = @transform_3, window_bounds = array<i64: 256, 1280>}, {pipeline_mode = #tpu.pipeline_mode<synchronous>, transform_indices = @transform_4, window_bounds = array<i64: 256, 256>}, {pipeline_mode = #tpu.pipeline_mode<synchronous>, transform_indices = @transform_5, window_bounds = array<i64: 256, 512>}, {pipeline_mode = #tpu.pipeline_mode<synchronous>, transform_indices = @transform_6, window_bounds = array<i64: 1, 512>}, {pipeline_mode = #tpu.pipeline_mode<synchronous>, transform_indices = @transform_7, window_bounds = array<i64: 512, 256>}, {pipeline_mode = #tpu.pipeline_mode<synchronous>, transform_indices = @transform_8, window_bounds = array<i64: 1, 256>}, {pipeline_mode = #tpu.pipeline_mode<synchronous>, transform_indices = @transform_9, window_bounds = array<i64: 1, 256>}, {pipeline_mode = #tpu.pipeline_mode<synchronous>, transform_indices = @transform_10, window_bounds = array<i64: 1, 256>}, {pipeline_mode = #tpu.pipeline_mode<synchronous>, transform_indices = @transform_11, window_bounds = array<i64: 1, 256>}, {pipeline_mode = #tpu.pipeline_mode<synchronous>, transform_indices = @transform_12, window_bounds = array<i64: 1, 256>}, {transform_indices = @transform_13, window_bounds = array<i64: 1, 16, 256>}]} {
    %c0 = arith.constant 0 : index
    %c0_0 = arith.constant 0 : index
    %c0_1 = arith.constant 0 : index
    %0 = vector.load %arg1[%c0, %c0_0, %c0_1] : memref<1x16x256xf32, #tpu.memory_space<vmem>>, vector<1x16x256xf32>
    %1 = vector.shape_cast %0 : vector<1x16x256xf32> to vector<16x256xf32>
    %2 = arith.truncf %1 : vector<16x256xf32> to vector<16x256xbf16>
    %c0_2 = arith.constant 0 : index
    %c0_3 = arith.constant 0 : index
    %3 = vector.load %arg4[%c0_2, %c0_3] : memref<256x1280xbf16, #tpu.memory_space<vmem>>, vector<256x1280xbf16>
    %cst = arith.constant dense<0.000000e+00> : vector<16x1280xf32>
    %4 = tpu.matmul %2, %3, %cst {dimension_numbers = #tpu.dot_dimension_numbers<[1], [0], [0], [1], [0, 0, 1, 1], [], []>} : vector<16x256xbf16>, vector<256x1280xbf16>, vector<16x1280xf32> -> vector<16x1280xf32>
    %5 = vector.extract_strided_slice %4 {offsets = [0, 0], sizes = [16, 256], strides = [1, 1]} : vector<16x1280xf32> to vector<16x256xf32>
    %6 = vector.extract_strided_slice %4 {offsets = [0, 256], sizes = [16, 256], strides = [1, 1]} : vector<16x1280xf32> to vector<16x256xf32>
    %7 = vector.extract_strided_slice %4 {offsets = [0, 512], sizes = [16, 256], strides = [1, 1]} : vector<16x1280xf32> to vector<16x256xf32>
    %8 = vector.extract_strided_slice %4 {offsets = [0, 768], sizes = [16, 256], strides = [1, 1]} : vector<16x1280xf32> to vector<16x256xf32>
    %9 = vector.extract_strided_slice %4 {offsets = [0, 1024], sizes = [16, 256], strides = [1, 1]} : vector<16x1280xf32> to vector<16x256xf32>
    %c0_4 = arith.constant 0 : index
    %c0_5 = arith.constant 0 : index
    %10 = vector.load %arg2[%c0_4, %c0_5] : memref<16x256xf32, #tpu.memory_space<vmem>>, vector<16x256xf32>
    %c0_6 = arith.constant 0 : index
    %c0_7 = arith.constant 0 : index
    %11 = vector.load %arg3[%c0_6, %c0_7] : memref<16x256xf32, #tpu.memory_space<vmem>>, vector<16x256xf32>
    %12 = arith.mulf %5, %11 : vector<16x256xf32>
    %13 = arith.mulf %6, %10 : vector<16x256xf32>
    %14 = arith.addf %12, %13 : vector<16x256xf32>
    %15 = arith.mulf %7, %11 : vector<16x256xf32>
    %16 = arith.mulf %8, %10 : vector<16x256xf32>
    %17 = arith.addf %15, %16 : vector<16x256xf32>
    %18 = arith.truncf %14 : vector<16x256xf32> to vector<16x256xbf16>
    %19 = vector.shape_cast %18 : vector<16x256xbf16> to vector<16x2x128xbf16>
    %20 = tpu.transpose %19, [1, 0, 2] : vector<16x2x128xbf16> -> vector<2x16x128xbf16>
    %21 = arith.truncf %17 : vector<16x256xf32> to vector<16x256xbf16>
    %22 = vector.shape_cast %21 : vector<16x256xbf16> to vector<16x2x128xbf16>
    %23 = tpu.transpose %22, [1, 0, 2] : vector<16x2x128xbf16> -> vector<2x16x128xbf16>
    %24 = arith.truncf %9 : vector<16x256xf32> to vector<16x256xbf16>
    %25 = vector.shape_cast %24 : vector<16x256xbf16> to vector<16x2x128xbf16>
    %26 = tpu.transpose %25, [1, 0, 2] : vector<16x2x128xbf16> -> vector<2x16x128xbf16>
    "tpu.trace_start"() <{level = 10 : i32, message = "hqd,hkd->hqk"}> : () -> ()
    %cst_8 = arith.constant dense<0.000000e+00> : vector<2x16x16xf32>
    %27 = tpu.matmul %20, %23, %cst_8 {dimension_numbers = #tpu.dot_dimension_numbers<[2], [2], [1], [1], [0, 0, 0, 1, 1, 1], [0], [0]>} : vector<2x16x128xbf16>, vector<2x16x128xbf16>, vector<2x16x16xf32> -> vector<2x16x16xf32>
    "tpu.trace_stop"() : () -> ()
    %cst_9 = arith.constant dense<0xFF800000> : vector<2x16xf32>
    %28 = vector.multi_reduction <maximumf>, %27, %cst_9 [2] : vector<2x16x16xf32> to vector<2x16xf32>
    %29 = vector.shape_cast %28 : vector<2x16xf32> to vector<2x16x1xf32>
    %30 = vector.broadcast %29 : vector<2x16x1xf32> to vector<2x16x16xf32>
    %31 = arith.subf %27, %30 : vector<2x16x16xf32>
    %32 = math.exp %31 : vector<2x16x16xf32>
    %cst_10 = arith.constant dense<0.000000e+00> : vector<2x16xf32>
    %33 = vector.multi_reduction <add>, %32, %cst_10 [2] : vector<2x16x16xf32> to vector<2x16xf32>
    %34 = vector.shape_cast %33 : vector<2x16xf32> to vector<2x16x1xf32>
    %35 = arith.truncf %32 : vector<2x16x16xf32> to vector<2x16x16xbf16>
    "tpu.trace_start"() <{level = 10 : i32, message = "hqk,hkd->hqd"}> : () -> ()
    %cst_11 = arith.constant dense<0.000000e+00> : vector<2x16x128xf32>
    %36 = tpu.matmul %35, %26, %cst_11 {dimension_numbers = #tpu.dot_dimension_numbers<[2], [1], [1], [2], [0, 0, 0, 1, 1, 2], [0], [0]>} : vector<2x16x16xbf16>, vector<2x16x128xbf16>, vector<2x16x128xf32> -> vector<2x16x128xf32>
    "tpu.trace_stop"() : () -> ()
    %37 = tpu.reciprocal %34 {approx = true} : vector<2x16x1xf32> -> vector<2x16x1xf32>
    %38 = vector.broadcast %37 : vector<2x16x1xf32> to vector<2x16x128xf32>
    %39 = arith.mulf %36, %38 : vector<2x16x128xf32>
    %40 = tpu.transpose %39, [1, 0, 2] : vector<2x16x128xf32> -> vector<16x2x128xf32>
    %41 = vector.shape_cast %40 : vector<16x2x128xf32> to vector<16x256xf32>
    %42 = arith.truncf %41 : vector<16x256xf32> to vector<16x256xbf16>
    %c0_12 = arith.constant 0 : index
    %c0_13 = arith.constant 0 : index
    %43 = vector.load %arg5[%c0_12, %c0_13] : memref<256x256xbf16, #tpu.memory_space<vmem>>, vector<256x256xbf16>
    %cst_14 = arith.constant dense<0.000000e+00> : vector<16x256xf32>
    %44 = tpu.matmul %42, %43, %cst_14 {dimension_numbers = #tpu.dot_dimension_numbers<[1], [0], [0], [1], [0, 0, 1, 1], [], []>} : vector<16x256xbf16>, vector<256x256xbf16>, vector<16x256xf32> -> vector<16x256xf32>
    %45 = arith.addf %1, %44 : vector<16x256xf32>
    %c0_15 = arith.constant 0 : index
    %c0_16 = arith.constant 0 : index
    %46 = vector.load %arg10[%c0_15, %c0_16] : memref<1x256xf32, #tpu.memory_space<vmem>>, vector<1x256xf32>
    %c0_17 = arith.constant 0 : index
    %c0_18 = arith.constant 0 : index
    %47 = vector.load %arg11[%c0_17, %c0_18] : memref<1x256xf32, #tpu.memory_space<vmem>>, vector<1x256xf32>
    %cst_19 = arith.constant dense<0.000000e+00> : vector<16xf32>
    %48 = vector.multi_reduction <add>, %45, %cst_19 [1] : vector<16x256xf32> to vector<16xf32>
    %49 = vector.shape_cast %48 : vector<16xf32> to vector<16x1xf32>
    %cst_20 = arith.constant 2.560000e+02 : f32
    %50 = vector.broadcast %cst_20 : f32 to vector<16x1xf32>
    %51 = arith.divf %49, %50 : vector<16x1xf32>
    %52 = vector.broadcast %51 : vector<16x1xf32> to vector<16x256xf32>
    %53 = arith.subf %45, %52 : vector<16x256xf32>
    %54 = arith.mulf %53, %53 : vector<16x256xf32>
    %cst_21 = arith.constant dense<0.000000e+00> : vector<16xf32>
    %55 = vector.multi_reduction <add>, %54, %cst_21 [1] : vector<16x256xf32> to vector<16xf32>
    %56 = vector.shape_cast %55 : vector<16xf32> to vector<16x1xf32>
    %cst_22 = arith.constant 2.560000e+02 : f32
    %57 = vector.broadcast %cst_22 : f32 to vector<16x1xf32>
    %58 = arith.divf %56, %57 : vector<16x1xf32>
    %59 = vector.broadcast %51 : vector<16x1xf32> to vector<16x256xf32>
    %60 = arith.subf %45, %59 : vector<16x256xf32>
    %cst_23 = arith.constant 9.99999974E-6 : f32
    %61 = vector.broadcast %cst_23 : f32 to vector<16x1xf32>
    %62 = arith.addf %58, %61 : vector<16x1xf32>
    %63 = math.rsqrt %62 : vector<16x1xf32>
    %64 = vector.broadcast %63 : vector<16x1xf32> to vector<16x256xf32>
    %65 = arith.mulf %60, %64 : vector<16x256xf32>
    %66 = vector.broadcast %46 : vector<1x256xf32> to vector<16x256xf32>
    %67 = arith.mulf %65, %66 : vector<16x256xf32>
    %68 = vector.broadcast %47 : vector<1x256xf32> to vector<16x256xf32>
    %69 = arith.addf %67, %68 : vector<16x256xf32>
    %70 = arith.truncf %69 : vector<16x256xf32> to vector<16x256xbf16>
    %c0_24 = arith.constant 0 : index
    %c0_25 = arith.constant 0 : index
    %71 = vector.load %arg6[%c0_24, %c0_25] : memref<256x512xbf16, #tpu.memory_space<vmem>>, vector<256x512xbf16>
    %cst_26 = arith.constant dense<0.000000e+00> : vector<16x512xf32>
    %72 = tpu.matmul %70, %71, %cst_26 {dimension_numbers = #tpu.dot_dimension_numbers<[1], [0], [0], [1], [0, 0, 1, 1], [], []>} : vector<16x256xbf16>, vector<256x512xbf16>, vector<16x512xf32> -> vector<16x512xf32>
    %c0_27 = arith.constant 0 : index
    %c0_28 = arith.constant 0 : index
    %73 = vector.load %arg7[%c0_27, %c0_28] : memref<1x512xf32, #tpu.memory_space<vmem>>, vector<1x512xf32>
    %74 = vector.broadcast %73 : vector<1x512xf32> to vector<16x512xf32>
    %75 = arith.addf %72, %74 : vector<16x512xf32>
    %cst_29 = arith.constant 0.000000e+00 : f32
    %76 = vector.broadcast %cst_29 : f32 to vector<16x512xf32>
    %77 = arith.maximumf %75, %76 : vector<16x512xf32>
    %78 = arith.truncf %77 : vector<16x512xf32> to vector<16x512xbf16>
    %c0_30 = arith.constant 0 : index
    %c0_31 = arith.constant 0 : index
    %79 = vector.load %arg8[%c0_30, %c0_31] : memref<512x256xbf16, #tpu.memory_space<vmem>>, vector<512x256xbf16>
    %cst_32 = arith.constant dense<0.000000e+00> : vector<16x256xf32>
    %80 = tpu.matmul %78, %79, %cst_32 {dimension_numbers = #tpu.dot_dimension_numbers<[1], [0], [0], [1], [0, 0, 1, 1], [], []>} : vector<16x512xbf16>, vector<512x256xbf16>, vector<16x256xf32> -> vector<16x256xf32>
    %c0_33 = arith.constant 0 : index
    %c0_34 = arith.constant 0 : index
    %81 = vector.load %arg9[%c0_33, %c0_34] : memref<1x256xf32, #tpu.memory_space<vmem>>, vector<1x256xf32>
    %82 = vector.broadcast %81 : vector<1x256xf32> to vector<16x256xf32>
    %83 = arith.addf %80, %82 : vector<16x256xf32>
    %84 = arith.addf %69, %83 : vector<16x256xf32>
    %c0_35 = arith.constant 0 : index
    %c0_36 = arith.constant 0 : index
    %85 = vector.load %arg12[%c0_35, %c0_36] : memref<1x256xf32, #tpu.memory_space<vmem>>, vector<1x256xf32>
    %c0_37 = arith.constant 0 : index
    %c0_38 = arith.constant 0 : index
    %86 = vector.load %arg13[%c0_37, %c0_38] : memref<1x256xf32, #tpu.memory_space<vmem>>, vector<1x256xf32>
    %cst_39 = arith.constant dense<0.000000e+00> : vector<16xf32>
    %87 = vector.multi_reduction <add>, %84, %cst_39 [1] : vector<16x256xf32> to vector<16xf32>
    %88 = vector.shape_cast %87 : vector<16xf32> to vector<16x1xf32>
    %cst_40 = arith.constant 2.560000e+02 : f32
    %89 = vector.broadcast %cst_40 : f32 to vector<16x1xf32>
    %90 = arith.divf %88, %89 : vector<16x1xf32>
    %91 = vector.broadcast %90 : vector<16x1xf32> to vector<16x256xf32>
    %92 = arith.subf %84, %91 : vector<16x256xf32>
    %93 = arith.mulf %92, %92 : vector<16x256xf32>
    %cst_41 = arith.constant dense<0.000000e+00> : vector<16xf32>
    %94 = vector.multi_reduction <add>, %93, %cst_41 [1] : vector<16x256xf32> to vector<16xf32>
    %95 = vector.shape_cast %94 : vector<16xf32> to vector<16x1xf32>
    %cst_42 = arith.constant 2.560000e+02 : f32
    %96 = vector.broadcast %cst_42 : f32 to vector<16x1xf32>
    %97 = arith.divf %95, %96 : vector<16x1xf32>
    %98 = vector.broadcast %90 : vector<16x1xf32> to vector<16x256xf32>
    %99 = arith.subf %84, %98 : vector<16x256xf32>
    %cst_43 = arith.constant 9.99999974E-6 : f32
    %100 = vector.broadcast %cst_43 : f32 to vector<16x1xf32>
    %101 = arith.addf %97, %100 : vector<16x1xf32>
    %102 = math.rsqrt %101 : vector<16x1xf32>
    %103 = vector.broadcast %102 : vector<16x1xf32> to vector<16x256xf32>
    %104 = arith.mulf %99, %103 : vector<16x256xf32>
    %105 = vector.broadcast %85 : vector<1x256xf32> to vector<16x256xf32>
    %106 = arith.mulf %104, %105 : vector<16x256xf32>
    %107 = vector.broadcast %86 : vector<1x256xf32> to vector<16x256xf32>
    %108 = arith.addf %106, %107 : vector<16x256xf32>
    %c0_44 = arith.constant 0 : index
    %c0_45 = arith.constant 0 : index
    %c0_46 = arith.constant 0 : index
    %109 = vector.load %arg14[%c0_44, %c0_45, %c0_46] : memref<1x16x256xf32, #tpu.memory_space<vmem>>, vector<1x16x256xf32>
    %110 = vector.shape_cast %109 : vector<1x16x256xf32> to vector<16x256xf32>
    %111 = vector.shape_cast %108 : vector<16x256xf32> to vector<1x16x256xf32>
    tpu.vector_store %arg14[%c0_44, %c0_45, %c0_46], %111 {strides = array<i32>} : memref<1x16x256xf32, #tpu.memory_space<vmem>>, vector<1x16x256xf32>,
    return
  }
  func.func @transform_0(%arg0: i32) -> (i32, i32, i32) {
    %c0_i32 = arith.constant 0 : i32
    %c0_i32_0 = arith.constant 0 : i32
    %c0_i32_1 = arith.constant 0 : i32
    return %arg0, %c0_i32, %c0_i32_0 : i32, i32, i32
  }
  func.func @transform_1(%arg0: i32) -> (i32, i32) {
    %c0_i32 = arith.constant 0 : i32
    %c0_i32_0 = arith.constant 0 : i32
    %c0_i32_1 = arith.constant 0 : i32
    return %c0_i32, %c0_i32_0 : i32, i32
  }
  func.func @transform_2(%arg0: i32) -> (i32, i32) {
    %c0_i32 = arith.constant 0 : i32
    %c0_i32_0 = arith.constant 0 : i32
    %c0_i32_1 = arith.constant 0 : i32
    return %c0_i32, %c0_i32_0 : i32, i32
  }
  func.func @transform_3(%arg0: i32) -> (i32, i32) {
    %c0_i32 = arith.constant 0 : i32
    %c0_i32_0 = arith.constant 0 : i32
    %c0_i32_1 = arith.constant 0 : i32
    return %c0_i32, %c0_i32_0 : i32, i32
  }
  func.func @transform_4(%arg0: i32) -> (i32, i32) {
    %c0_i32 = arith.constant 0 : i32
    %c0_i32_0 = arith.constant 0 : i32
    %c0_i32_1 = arith.constant 0 : i32
    return %c0_i32, %c0_i32_0 : i32, i32
  }
  func.func @transform_5(%arg0: i32) -> (i32, i32) {
    %c0_i32 = arith.constant 0 : i32
    %c0_i32_0 = arith.constant 0 : i32
    %c0_i32_1 = arith.constant 0 : i32
    return %c0_i32, %c0_i32_0 : i32, i32
  }
  func.func @transform_6(%arg0: i32) -> (i32, i32) {
    %c0_i32 = arith.constant 0 : i32
    %c0_i32_0 = arith.constant 0 : i32
    %c0_i32_1 = arith.constant 0 : i32
    return %c0_i32, %c0_i32_0 : i32, i32
  }
  func.func @transform_7(%arg0: i32) -> (i32, i32) {
    %c0_i32 = arith.constant 0 : i32
    %c0_i32_0 = arith.constant 0 : i32
    %c0_i32_1 = arith.constant 0 : i32
    return %c0_i32, %c0_i32_0 : i32, i32
  }
  func.func @transform_8(%arg0: i32) -> (i32, i32) {
    %c0_i32 = arith.constant 0 : i32
    %c0_i32_0 = arith.constant 0 : i32
    %c0_i32_1 = arith.constant 0 : i32
    return %c0_i32, %c0_i32_0 : i32, i32
  }
  func.func @transform_9(%arg0: i32) -> (i32, i32) {
    %c0_i32 = arith.constant 0 : i32
    %c0_i32_0 = arith.constant 0 : i32
    %c0_i32_1 = arith.constant 0 : i32
    return %c0_i32, %c0_i32_0 : i32, i32
  }
  func.func @transform_10(%arg0: i32) -> (i32, i32) {
    %c0_i32 = arith.constant 0 : i32
    %c0_i32_0 = arith.constant 0 : i32
    %c0_i32_1 = arith.constant 0 : i32
    return %c0_i32, %c0_i32_0 : i32, i32
  }
  func.func @transform_11(%arg0: i32) -> (i32, i32) {
    %c0_i32 = arith.constant 0 : i32
    %c0_i32_0 = arith.constant 0 : i32
    %c0_i32_1 = arith.constant 0 : i32
    return %c0_i32, %c0_i32_0 : i32, i32
  }
  func.func @transform_12(%arg0: i32) -> (i32, i32) {
    %c0_i32 = arith.constant 0 : i32
    %c0_i32_0 = arith.constant 0 : i32
    %c0_i32_1 = arith.constant 0 : i32
    return %c0_i32, %c0_i32_0 : i32, i32
  }
  func.func @transform_13(%arg0: i32) -> (i32, i32, i32) {
    %c0_i32 = arith.constant 0 : i32
    %c0_i32_0 = arith.constant 0 : i32
    %c0_i32_1 = arith.constant 0 : i32
    return %arg0, %c0_i32, %c0_i32_0 : i32, i32, i32
  }
}

</mosaic_0001>

<llo_original>
// kernel: tpu_custom_call.1
$region0: #{tpu_custom_call.1}
  #allocation0 [shape = 'u32[]', space=smem, size = 0x4, offset = 0x4, fixed_abs, tag = 'smem constant byte address 0x4 - core index']
  #allocation1 [shape = 'u32[144,128]{1,0:T(1,128)}', space=vmem, size = 0x12000, scoped, tag = 'internal scratch']
  %s0 = inlined_call_operand.hbm [shape: f32[2,16,256], index: 0, kind: input, shape index: {}]
  %s1 = inlined_call_operand.hbm [shape: f32[16,256], index: 1, kind: input, shape index: {}]
  %s2 = inlined_call_operand.hbm [shape: f32[16,256], index: 2, kind: input, shape index: {}]
  %s3 = inlined_call_operand.hbm [shape: bf16[256,1280], index: 3, kind: input, shape index: {}]
  %s4 = inlined_call_operand.hbm [shape: bf16[256,256], index: 4, kind: input, shape index: {}]
  %s5 = inlined_call_operand.hbm [shape: bf16[256,512], index: 5, kind: input, shape index: {}]
  %s6 = inlined_call_operand.vmem [shape: f32[1,512], index: 6, kind: input, shape index: {}]
  %s7 = inlined_call_operand.hbm [shape: bf16[512,256], index: 7, kind: input, shape index: {}]
  %s8 = inlined_call_operand.vmem [shape: f32[1,256], index: 8, kind: input, shape index: {}]
  %s9 = inlined_call_operand.vmem [shape: f32[1,256], index: 9, kind: input, shape index: {}]
  %s10 = inlined_call_operand.vmem [shape: f32[1,256], index: 10, kind: input, shape index: {}]
  %s11 = inlined_call_operand.vmem [shape: f32[1,256], index: 11, kind: input, shape index: {}]
  %s12 = inlined_call_operand.vmem [shape: f32[1,256], index: 12, kind: input, shape index: {}]
  %s13 = inlined_call_operand.hbm [shape: f32[2,16,256], index: 13, kind: output, shape index: {}]
  %s14 = sld [smem:[#allocation0]]
  $region113: #{tpu_custom_call.1} parent=0
    _
  %s16 = ssub.s32 1, %s14
  %s17 = scalar_select 0, %s16, %s14
  $region1: #{tpu_custom_call.1} parent=0
    #allocation2 [shape = 'u8[32768]{0}', space=vmem, size = 0x8000, scoped, tag = 'input window, operand 0']
    #allocation3 [shape = 's32[2]{0}', space=sflag, size = 0x8, scoped, tag = 'scoped memory for tpu_custom_call.1']
    #allocation4 [shape = 's32[2]{0}', space=sflag, size = 0x8, scoped, tag = 'scoped memory for tpu_custom_call.1']
    #allocation5 [shape = 'u8[16384]{0}', space=vmem, size = 0x4000, scoped, tag = 'input window, operand 1, single buffered']
    #allocation6 [shape = 's32[1]{0}', space=sflag, size = 0x4, scoped, tag = 'scoped memory for tpu_custom_call.1']
    #allocation7 [shape = 'u8[16384]{0}', space=vmem, size = 0x4000, scoped, tag = 'input window, operand 2, single buffered']
    #allocation8 [shape = 'u8[655360]{0}', space=vmem, size = 0xa0000, scoped, tag = 'input window, operand 3, single buffered']
    #allocation9 [shape = 's32[1]{0}', space=sflag, size = 0x4, scoped, tag = 'scoped memory for tpu_custom_call.1']
    #allocation10 [shape = 'u8[131072]{0}', space=vmem, size = 0x20000, scoped, tag = 'input window, operand 4, single buffered']
    #allocation11 [shape = 'u8[262144]{0}', space=vmem, size = 0x40000, scoped, tag = 'input window, operand 5, single buffered']
    #allocation12 [shape = 's32[1]{0}', space=sflag, size = 0x4, scoped, tag = 'scoped memory for tpu_custom_call.1']
    #allocation13 [shape = 'u8[262144]{0}', space=vmem, size = 0x40000, scoped, tag = 'input window, operand 7, single buffered']
    #allocation14 [shape = 'u8[32768]{0}', space=vmem, size = 0x8000, scoped, tag = 'output window, operand 0']
    %18 = vsyncpa [#allocation3], 0
    %s19 = scalar_lea.sflag [#allocation3], 1
    %20 = vsyncpa %s19, 0
    %21 = vsyncpa [#allocation6], 0
    %22 = vsyncpa [#allocation9], 0
    %23 = vsyncpa [#allocation12], 0
    %24 = vsyncpa [#allocation4], 0
    %s25 = scalar_lea.sflag [#allocation4], 1
    %26 = vsyncpa %s25, 0
    loop: start=0, step=1, limit=4
    $region2: #{tpu_custom_call.1} parent=1 // loop_pre_header
      _
    $region3: #{tpu_custom_call.1} parent=1 // loop_header
      %s28 = sphi 0, %s32
      %p29 = scmp.ge.s32.totalorder %s28, 4
      %s38 = sphi 0, %s40
      %s41 = sphi 0, %s38
      %s42 = sphi 0, %s41
      %s58 = sphi 0, %s42
      %s62 = sphi 0, %s62
      %s64 = sphi 0, %s62
      %s65 = sphi 0, %s64
      %s79 = sphi 0, %s65
      %s83 = sphi 0, %s83
      %s85 = sphi 0, %s83
      %s86 = sphi 0, %s85
      %s100 = sphi 0, %s86
      %s104 = sphi 0, %s104
      %s106 = sphi 0, %s104
      %s107 = sphi 0, %s106
      %s121 = sphi 0, %s107
      %s125 = sphi 0, %s125
      %s127 = sphi 0, %s125
      %s128 = sphi 0, %s127
      %s142 = sphi 0, %s128
      %s146 = sphi 0, %s146
      %s148 = sphi 0, %s146
      %s149 = sphi 0, %s148
      %s163 = sphi 0, %s149
      %s167 = sphi 0, %s167
      %s169 = sphi 0, %s167
      %s170 = sphi 0, %s169
      %s184 = sphi 0, %s170
      %s188 = sphi 0, %s188
      %s190 = sphi 0, %s188
      %s191 = sphi 0, %s190
      %s205 = sphi 0, %s191
      %s209 = sphi 0, %s209
      %s211 = sphi 0, %s209
      %s212 = sphi 0, %s211
      %s226 = sphi 0, %s212
      %s230 = sphi 0, %s230
      %s232 = sphi 0, %s230
      %s233 = sphi 0, %s232
      %s247 = sphi 0, %s233
      %s251 = sphi 0, %s251
      %s253 = sphi 0, %s251
      %s254 = sphi 0, %s253
      %s268 = sphi 0, %s254
      %s272 = sphi 0, %s272
      %s274 = sphi 0, %s272
      %s275 = sphi 0, %s274
      %s289 = sphi 0, %s275
      %s293 = sphi 0, %s293
      %s295 = sphi 0, %s293
      %s296 = sphi 0, %s295
      %s310 = sphi 0, %s296
      %s316 = sphi 0, %s318
      %s319 = sphi 0, %s316
      %s320 = sphi 0, %s319
      %s336 = sphi 0, %s320
    $region4: #{tpu_custom_call.1} parent=1 // loop_header_branch
      %31 = sbr.rel (%p29) target = $region8
    $region5: #{tpu_custom_call.1} parent=1 // loop_body
      %s33 = ssub.s32 %s28, 1
      %s34 = ssub.s32 %s28, 2
      %s35 = sadd.s32 %s28, 1
      %s36 = ssub.s32 %s28, %s35
      %p37 = scmp.eq.s32.totalorder %s36, 0
      %s39 = sadd.s32 %s38, 1
      %s40 = scalar_select %p37, %s38, %s39
      %p43 = pneg %p37
      %p44 = scmp.eq.s32.totalorder %s28, 1
      %p45 = por %p43, %p44
      %p46 = scmp.ne.s32.totalorder %s38, %s41
      %p47 = scmp.eq.s32.totalorder %s28, 0
      %p48 = por %p46, %p47
      %p49 = scmp.ne.s32.totalorder %s38, %s41
      %p50 = scmp.eq.s32.totalorder %s33, 1
      %p51 = por %p49, %p50
      %p52 = scmp.ne.s32.totalorder %s41, %s42
      %p53 = scmp.eq.s32.totalorder %s33, 0
      %p54 = por %p52, %p53
      %p55 = scmp.ne.s32.totalorder %s41, %s42
      %p56 = scmp.eq.s32.totalorder %s34, 1
      %p57 = por %p55, %p56
      %p59 = scmp.ne.s32.totalorder %s42, %s58
      %p60 = scmp.eq.s32.totalorder %s34, 0
      %p61 = por %p59, %p60
      %s63 = sadd.s32 %s62, 1
      %p66 = scmp.eq.s32.totalorder %s28, 1
      %p67 = scmp.ne.s32.totalorder %s62, %s64
      %p68 = scmp.eq.s32.totalorder %s28, 0
      %p69 = por %p67, %p68
      %p70 = scmp.ne.s32.totalorder %s62, %s64
      %p71 = scmp.eq.s32.totalorder %s33, 1
      %p72 = por %p70, %p71
      %p73 = scmp.ne.s32.totalorder %s64, %s65
      %p74 = scmp.eq.s32.totalorder %s33, 0
      %p75 = por %p73, %p74
      %p76 = scmp.ne.s32.totalorder %s64, %s65
      %p77 = scmp.eq.s32.totalorder %s34, 1
      %p78 = por %p76, %p77
      %p80 = scmp.ne.s32.totalorder %s65, %s79
      %p81 = scmp.eq.s32.totalorder %s34, 0
      %p82 = por %p80, %p81
      %s84 = sadd.s32 %s83, 1
      %p87 = scmp.eq.s32.totalorder %s28, 1
      %p88 = scmp.ne.s32.totalorder %s83, %s85
      %p89 = scmp.eq.s32.totalorder %s28, 0
      %p90 = por %p88, %p89
      %p91 = scmp.ne.s32.totalorder %s83, %s85
      %p92 = scmp.eq.s32.totalorder %s33, 1
      %p93 = por %p91, %p92
      %p94 = scmp.ne.s32.totalorder %s85, %s86
      %p95 = scmp.eq.s32.totalorder %s33, 0
      %p96 = por %p94, %p95
      %p97 = scmp.ne.s32.totalorder %s85, %s86
      %p98 = scmp.eq.s32.totalorder %s34, 1
      %p99 = por %p97, %p98
      %p101 = scmp.ne.s32.totalorder %s86, %s100
      %p102 = scmp.eq.s32.totalorder %s34, 0
      %p103 = por %p101, %p102
      %s105 = sadd.s32 %s104, 1
      %p108 = scmp.eq.s32.totalorder %s28, 1
      %p109 = scmp.ne.s32.totalorder %s104, %s106
      %p110 = scmp.eq.s32.totalorder %s28, 0
      %p111 = por %p109, %p110
      %p112 = scmp.ne.s32.totalorder %s104, %s106
      %p113 = scmp.eq.s32.totalorder %s33, 1
      %p114 = por %p112, %p113
      %p115 = scmp.ne.s32.totalorder %s106, %s107
      %p116 = scmp.eq.s32.totalorder %s33, 0
      %p117 = por %p115, %p116
      %p118 = scmp.ne.s32.totalorder %s106, %s107
      %p119 = scmp.eq.s32.totalorder %s34, 1
      %p120 = por %p118, %p119
      %p122 = scmp.ne.s32.totalorder %s107, %s121
      %p123 = scmp.eq.s32.totalorder %s34, 0
      %p124 = por %p122, %p123
      %s126 = sadd.s32 %s125, 1
      %p129 = scmp.eq.s32.totalorder %s28, 1
      %p130 = scmp.ne.s32.totalorder %s125, %s127
      %p131 = scmp.eq.s32.totalorder %s28, 0
      %p132 = por %p130, %p131
      %p133 = scmp.ne.s32.totalorder %s125, %s127
      %p134 = scmp.eq.s32.totalorder %s33, 1
      %p135 = por %p133, %p134
      %p136 = scmp.ne.s32.totalorder %s127, %s128
      %p137 = scmp.eq.s32.totalorder %s33, 0
      %p138 = por %p136, %p137
      %p139 = scmp.ne.s32.totalorder %s127, %s128
      %p140 = scmp.eq.s32.totalorder %s34, 1
      %p141 = por %p139, %p140
      %p143 = scmp.ne.s32.totalorder %s128, %s142
      %p144 = scmp.eq.s32.totalorder %s34, 0
      %p145 = por %p143, %p144
      %s147 = sadd.s32 %s146, 1
      %p150 = scmp.eq.s32.totalorder %s28, 1
      %p151 = scmp.ne.s32.totalorder %s146, %s148
      %p152 = scmp.eq.s32.totalorder %s28, 0
      %p153 = por %p151, %p152
      %p154 = scmp.ne.s32.totalorder %s146, %s148
      %p155 = scmp.eq.s32.totalorder %s33, 1
      %p156 = por %p154, %p155
      %p157 = scmp.ne.s32.totalorder %s148, %s149
      %p158 = scmp.eq.s32.totalorder %s33, 0
      %p159 = por %p157, %p158
      %p160 = scmp.ne.s32.totalorder %s148, %s149
      %p161 = scmp.eq.s32.totalorder %s34, 1
      %p162 = por %p160, %p161
      %p164 = scmp.ne.s32.totalorder %s149, %s163
      %p165 = scmp.eq.s32.totalorder %s34, 0
      %p166 = por %p164, %p165
      %s168 = sadd.s32 %s167, 1
      %p171 = scmp.eq.s32.totalorder %s28, 1
      %p172 = scmp.ne.s32.totalorder %s167, %s169
      %p173 = scmp.eq.s32.totalorder %s28, 0
      %p174 = por %p172, %p173
      %p175 = scmp.ne.s32.totalorder %s167, %s169
      %p176 = scmp.eq.s32.totalorder %s33, 1
      %p177 = por %p175, %p176
      %p178 = scmp.ne.s32.totalorder %s169, %s170
      %p179 = scmp.eq.s32.totalorder %s33, 0
      %p180 = por %p178, %p179
      %p181 = scmp.ne.s32.totalorder %s169, %s170
      %p182 = scmp.eq.s32.totalorder %s34, 1
      %p183 = por %p181, %p182
      %p185 = scmp.ne.s32.totalorder %s170, %s184
      %p186 = scmp.eq.s32.totalorder %s34, 0
      %p187 = por %p185, %p186
      %s189 = sadd.s32 %s188, 1
      %p192 = scmp.eq.s32.totalorder %s28, 1
      %p193 = scmp.ne.s32.totalorder %s188, %s190
      %p194 = scmp.eq.s32.totalorder %s28, 0
      %p195 = por %p193, %p194
      %p196 = scmp.ne.s32.totalorder %s188, %s190
      %p197 = scmp.eq.s32.totalorder %s33, 1
      %p198 = por %p196, %p197
      %p199 = scmp.ne.s32.totalorder %s190, %s191
      %p200 = scmp.eq.s32.totalorder %s33, 0
      %p201 = por %p199, %p200
      %p202 = scmp.ne.s32.totalorder %s190, %s191
      %p203 = scmp.eq.s32.totalorder %s34, 1
      %p204 = por %p202, %p203
      %p206 = scmp.ne.s32.totalorder %s191, %s205
      %p207 = scmp.eq.s32.totalorder %s34, 0
      %p208 = por %p206, %p207
      %s210 = sadd.s32 %s209, 1
      %p213 = scmp.eq.s32.totalorder %s28, 1
      %p214 = scmp.ne.s32.totalorder %s209, %s211
      %p215 = scmp.eq.s32.totalorder %s28, 0
      %p216 = por %p214, %p215
      %p217 = scmp.ne.s32.totalorder %s209, %s211
      %p218 = scmp.eq.s32.totalorder %s33, 1
      %p219 = por %p217, %p218
      %p220 = scmp.ne.s32.totalorder %s211, %s212
      %p221 = scmp.eq.s32.totalorder %s33, 0
      %p222 = por %p220, %p221
      %p223 = scmp.ne.s32.totalorder %s211, %s212
      %p224 = scmp.eq.s32.totalorder %s34, 1
      %p225 = por %p223, %p224
      %p227 = scmp.ne.s32.totalorder %s212, %s226
      %p228 = scmp.eq.s32.totalorder %s34, 0
      %p229 = por %p227, %p228
      %s231 = sadd.s32 %s230, 1
      %p234 = scmp.eq.s32.totalorder %s28, 1
      %p235 = scmp.ne.s32.totalorder %s230, %s232
      %p236 = scmp.eq.s32.totalorder %s28, 0
      %p237 = por %p235, %p236
      %p238 = scmp.ne.s32.totalorder %s230, %s232
      %p239 = scmp.eq.s32.totalorder %s33, 1
      %p240 = por %p238, %p239
      %p241 = scmp.ne.s32.totalorder %s232, %s233
      %p242 = scmp.eq.s32.totalorder %s33, 0
      %p243 = por %p241, %p242
      %p244 = scmp.ne.s32.totalorder %s232, %s233
      %p245 = scmp.eq.s32.totalorder %s34, 1
      %p246 = por %p244, %p245
      %p248 = scmp.ne.s32.totalorder %s233, %s247
      %p249 = scmp.eq.s32.totalorder %s34, 0
      %p250 = por %p248, %p249
      %s252 = sadd.s32 %s251, 1
      %p255 = scmp.eq.s32.totalorder %s28, 1
      %p256 = scmp.ne.s32.totalorder %s251, %s253
      %p257 = scmp.eq.s32.totalorder %s28, 0
      %p258 = por %p256, %p257
      %p259 = scmp.ne.s32.totalorder %s251, %s253
      %p260 = scmp.eq.s32.totalorder %s33, 1
      %p261 = por %p259, %p260
      %p262 = scmp.ne.s32.totalorder %s253, %s254
      %p263 = scmp.eq.s32.totalorder %s33, 0
      %p264 = por %p262, %p263
      %p265 = scmp.ne.s32.totalorder %s253, %s254
      %p266 = scmp.eq.s32.totalorder %s34, 1
      %p267 = por %p265, %p266
      %p269 = scmp.ne.s32.totalorder %s254, %s268
      %p270 = scmp.eq.s32.totalorder %s34, 0
      %p271 = por %p269, %p270
      %s273 = sadd.s32 %s272, 1
      %p276 = scmp.eq.s32.totalorder %s28, 1
      %p277 = scmp.ne.s32.totalorder %s272, %s274
      %p278 = scmp.eq.s32.totalorder %s28, 0
      %p279 = por %p277, %p278
      %p280 = scmp.ne.s32.totalorder %s272, %s274
      %p281 = scmp.eq.s32.totalorder %s33, 1
      %p282 = por %p280, %p281
      %p283 = scmp.ne.s32.totalorder %s274, %s275
      %p284 = scmp.eq.s32.totalorder %s33, 0
      %p285 = por %p283, %p284
      %p286 = scmp.ne.s32.totalorder %s274, %s275
      %p287 = scmp.eq.s32.totalorder %s34, 1
      %p288 = por %p286, %p287
      %p290 = scmp.ne.s32.totalorder %s275, %s289
      %p291 = scmp.eq.s32.totalorder %s34, 0
      %p292 = por %p290, %p291
      %s294 = sadd.s32 %s293, 1
      %p297 = scmp.eq.s32.totalorder %s28, 1
      %p298 = scmp.ne.s32.totalorder %s293, %s295
      %p299 = scmp.eq.s32.totalorder %s28, 0
      %p300 = por %p298, %p299
      %p301 = scmp.ne.s32.totalorder %s293, %s295
      %p302 = scmp.eq.s32.totalorder %s33, 1
      %p303 = por %p301, %p302
      %p304 = scmp.ne.s32.totalorder %s295, %s296
      %p305 = scmp.eq.s32.totalorder %s33, 0
      %p306 = por %p304, %p305
      %p307 = scmp.ne.s32.totalorder %s295, %s296
      %p308 = scmp.eq.s32.totalorder %s34, 1
      %p309 = por %p307, %p308
      %p311 = scmp.ne.s32.totalorder %s296, %s310
      %p312 = scmp.eq.s32.totalorder %s34, 0
      %p313 = por %p311, %p312
      %s314 = ssub.s32 %s28, %s35
      %p315 = scmp.eq.s32.totalorder %s314, 0
      %s317 = sadd.s32 %s316, 1
      %s318 = scalar_select %p315, %s316, %s317
      %p321 = pneg %p315
      %p322 = scmp.eq.s32.totalorder %s28, 1
      %p323 = por %p321, %p322
      %p324 = scmp.ne.s32.totalorder %s316, %s319
      %p325 = scmp.eq.s32.totalorder %s28, 0
      %p326 = por %p324, %p325
      %p327 = scmp.ne.s32.totalorder %s316, %s319
      %p328 = scmp.eq.s32.totalorder %s33, 1
      %p329 = por %p327, %p328
      %p330 = scmp.ne.s32.totalorder %s319, %s320
      %p331 = scmp.eq.s32.totalorder %s33, 0
      %p332 = por %p330, %p331
      %p333 = scmp.ne.s32.totalorder %s319, %s320
      %p334 = scmp.eq.s32.totalorder %s34, 1
      %p335 = por %p333, %p334
      %p337 = scmp.ne.s32.totalorder %s320, %s336
      %p338 = scmp.eq.s32.totalorder %s34, 0
      %p339 = por %p337, %p338
      %p340 = scmp.le.s32.totalorder 1, %s28
      %p341 = scmp.lt.s32.totalorder %s28, 3
      %p342 = pnand %p340, %p341
      %p343 = pneg %p342
      // Predicated region
      $region9: #{tpu_custom_call.1} parent=5 // pred_check
        _
      $region10: #{tpu_custom_call.1} parent=5 // pred_check_branch
        %345 = sbr.rel (%p342) target = $region12
      $region11: #{tpu_custom_call.1} parent=5 // pred_region
        %s346 = ssub.s32 %s28, 1
        // Predicated region
        $region13: #{tpu_custom_call.1} parent=11 // pred_check
          %p347 = pneg %p75
        $region14: #{tpu_custom_call.1} parent=11 // pred_check_branch
          %349 = sbr.rel (%p347) target = $region16
        $region15: #{tpu_custom_call.1} parent=11 // pred_region
          %s351 = ssub.s32 512, 512
          %352 = vsyncadd [#allocation6], %s351
          %s353 = sshll.u32 [#allocation5], 4
          %s354 = int_to_ptr.vmem [resolvable:$true] %s353
          %359 = dma.hbm_to_vmem [thread:$0]  %s1, 512, %s354, [#allocation6], 256, 256, 16
        $region16: #{tpu_custom_call.1} parent=11 // pred_fallthru
          _
        // Predicated region
        $region17: #{tpu_custom_call.1} parent=11 // pred_check
          %p360 = pneg %p96
        $region18: #{tpu_custom_call.1} parent=11 // pred_check_branch
          %362 = sbr.rel (%p360) target = $region20
        $region19: #{tpu_custom_call.1} parent=11 // pred_region
          %s364 = ssub.s32 512, 512
          %365 = vsyncadd [#allocation6], %s364
          %s366 = sshll.u32 [#allocation7], 4
          %s367 = int_to_ptr.vmem [resolvable:$true] %s366
          %372 = dma.hbm_to_vmem [thread:$0]  %s2, 512, %s367, [#allocation6], 256, 256, 16
        $region20: #{tpu_custom_call.1} parent=11 // pred_fallthru
          _
        // Predicated region
        $region21: #{tpu_custom_call.1} parent=11 // pred_check
          %p373 = pneg %p117
        $region22: #{tpu_custom_call.1} parent=11 // pred_check_branch
          %375 = sbr.rel (%p373) target = $region24
        $region23: #{tpu_custom_call.1} parent=11 // pred_region
          %s377 = ssub.s32 20480, 20480
          %378 = vsyncadd [#allocation9], %s377
          %s379 = sshll.u32 [#allocation8], 4
          %s380 = int_to_ptr.vmem [resolvable:$true] %s379
          %385 = dma.hbm_to_vmem [thread:$0]  %s3, 20480, %s380, [#allocation9], 640, 640, 40
        $region24: #{tpu_custom_call.1} parent=11 // pred_fallthru
          _
        // Predicated region
        $region25: #{tpu_custom_call.1} parent=11 // pred_check
          %p386 = pneg %p138
        $region26: #{tpu_custom_call.1} parent=11 // pred_check_branch
          %388 = sbr.rel (%p386) target = $region28
        $region27: #{tpu_custom_call.1} parent=11 // pred_region
          %s390 = ssub.s32 4096, 4096
          %391 = vsyncadd [#allocation9], %s390
          %s392 = sshll.u32 [#allocation10], 4
          %s393 = int_to_ptr.vmem [resolvable:$true] %s392
          %398 = dma.hbm_to_vmem [thread:$0]  %s4, 4096, %s393, [#allocation9], 128, 128, 8
        $region28: #{tpu_custom_call.1} parent=11 // pred_fallthru
          _
        // Predicated region
        $region29: #{tpu_custom_call.1} parent=11 // pred_check
          %p399 = pneg %p159
        $region30: #{tpu_custom_call.1} parent=11 // pred_check_branch
          %401 = sbr.rel (%p399) target = $region32
        $region31: #{tpu_custom_call.1} parent=11 // pred_region
          %s403 = ssub.s32 8192, 8192
          %404 = vsyncadd [#allocation12], %s403
          %s405 = sshll.u32 [#allocation11], 4
          %s406 = int_to_ptr.vmem [resolvable:$true] %s405
          %411 = dma.hbm_to_vmem [thread:$0]  %s5, 8192, %s406, [#allocation12], 256, 256, 16
        $region32: #{tpu_custom_call.1} parent=11 // pred_fallthru
          _
        // Predicated region
        $region33: #{tpu_custom_call.1} parent=11 // pred_check
          %p412 = pneg %p180
        $region34: #{tpu_custom_call.1} parent=11 // pred_check_branch
          %414 = sbr.rel (%p412) target = $region36
        $region35: #{tpu_custom_call.1} parent=11 // pred_region
          _
        $region36: #{tpu_custom_call.1} parent=11 // pred_fallthru
          _
        // Predicated region
        $region37: #{tpu_custom_call.1} parent=11 // pred_check
          %p415 = pneg %p201
        $region38: #{tpu_custom_call.1} parent=11 // pred_check_branch
          %417 = sbr.rel (%p415) target = $region40
        $region39: #{tpu_custom_call.1} parent=11 // pred_region
          %s419 = ssub.s32 8192, 8192
          %420 = vsyncadd [#allocation12], %s419
          %s421 = sshll.u32 [#allocation13], 4
          %s422 = int_to_ptr.vmem [resolvable:$true] %s421
          %427 = dma.hbm_to_vmem [thread:$0]  %s7, 8192, %s422, [#allocation12], 128, 128, 8
        $region40: #{tpu_custom_call.1} parent=11 // pred_fallthru
          _
        // Predicated region
        $region41: #{tpu_custom_call.1} parent=11 // pred_check
          %p428 = pneg %p222
        $region42: #{tpu_custom_call.1} parent=11 // pred_check_branch
          %430 = sbr.rel (%p428) target = $region44
        $region43: #{tpu_custom_call.1} parent=11 // pred_region
          _
        $region44: #{tpu_custom_call.1} parent=11 // pred_fallthru
          _
        // Predicated region
        $region45: #{tpu_custom_call.1} parent=11 // pred_check
          %p431 = pneg %p243
        $region46: #{tpu_custom_call.1} parent=11 // pred_check_branch
          %433 = sbr.rel (%p431) target = $region48
        $region47: #{tpu_custom_call.1} parent=11 // pred_region
          _
        $region48: #{tpu_custom_call.1} parent=11 // pred_fallthru
          _
        // Predicated region
        $region49: #{tpu_custom_call.1} parent=11 // pred_check
          %p434 = pneg %p264
        $region50: #{tpu_custom_call.1} parent=11 // pred_check_branch
          %436 = sbr.rel (%p434) target = $region52
        $region51: #{tpu_custom_call.1} parent=11 // pred_region
          _
        $region52: #{tpu_custom_call.1} parent=11 // pred_fallthru
          _
        // Predicated region
        $region53: #{tpu_custom_call.1} parent=11 // pred_check
          %p437 = pneg %p285
        $region54: #{tpu_custom_call.1} parent=11 // pred_check_branch
          %439 = sbr.rel (%p437) target = $region56
        $region55: #{tpu_custom_call.1} parent=11 // pred_region
          _
        $region56: #{tpu_custom_call.1} parent=11 // pred_fallthru
          _
        // Predicated region
        $region57: #{tpu_custom_call.1} parent=11 // pred_check
          %p440 = pneg %p306
        $region58: #{tpu_custom_call.1} parent=11 // pred_check_branch
          %442 = sbr.rel (%p440) target = $region60
        $region59: #{tpu_custom_call.1} parent=11 // pred_region
          _
        $region60: #{tpu_custom_call.1} parent=11 // pred_fallthru
          _
      $region12: #{tpu_custom_call.1} parent=5 // pred_fallthru
        _
      %p443 = scmp.lt.s32.totalorder %s28, 2
      // Predicated region
      $region61: #{tpu_custom_call.1} parent=5 // pred_check
        %p444 = pneg %p443
      $region62: #{tpu_custom_call.1} parent=5 // pred_check_branch
        %446 = sbr.rel (%p444) target = $region64
      $region63: #{tpu_custom_call.1} parent=5 // pred_region
        // Predicated region
        $region65: #{tpu_custom_call.1} parent=63 // pred_check
          %p447 = pneg %p48
        $region66: #{tpu_custom_call.1} parent=63 // pred_check_branch
          %449 = sbr.rel (%p447) target = $region68
        $region67: #{tpu_custom_call.1} parent=63 // pred_region
          %s450 = sand.u32 %s38, 1
          %s451 = scalar_lea.sflag [#allocation3], %s450
          %s452 = sand.u32 %s38, 1
          %s453 = smul.addr %s452, 32
          %s454 = scalar_lea.vmem [#allocation2], %s453
          %s456 = ssub.s32 512, 512
          %457 = vsyncadd %s451, %s456
          %s458 = smul.addr %s28, 4
          %s459 = smul.addr %s458, 128
          %s460 = scalar_lea.hbm %s0, %s459
          %s461 = sshll.u32 %s454, 4
          %s462 = int_to_ptr.vmem [resolvable:$true] %s461
          %467 = dma.hbm_to_vmem [thread:$0]  %s460, 512, %s462, %s451, 256, 256, 16
        $region68: #{tpu_custom_call.1} parent=63 // pred_fallthru
          _
      $region64: #{tpu_custom_call.1} parent=5 // pred_fallthru
        _
      %p468 = scmp.le.s32.totalorder 1, %s28
      %p469 = scmp.lt.s32.totalorder %s28, 3
      %p470 = pnand %p468, %p469
      %p471 = pneg %p470
      // Predicated region
      $region69: #{tpu_custom_call.1} parent=5 // pred_check
        _
      $region70: #{tpu_custom_call.1} parent=5 // pred_check_branch
        %473 = sbr.rel (%p470) target = $region72
      $region71: #{tpu_custom_call.1} parent=5 // pred_region
        %s474 = ssub.s32 %s28, 1
        %s475 = sand.u32 %s41, 1
        %s476 = scalar_lea.sflag [#allocation3], %s475
        %s477 = sand.u32 %s41, 1
        %s478 = smul.addr %s477, 32
        %s479 = scalar_lea.vmem [#allocation2], %s478
        // Predicated region
        $region73: #{tpu_custom_call.1} parent=71 // pred_check
          %p480 = pneg %p54
        $region74: #{tpu_custom_call.1} parent=71 // pred_check_branch
          %482 = sbr.rel (%p480) target = $region76
        $region75: #{tpu_custom_call.1} parent=71 // pred_region
          %483 = dma.done %s476, 512
        $region76: #{tpu_custom_call.1} parent=71 // pred_fallthru
          _
        // Predicated region
        $region77: #{tpu_custom_call.1} parent=71 // pred_check
          %p484 = pneg %p75
        $region78: #{tpu_custom_call.1} parent=71 // pred_check_branch
          %486 = sbr.rel (%p484) target = $region80
        $region79: #{tpu_custom_call.1} parent=71 // pred_region
          %487 = dma.done [#allocation6], 512
        $region80: #{tpu_custom_call.1} parent=71 // pred_fallthru
          _
        // Predicated region
        $region81: #{tpu_custom_call.1} parent=71 // pred_check
          %p488 = pneg %p96
        $region82: #{tpu_custom_call.1} parent=71 // pred_check_branch
          %490 = sbr.rel (%p488) target = $region84
        $region83: #{tpu_custom_call.1} parent=71 // pred_region
          %491 = dma.done [#allocation6], 512
        $region84: #{tpu_custom_call.1} parent=71 // pred_fallthru
          _
        // Predicated region
        $region85: #{tpu_custom_call.1} parent=71 // pred_check
          %p492 = pneg %p117
        $region86: #{tpu_custom_call.1} parent=71 // pred_check_branch
          %494 = sbr.rel (%p492) target = $region88
        $region87: #{tpu_custom_call.1} parent=71 // pred_region
          %495 = dma.done [#allocation9], 20480
        $region88: #{tpu_custom_call.1} parent=71 // pred_fallthru
          _
        // Predicated region
        $region89: #{tpu_custom_call.1} parent=71 // pred_check
          %p496 = pneg %p138
        $region90: #{tpu_custom_call.1} parent=71 // pred_check_branch
          %498 = sbr.rel (%p496) target = $region92
        $region91: #{tpu_custom_call.1} parent=71 // pred_region
          %499 = dma.done [#allocation9], 4096
        $region92: #{tpu_custom_call.1} parent=71 // pred_fallthru
          _
        // Predicated region
        $region93: #{tpu_custom_call.1} parent=71 // pred_check
          %p500 = pneg %p159
        $region94: #{tpu_custom_call.1} parent=71 // pred_check_branch
          %502 = sbr.rel (%p500) target = $region96
        $region95: #{tpu_custom_call.1} parent=71 // pred_region
          %503 = dma.done [#allocation12], 8192
        $region96: #{tpu_custom_call.1} parent=71 // pred_fallthru
          _
        // Predicated region
        $region97: #{tpu_custom_call.1} parent=71 // pred_check
          %p504 = pneg %p201
        $region98: #{tpu_custom_call.1} parent=71 // pred_check_branch
          %506 = sbr.rel (%p504) target = $region100
        $region99: #{tpu_custom_call.1} parent=71 // pred_region
          %507 = dma.done [#allocation12], 8192
        $region100: #{tpu_custom_call.1} parent=71 // pred_fallthru
          _
        %s508 = sand.u32 %s41, 1
        %s509 = scalar_lea.sflag [#allocation3], %s508
        %s510 = sand.u32 %s41, 1
        %s511 = smul.addr %s510, 32
        %s512 = scalar_lea.vmem [#allocation2], %s511
        %p513 = pneg %p54
        %p514 = pneg %p51
        %p515 = pneg %p75
        %p516 = pneg %p72
        %p517 = pneg %p96
        %p518 = pneg %p93
        %p519 = pneg %p117
        %p520 = pneg %p114
        %p521 = pneg %p138
        %p522 = pneg %p135
        %p523 = pneg %p159
        %p524 = pneg %p156
        %p525 = pneg %p180
        %p526 = pneg %p177
        %p527 = pneg %p201
        %p528 = pneg %p198
        %p529 = pneg %p222
        %p530 = pneg %p219
        %p531 = pneg %p243
        %p532 = pneg %p240
        %p533 = pneg %p264
        %p534 = pneg %p261
        %p535 = pneg %p285
        %p536 = pneg %p282
        %p537 = pneg %p306
        %p538 = pneg %p303
        %p539 = pneg %p332
        %p540 = pneg %p329
        %s541 = sand.u32 %s319, 1
        %s542 = scalar_lea.sflag [#allocation4], %s541
        %s543 = sand.u32 %s319, 1
        %s544 = smul.addr %s543, 32
        %s545 = scalar_lea.vmem [#allocation14], %s544
        %v547 = vld [vmem:[%s479] sm:$0xff]
        %v548 = vld [vmem:[%s479 + $0x8] sm:$0xff]
        %v549 = vld [vmem:[%s479 + $0x10] sm:$0xff]
        %v550 = vld [vmem:[%s479 + $0x18] sm:$0xff]
        %v551 = vpack.c.bf16 %v549, %v547
        %v552 = vpack.c.bf16 %v550, %v548
        %v553 = vld [vmem:[#allocation8] sm:$0xff]
        %v554 = vld [vmem:[#allocation8 + $0x8] sm:$0xff]
        %v555 = vld [vmem:[#allocation8 + $0x10] sm:$0xff]
        %v556 = vld [vmem:[#allocation8 + $0x18] sm:$0xff]
        %v557 = vld [vmem:[#allocation8 + $0x20] sm:$0xff]
        %v558 = vld [vmem:[#allocation8 + $0x28] sm:$0xff]
        %v559 = vld [vmem:[#allocation8 + $0x30] sm:$0xff]
        %v560 = vld [vmem:[#allocation8 + $0x38] sm:$0xff]
        %v561 = vld [vmem:[#allocation8 + $0x40] sm:$0xff]
        %v562 = vld [vmem:[#allocation8 + $0x48] sm:$0xff]
        %v563 = vld [vmem:[#allocation8 + $0x50] sm:$0xff]
        %v564 = vld [vmem:[#allocation8 + $0x58] sm:$0xff]
        %v565 = vld [vmem:[#allocation8 + $0x60] sm:$0xff]
        %v566 = vld [vmem:[#allocation8 + $0x68] sm:$0xff]
        %v567 = vld [vmem:[#allocation8 + $0x70] sm:$0xff]
        %v568 = vld [vmem:[#allocation8 + $0x78] sm:$0xff]
        %v569 = vld [vmem:[#allocation8 + $0x80] sm:$0xff]
        %v570 = vld [vmem:[#allocation8 + $0x88] sm:$0xff]
        %v571 = vld [vmem:[#allocation8 + $0x90] sm:$0xff]
        %v572 = vld [vmem:[#allocation8 + $0x98] sm:$0xff]
        %v573 = vld [vmem:[#allocation8 + $0xa0] sm:$0xff]
        %v574 = vld [vmem:[#allocation8 + $0xa8] sm:$0xff]
        %v575 = vld [vmem:[#allocation8 + $0xb0] sm:$0xff]
        %v576 = vld [vmem:[#allocation8 + $0xb8] sm:$0xff]
        %v577 = vld [vmem:[#allocation8 + $0xc0] sm:$0xff]
        %v578 = vld [vmem:[#allocation8 + $0xc8] sm:$0xff]
        %v579 = vld [vmem:[#allocation8 + $0xd0] sm:$0xff]
        %v580 = vld [vmem:[#allocation8 + $0xd8] sm:$0xff]
        %v581 = vld [vmem:[#allocation8 + $0xe0] sm:$0xff]
        %v582 = vld [vmem:[#allocation8 + $0xe8] sm:$0xff]
        %v583 = vld [vmem:[#allocation8 + $0xf0] sm:$0xff]
        %v584 = vld [vmem:[#allocation8 + $0xf8] sm:$0xff]
        %v585 = vld [vmem:[#allocation8 + $0x100] sm:$0xff]
        %v586 = vld [vmem:[#allocation8 + $0x108] sm:$0xff]
        %v587 = vld [vmem:[#allocation8 + $0x110] sm:$0xff]
        %v588 = vld [vmem:[#allocation8 + $0x118] sm:$0xff]
        %v589 = vld [vmem:[#allocation8 + $0x120] sm:$0xff]
        %v590 = vld [vmem:[#allocation8 + $0x128] sm:$0xff]
        %v591 = vld [vmem:[#allocation8 + $0x130] sm:$0xff]
        %v592 = vld [vmem:[#allocation8 + $0x138] sm:$0xff]
        %v593 = vld [vmem:[#allocation8 + $0x140] sm:$0xff]
        %v594 = vld [vmem:[#allocation8 + $0x148] sm:$0xff]
        %v595 = vld [vmem:[#allocation8 + $0x150] sm:$0xff]
        %v596 = vld [vmem:[#allocation8 + $0x158] sm:$0xff]
        %v597 = vld [vmem:[#allocation8 + $0x160] sm:$0xff]
        %v598 = vld [vmem:[#allocation8 + $0x168] sm:$0xff]
        %v599 = vld [vmem:[#allocation8 + $0x170] sm:$0xff]
        %v600 = vld [vmem:[#allocation8 + $0x178] sm:$0xff]
        %v601 = vld [vmem:[#allocation8 + $0x180] sm:$0xff]
        %v602 = vld [vmem:[#allocation8 + $0x188] sm:$0xff]
        %v603 = vld [vmem:[#allocation8 + $0x190] sm:$0xff]
        %v604 = vld [vmem:[#allocation8 + $0x198] sm:$0xff]
        %v605 = vld [vmem:[#allocation8 + $0x1a0] sm:$0xff]
        %v606 = vld [vmem:[#allocation8 + $0x1a8] sm:$0xff]
        %v607 = vld [vmem:[#allocation8 + $0x1b0] sm:$0xff]
        %v608 = vld [vmem:[#allocation8 + $0x1b8] sm:$0xff]
        %v609 = vld [vmem:[#allocation8 + $0x1c0] sm:$0xff]
        %v610 = vld [vmem:[#allocation8 + $0x1c8] sm:$0xff]
        %v611 = vld [vmem:[#allocation8 + $0x1d0] sm:$0xff]
        %v612 = vld [vmem:[#allocation8 + $0x1d8] sm:$0xff]
        %v613 = vld [vmem:[#allocation8 + $0x1e0] sm:$0xff]
        %v614 = vld [vmem:[#allocation8 + $0x1e8] sm:$0xff]
        %v615 = vld [vmem:[#allocation8 + $0x1f0] sm:$0xff]
        %v616 = vld [vmem:[#allocation8 + $0x1f8] sm:$0xff]
        %v617 = vld [vmem:[#allocation8 + $0x200] sm:$0xff]
        %v618 = vld [vmem:[#allocation8 + $0x208] sm:$0xff]
        %v619 = vld [vmem:[#allocation8 + $0x210] sm:$0xff]
        %v620 = vld [vmem:[#allocation8 + $0x218] sm:$0xff]
        %v621 = vld [vmem:[#allocation8 + $0x220] sm:$0xff]
        %v622 = vld [vmem:[#allocation8 + $0x228] sm:$0xff]
        %v623 = vld [vmem:[#allocation8 + $0x230] sm:$0xff]
        %v624 = vld [vmem:[#allocation8 + $0x238] sm:$0xff]
        %v625 = vld [vmem:[#allocation8 + $0x240] sm:$0xff]
        %v626 = vld [vmem:[#allocation8 + $0x248] sm:$0xff]
        %v627 = vld [vmem:[#allocation8 + $0x250] sm:$0xff]
        %v628 = vld [vmem:[#allocation8 + $0x258] sm:$0xff]
        %v629 = vld [vmem:[#allocation8 + $0x260] sm:$0xff]
        %v630 = vld [vmem:[#allocation8 + $0x268] sm:$0xff]
        %v631 = vld [vmem:[#allocation8 + $0x270] sm:$0xff]
        %v632 = vld [vmem:[#allocation8 + $0x278] sm:$0xff]
        %v633 = vld [vmem:[#allocation8 + $0x280] sm:$0xff]
        %v634 = vld [vmem:[#allocation8 + $0x288] sm:$0xff]
        %v635 = vld [vmem:[#allocation8 + $0x290] sm:$0xff]
        %v636 = vld [vmem:[#allocation8 + $0x298] sm:$0xff]
        %v637 = vld [vmem:[#allocation8 + $0x2a0] sm:$0xff]
        %v638 = vld [vmem:[#allocation8 + $0x2a8] sm:$0xff]
        %v639 = vld [vmem:[#allocation8 + $0x2b0] sm:$0xff]
        %v640 = vld [vmem:[#allocation8 + $0x2b8] sm:$0xff]
        %v641 = vld [vmem:[#allocation8 + $0x2c0] sm:$0xff]
        %v642 = vld [vmem:[#allocation8 + $0x2c8] sm:$0xff]
        %v643 = vld [vmem:[#allocation8 + $0x2d0] sm:$0xff]
        %v644 = vld [vmem:[#allocation8 + $0x2d8] sm:$0xff]
        %v645 = vld [vmem:[#allocation8 + $0x2e0] sm:$0xff]
        %v646 = vld [vmem:[#allocation8 + $0x2e8] sm:$0xff]
        %v647 = vld [vmem:[#allocation8 + $0x2f0] sm:$0xff]
        %v648 = vld [vmem:[#allocation8 + $0x2f8] sm:$0xff]
        %v649 = vld [vmem:[#allocation8 + $0x300] sm:$0xff]
        %v650 = vld [vmem:[#allocation8 + $0x308] sm:$0xff]
        %v651 = vld [vmem:[#allocation8 + $0x310] sm:$0xff]
        %v652 = vld [vmem:[#allocation8 + $0x318] sm:$0xff]
        %v653 = vld [vmem:[#allocation8 + $0x320] sm:$0xff]
        %v654 = vld [vmem:[#allocation8 + $0x328] sm:$0xff]
        %v655 = vld [vmem:[#allocation8 + $0x330] sm:$0xff]
        %v656 = vld [vmem:[#allocation8 + $0x338] sm:$0xff]
        %v657 = vld [vmem:[#allocation8 + $0x340] sm:$0xff]
        %v658 = vld [vmem:[#allocation8 + $0x348] sm:$0xff]
        %v659 = vld [vmem:[#allocation8 + $0x350] sm:$0xff]
        %v660 = vld [vmem:[#allocation8 + $0x358] sm:$0xff]
        %v661 = vld [vmem:[#allocation8 + $0x360] sm:$0xff]
        %v662 = vld [vmem:[#allocation8 + $0x368] sm:$0xff]
        %v663 = vld [vmem:[#allocation8 + $0x370] sm:$0xff]
        %v664 = vld [vmem:[#allocation8 + $0x378] sm:$0xff]
        %v665 = vld [vmem:[#allocation8 + $0x380] sm:$0xff]
        %v666 = vld [vmem:[#allocation8 + $0x388] sm:$0xff]
        %v667 = vld [vmem:[#allocation8 + $0x390] sm:$0xff]
        %v668 = vld [vmem:[#allocation8 + $0x398] sm:$0xff]
        %v669 = vld [vmem:[#allocation8 + $0x3a0] sm:$0xff]
        %v670 = vld [vmem:[#allocation8 + $0x3a8] sm:$0xff]
        %v671 = vld [vmem:[#allocation8 + $0x3b0] sm:$0xff]
        %v672 = vld [vmem:[#allocation8 + $0x3b8] sm:$0xff]
        %v673 = vld [vmem:[#allocation8 + $0x3c0] sm:$0xff]
        %v674 = vld [vmem:[#allocation8 + $0x3c8] sm:$0xff]
        %v675 = vld [vmem:[#allocation8 + $0x3d0] sm:$0xff]
        %v676 = vld [vmem:[#allocation8 + $0x3d8] sm:$0xff]
        %v677 = vld [vmem:[#allocation8 + $0x3e0] sm:$0xff]
        %v678 = vld [vmem:[#allocation8 + $0x3e8] sm:$0xff]
        %v679 = vld [vmem:[#allocation8 + $0x3f0] sm:$0xff]
        %v680 = vld [vmem:[#allocation8 + $0x3f8] sm:$0xff]
        %v681 = vld [vmem:[#allocation8 + $0x400] sm:$0xff]
        %v682 = vld [vmem:[#allocation8 + $0x408] sm:$0xff]
        %v683 = vld [vmem:[#allocation8 + $0x410] sm:$0xff]
        %v684 = vld [vmem:[#allocation8 + $0x418] sm:$0xff]
        %v685 = vld [vmem:[#allocation8 + $0x420] sm:$0xff]
        %v686 = vld [vmem:[#allocation8 + $0x428] sm:$0xff]
        %v687 = vld [vmem:[#allocation8 + $0x430] sm:$0xff]
        %v688 = vld [vmem:[#allocation8 + $0x438] sm:$0xff]
        %v689 = vld [vmem:[#allocation8 + $0x440] sm:$0xff]
        %v690 = vld [vmem:[#allocation8 + $0x448] sm:$0xff]
        %v691 = vld [vmem:[#allocation8 + $0x450] sm:$0xff]
        %v692 = vld [vmem:[#allocation8 + $0x458] sm:$0xff]
        %v693 = vld [vmem:[#allocation8 + $0x460] sm:$0xff]
        %v694 = vld [vmem:[#allocation8 + $0x468] sm:$0xff]
        %v695 = vld [vmem:[#allocation8 + $0x470] sm:$0xff]
        %v696 = vld [vmem:[#allocation8 + $0x478] sm:$0xff]
        %v697 = vld [vmem:[#allocation8 + $0x480] sm:$0xff]
        %v698 = vld [vmem:[#allocation8 + $0x488] sm:$0xff]
        %v699 = vld [vmem:[#allocation8 + $0x490] sm:$0xff]
        %v700 = vld [vmem:[#allocation8 + $0x498] sm:$0xff]
        %v701 = vld [vmem:[#allocation8 + $0x4a0] sm:$0xff]
        %v702 = vld [vmem:[#allocation8 + $0x4a8] sm:$0xff]
        %v703 = vld [vmem:[#allocation8 + $0x4b0] sm:$0xff]
        %v704 = vld [vmem:[#allocation8 + $0x4b8] sm:$0xff]
        %v705 = vld [vmem:[#allocation8 + $0x4c0] sm:$0xff]
        %v706 = vld [vmem:[#allocation8 + $0x4c8] sm:$0xff]
        %v707 = vld [vmem:[#allocation8 + $0x4d0] sm:$0xff]
        %v708 = vld [vmem:[#allocation8 + $0x4d8] sm:$0xff]
        %v709 = vld [vmem:[#allocation8 + $0x4e0] sm:$0xff]
        %v710 = vld [vmem:[#allocation8 + $0x4e8] sm:$0xff]
        %v711 = vld [vmem:[#allocation8 + $0x4f0] sm:$0xff]
        %v712 = vld [vmem:[#allocation8 + $0x4f8] sm:$0xff]
        %v873 = vunpack.c.l.b16 %v553
        %v874 = vunpack.c.h.b16 %v553
        %v875 = vunpack.c.l.b16 %v554
        %v876 = vunpack.c.h.b16 %v554
        %v877 = vunpack.c.l.b16 %v555
        %v878 = vunpack.c.h.b16 %v555
        %v879 = vunpack.c.l.b16 %v556
        %v880 = vunpack.c.h.b16 %v556
        %v881 = vunpack.c.l.b16 %v557
        %v882 = vunpack.c.h.b16 %v557
        %v883 = vunpack.c.l.b16 %v558
        %v884 = vunpack.c.h.b16 %v558
        %v885 = vunpack.c.l.b16 %v559
        %v886 = vunpack.c.h.b16 %v559
        %v887 = vunpack.c.l.b16 %v560
        %v888 = vunpack.c.h.b16 %v560
        %v889 = vunpack.c.l.b16 %v561
        %v890 = vunpack.c.h.b16 %v561
        %v891 = vunpack.c.l.b16 %v562
        %v892 = vunpack.c.h.b16 %v562
        %v893 = vunpack.c.l.b16 %v563
        %v894 = vunpack.c.h.b16 %v563
        %v895 = vunpack.c.l.b16 %v564
        %v896 = vunpack.c.h.b16 %v564
        %v897 = vunpack.c.l.b16 %v565
        %v898 = vunpack.c.h.b16 %v565
        %v899 = vunpack.c.l.b16 %v566
        %v900 = vunpack.c.h.b16 %v566
        %v901 = vunpack.c.l.b16 %v567
        %v902 = vunpack.c.h.b16 %v567
        %v903 = vunpack.c.l.b16 %v568
        %v904 = vunpack.c.h.b16 %v568
        %v905 = vunpack.c.l.b16 %v569
        %v906 = vunpack.c.h.b16 %v569
        %v907 = vunpack.c.l.b16 %v570
        %v908 = vunpack.c.h.b16 %v570
        %v909 = vunpack.c.l.b16 %v571
        %v910 = vunpack.c.h.b16 %v571
        %v911 = vunpack.c.l.b16 %v572
        %v912 = vunpack.c.h.b16 %v572
        %v913 = vunpack.c.l.b16 %v573
        %v914 = vunpack.c.h.b16 %v573
        %v915 = vunpack.c.l.b16 %v574
        %v916 = vunpack.c.h.b16 %v574
        %v917 = vunpack.c.l.b16 %v575
        %v918 = vunpack.c.h.b16 %v575
        %v919 = vunpack.c.l.b16 %v576
        %v920 = vunpack.c.h.b16 %v576
        %v921 = vunpack.c.l.b16 %v577
        %v922 = vunpack.c.h.b16 %v577
        %v923 = vunpack.c.l.b16 %v578
        %v924 = vunpack.c.h.b16 %v578
        %v925 = vunpack.c.l.b16 %v579
        %v926 = vunpack.c.h.b16 %v579
        %v927 = vunpack.c.l.b16 %v580
        %v928 = vunpack.c.h.b16 %v580
        %v929 = vunpack.c.l.b16 %v581
        %v930 = vunpack.c.h.b16 %v581
        %v931 = vunpack.c.l.b16 %v582
        %v932 = vunpack.c.h.b16 %v582
        %v933 = vunpack.c.l.b16 %v583
        %v934 = vunpack.c.h.b16 %v583
        %v935 = vunpack.c.l.b16 %v584
        %v936 = vunpack.c.h.b16 %v584
        %v937 = vunpack.c.l.b16 %v585
        %v938 = vunpack.c.h.b16 %v585
        %v939 = vunpack.c.l.b16 %v586
        %v940 = vunpack.c.h.b16 %v586
        %v941 = vunpack.c.l.b16 %v587
        %v942 = vunpack.c.h.b16 %v587
        %v943 = vunpack.c.l.b16 %v588
        %v944 = vunpack.c.h.b16 %v588
        %v945 = vunpack.c.l.b16 %v589
        %v946 = vunpack.c.h.b16 %v589
        %v947 = vunpack.c.l.b16 %v590
        %v948 = vunpack.c.h.b16 %v590
        %v949 = vunpack.c.l.b16 %v591
        %v950 = vunpack.c.h.b16 %v591
        %v951 = vunpack.c.l.b16 %v592
        %v952 = vunpack.c.h.b16 %v592
        %v953 = vunpack.c.l.b16 %v593
        %v954 = vunpack.c.h.b16 %v593
        %v955 = vunpack.c.l.b16 %v594
        %v956 = vunpack.c.h.b16 %v594
        %v957 = vunpack.c.l.b16 %v595
        %v958 = vunpack.c.h.b16 %v595
        %v959 = vunpack.c.l.b16 %v596
        %v960 = vunpack.c.h.b16 %v596
        %v961 = vunpack.c.l.b16 %v597
        %v962 = vunpack.c.h.b16 %v597
        %v963 = vunpack.c.l.b16 %v598
        %v964 = vunpack.c.h.b16 %v598
        %v965 = vunpack.c.l.b16 %v599
        %v966 = vunpack.c.h.b16 %v599
        %v967 = vunpack.c.l.b16 %v600
        %v968 = vunpack.c.h.b16 %v600
        %v969 = vunpack.c.l.b16 %v601
        %v970 = vunpack.c.h.b16 %v601
        %v971 = vunpack.c.l.b16 %v602
        %v972 = vunpack.c.h.b16 %v602
        %v973 = vunpack.c.l.b16 %v603
        %v974 = vunpack.c.h.b16 %v603
        %v975 = vunpack.c.l.b16 %v604
        %v976 = vunpack.c.h.b16 %v604
        %v977 = vunpack.c.l.b16 %v605
        %v978 = vunpack.c.h.b16 %v605
        %v979 = vunpack.c.l.b16 %v606
        %v980 = vunpack.c.h.b16 %v606
        %v981 = vunpack.c.l.b16 %v607
        %v982 = vunpack.c.h.b16 %v607
        %v983 = vunpack.c.l.b16 %v608
        %v984 = vunpack.c.h.b16 %v608
        %v985 = vunpack.c.l.b16 %v609
        %v986 = vunpack.c.h.b16 %v609
        %v987 = vunpack.c.l.b16 %v610
        %v988 = vunpack.c.h.b16 %v610
        %v989 = vunpack.c.l.b16 %v611
        %v990 = vunpack.c.h.b16 %v611
        %v991 = vunpack.c.l.b16 %v612
        %v992 = vunpack.c.h.b16 %v612
        %v993 = vunpack.c.l.b16 %v613
        %v994 = vunpack.c.h.b16 %v613
        %v995 = vunpack.c.l.b16 %v614
        %v996 = vunpack.c.h.b16 %v614
        %v997 = vunpack.c.l.b16 %v615
        %v998 = vunpack.c.h.b16 %v615
        %v999 = vunpack.c.l.b16 %v616
        %v1000 = vunpack.c.h.b16 %v616
        %v1001 = vunpack.c.l.b16 %v617
        %v1002 = vunpack.c.h.b16 %v617
        %v1003 = vunpack.c.l.b16 %v618
        %v1004 = vunpack.c.h.b16 %v618
        %v1005 = vunpack.c.l.b16 %v619
        %v1006 = vunpack.c.h.b16 %v619
        %v1007 = vunpack.c.l.b16 %v620
        %v1008 = vunpack.c.h.b16 %v620
        %v1009 = vunpack.c.l.b16 %v621
        %v1010 = vunpack.c.h.b16 %v621
        %v1011 = vunpack.c.l.b16 %v622
        %v1012 = vunpack.c.h.b16 %v622
        %v1013 = vunpack.c.l.b16 %v623
        %v1014 = vunpack.c.h.b16 %v623
        %v1015 = vunpack.c.l.b16 %v624
        %v1016 = vunpack.c.h.b16 %v624
        %v1017 = vunpack.c.l.b16 %v625
        %v1018 = vunpack.c.h.b16 %v625
        %v1019 = vunpack.c.l.b16 %v626
        %v1020 = vunpack.c.h.b16 %v626
        %v1021 = vunpack.c.l.b16 %v627
        %v1022 = vunpack.c.h.b16 %v627
        %v1023 = vunpack.c.l.b16 %v628
        %v1024 = vunpack.c.h.b16 %v628
        %v1025 = vunpack.c.l.b16 %v629
        %v1026 = vunpack.c.h.b16 %v629
        %v1027 = vunpack.c.l.b16 %v630
        %v1028 = vunpack.c.h.b16 %v630
        %v1029 = vunpack.c.l.b16 %v631
        %v1030 = vunpack.c.h.b16 %v631
        %v1031 = vunpack.c.l.b16 %v632
        %v1032 = vunpack.c.h.b16 %v632
        %v1033 = vunpack.c.l.b16 %v633
        %v1034 = vunpack.c.h.b16 %v633
        %v1035 = vunpack.c.l.b16 %v634
        %v1036 = vunpack.c.h.b16 %v634
        %v1037 = vunpack.c.l.b16 %v635
        %v1038 = vunpack.c.h.b16 %v635
        %v1039 = vunpack.c.l.b16 %v636
        %v1040 = vunpack.c.h.b16 %v636
        %v1041 = vunpack.c.l.b16 %v637
        %v1042 = vunpack.c.h.b16 %v637
        %v1043 = vunpack.c.l.b16 %v638
        %v1044 = vunpack.c.h.b16 %v638
        %v1045 = vunpack.c.l.b16 %v639
        %v1046 = vunpack.c.h.b16 %v639
        %v1047 = vunpack.c.l.b16 %v640
        %v1048 = vunpack.c.h.b16 %v640
        %v1049 = vunpack.c.l.b16 %v641
        %v1050 = vunpack.c.h.b16 %v641
        %v1051 = vunpack.c.l.b16 %v642
        %v1052 = vunpack.c.h.b16 %v642
        %v1053 = vunpack.c.l.b16 %v643
        %v1054 = vunpack.c.h.b16 %v643
        %v1055 = vunpack.c.l.b16 %v644
        %v1056 = vunpack.c.h.b16 %v644
        %v1057 = vunpack.c.l.b16 %v645
        %v1058 = vunpack.c.h.b16 %v645
        %v1059 = vunpack.c.l.b16 %v646
        %v1060 = vunpack.c.h.b16 %v646
        %v1061 = vunpack.c.l.b16 %v647
        %v1062 = vunpack.c.h.b16 %v647
        %v1063 = vunpack.c.l.b16 %v648
        %v1064 = vunpack.c.h.b16 %v648
        %v1065 = vunpack.c.l.b16 %v649
        %v1066 = vunpack.c.h.b16 %v649
        %v1067 = vunpack.c.l.b16 %v650
        %v1068 = vunpack.c.h.b16 %v650
        %v1069 = vunpack.c.l.b16 %v651
        %v1070 = vunpack.c.h.b16 %v651
        %v1071 = vunpack.c.l.b16 %v652
        %v1072 = vunpack.c.h.b16 %v652
        %v1073 = vunpack.c.l.b16 %v653
        %v1074 = vunpack.c.h.b16 %v653
        %v1075 = vunpack.c.l.b16 %v654
        %v1076 = vunpack.c.h.b16 %v654
        %v1077 = vunpack.c.l.b16 %v655
        %v1078 = vunpack.c.h.b16 %v655
        %v1079 = vunpack.c.l.b16 %v656
        %v1080 = vunpack.c.h.b16 %v656
        %v1081 = vunpack.c.l.b16 %v657
        %v1082 = vunpack.c.h.b16 %v657
        %v1083 = vunpack.c.l.b16 %v658
        %v1084 = vunpack.c.h.b16 %v658
        %v1085 = vunpack.c.l.b16 %v659
        %v1086 = vunpack.c.h.b16 %v659
        %v1087 = vunpack.c.l.b16 %v660
        %v1088 = vunpack.c.h.b16 %v660
        %v1089 = vunpack.c.l.b16 %v661
        %v1090 = vunpack.c.h.b16 %v661
        %v1091 = vunpack.c.l.b16 %v662
        %v1092 = vunpack.c.h.b16 %v662
        %v1093 = vunpack.c.l.b16 %v663
        %v1094 = vunpack.c.h.b16 %v663
        %v1095 = vunpack.c.l.b16 %v664
        %v1096 = vunpack.c.h.b16 %v664
        %v1097 = vunpack.c.l.b16 %v665
        %v1098 = vunpack.c.h.b16 %v665
        %v1099 = vunpack.c.l.b16 %v666
        %v1100 = vunpack.c.h.b16 %v666
        %v1101 = vunpack.c.l.b16 %v667
        %v1102 = vunpack.c.h.b16 %v667
        %v1103 = vunpack.c.l.b16 %v668
        %v1104 = vunpack.c.h.b16 %v668
        %v1105 = vunpack.c.l.b16 %v669
        %v1106 = vunpack.c.h.b16 %v669
        %v1107 = vunpack.c.l.b16 %v670
        %v1108 = vunpack.c.h.b16 %v670
        %v1109 = vunpack.c.l.b16 %v671
        %v1110 = vunpack.c.h.b16 %v671
        %v1111 = vunpack.c.l.b16 %v672
        %v1112 = vunpack.c.h.b16 %v672
        %v1113 = vunpack.c.l.b16 %v673
        %v1114 = vunpack.c.h.b16 %v673
        %v1115 = vunpack.c.l.b16 %v674
        %v1116 = vunpack.c.h.b16 %v674
        %v1117 = vunpack.c.l.b16 %v675
        %v1118 = vunpack.c.h.b16 %v675
        %v1119 = vunpack.c.l.b16 %v676
        %v1120 = vunpack.c.h.b16 %v676
        %v1121 = vunpack.c.l.b16 %v677
        %v1122 = vunpack.c.h.b16 %v677
        %v1123 = vunpack.c.l.b16 %v678
        %v1124 = vunpack.c.h.b16 %v678
        %v1125 = vunpack.c.l.b16 %v679
        %v1126 = vunpack.c.h.b16 %v679
        %v1127 = vunpack.c.l.b16 %v680
        %v1128 = vunpack.c.h.b16 %v680
        %v1129 = vunpack.c.l.b16 %v681
        %v1130 = vunpack.c.h.b16 %v681
        %v1131 = vunpack.c.l.b16 %v682
        %v1132 = vunpack.c.h.b16 %v682
        %v1133 = vunpack.c.l.b16 %v683
        %v1134 = vunpack.c.h.b16 %v683
        %v1135 = vunpack.c.l.b16 %v684
        %v1136 = vunpack.c.h.b16 %v684
        %v1137 = vunpack.c.l.b16 %v685
        %v1138 = vunpack.c.h.b16 %v685
        %v1139 = vunpack.c.l.b16 %v686
        %v1140 = vunpack.c.h.b16 %v686
        %v1141 = vunpack.c.l.b16 %v687
        %v1142 = vunpack.c.h.b16 %v687
        %v1143 = vunpack.c.l.b16 %v688
        %v1144 = vunpack.c.h.b16 %v688
        %v1145 = vunpack.c.l.b16 %v689
        %v1146 = vunpack.c.h.b16 %v689
        %v1147 = vunpack.c.l.b16 %v690
        %v1148 = vunpack.c.h.b16 %v690
        %v1149 = vunpack.c.l.b16 %v691
        %v1150 = vunpack.c.h.b16 %v691
        %v1151 = vunpack.c.l.b16 %v692
        %v1152 = vunpack.c.h.b16 %v692
        %v1153 = vunpack.c.l.b16 %v693
        %v1154 = vunpack.c.h.b16 %v693
        %v1155 = vunpack.c.l.b16 %v694
        %v1156 = vunpack.c.h.b16 %v694
        %v1157 = vunpack.c.l.b16 %v695
        %v1158 = vunpack.c.h.b16 %v695
        %v1159 = vunpack.c.l.b16 %v696
        %v1160 = vunpack.c.h.b16 %v696
        %v1161 = vunpack.c.l.b16 %v697
        %v1162 = vunpack.c.h.b16 %v697
        %v1163 = vunpack.c.l.b16 %v698
        %v1164 = vunpack.c.h.b16 %v698
        %v1165 = vunpack.c.l.b16 %v699
        %v1166 = vunpack.c.h.b16 %v699
        %v1167 = vunpack.c.l.b16 %v700
        %v1168 = vunpack.c.h.b16 %v700
        %v1169 = vunpack.c.l.b16 %v701
        %v1170 = vunpack.c.h.b16 %v701
        %v1171 = vunpack.c.l.b16 %v702
        %v1172 = vunpack.c.h.b16 %v702
        %v1173 = vunpack.c.l.b16 %v703
        %v1174 = vunpack.c.h.b16 %v703
        %v1175 = vunpack.c.l.b16 %v704
        %v1176 = vunpack.c.h.b16 %v704
        %v1177 = vunpack.c.l.b16 %v705
        %v1178 = vunpack.c.h.b16 %v705
        %v1179 = vunpack.c.l.b16 %v706
        %v1180 = vunpack.c.h.b16 %v706
        %v1181 = vunpack.c.l.b16 %v707
        %v1182 = vunpack.c.h.b16 %v707
        %v1183 = vunpack.c.l.b16 %v708
        %v1184 = vunpack.c.h.b16 %v708
        %v1185 = vunpack.c.l.b16 %v709
        %v1186 = vunpack.c.h.b16 %v709
        %v1187 = vunpack.c.l.b16 %v710
        %v1188 = vunpack.c.h.b16 %v710
        %v1189 = vunpack.c.l.b16 %v711
        %v1190 = vunpack.c.h.b16 %v711
        %v1191 = vunpack.c.l.b16 %v712
        %v1192 = vunpack.c.h.b16 %v712
        %v1193 = vpack.c.b16 %v883, %v873
        %v1194 = vpack.c.b16 %v884, %v874
        %v1195 = vpack.c.b16 %v885, %v875
        %v1196 = vpack.c.b16 %v886, %v876
        %v1197 = vpack.c.b16 %v887, %v877
        %v1198 = vpack.c.b16 %v888, %v878
        %v1199 = vpack.c.b16 %v889, %v879
        %v1200 = vpack.c.b16 %v890, %v880
        %v1201 = vpack.c.b16 %v891, %v881
        %v1202 = vpack.c.b16 %v892, %v882
        %v1203 = vpack.c.b16 %v903, %v893
        %v1204 = vpack.c.b16 %v904, %v894
        %v1205 = vpack.c.b16 %v905, %v895
        %v1206 = vpack.c.b16 %v906, %v896
        %v1207 = vpack.c.b16 %v907, %v897
        %v1208 = vpack.c.b16 %v908, %v898
        %v1209 = vpack.c.b16 %v909, %v899
        %v1210 = vpack.c.b16 %v910, %v900
        %v1211 = vpack.c.b16 %v911, %v901
        %v1212 = vpack.c.b16 %v912, %v902
        %v1213 = vpack.c.b16 %v923, %v913
        %v1214 = vpack.c.b16 %v924, %v914
        %v1215 = vpack.c.b16 %v925, %v915
        %v1216 = vpack.c.b16 %v926, %v916
        %v1217 = vpack.c.b16 %v927, %v917
        %v1218 = vpack.c.b16 %v928, %v918
        %v1219 = vpack.c.b16 %v929, %v919
        %v1220 = vpack.c.b16 %v930, %v920
        %v1221 = vpack.c.b16 %v931, %v921
        %v1222 = vpack.c.b16 %v932, %v922
        %v1223 = vpack.c.b16 %v943, %v933
        %v1224 = vpack.c.b16 %v944, %v934
        %v1225 = vpack.c.b16 %v945, %v935
        %v1226 = vpack.c.b16 %v946, %v936
        %v1227 = vpack.c.b16 %v947, %v937
        %v1228 = vpack.c.b16 %v948, %v938
        %v1229 = vpack.c.b16 %v949, %v939
        %v1230 = vpack.c.b16 %v950, %v940
        %v1231 = vpack.c.b16 %v951, %v941
        %v1232 = vpack.c.b16 %v952, %v942
        %v1233 = vpack.c.b16 %v963, %v953
        %v1234 = vpack.c.b16 %v964, %v954
        %v1235 = vpack.c.b16 %v965, %v955
        %v1236 = vpack.c.b16 %v966, %v956
        %v1237 = vpack.c.b16 %v967, %v957
        %v1238 = vpack.c.b16 %v968, %v958
        %v1239 = vpack.c.b16 %v969, %v959
        %v1240 = vpack.c.b16 %v970, %v960
        %v1241 = vpack.c.b16 %v971, %v961
        %v1242 = vpack.c.b16 %v972, %v962
        %v1243 = vpack.c.b16 %v983, %v973
        %v1244 = vpack.c.b16 %v984, %v974
        %v1245 = vpack.c.b16 %v985, %v975
        %v1246 = vpack.c.b16 %v986, %v976
        %v1247 = vpack.c.b16 %v987, %v977
        %v1248 = vpack.c.b16 %v988, %v978
        %v1249 = vpack.c.b16 %v989, %v979
        %v1250 = vpack.c.b16 %v990, %v980
        %v1251 = vpack.c.b16 %v991, %v981
        %v1252 = vpack.c.b16 %v992, %v982
        %v1253 = vpack.c.b16 %v1003, %v993
        %v1254 = vpack.c.b16 %v1004, %v994
        %v1255 = vpack.c.b16 %v1005, %v995
        %v1256 = vpack.c.b16 %v1006, %v996
        %v1257 = vpack.c.b16 %v1007, %v997
        %v1258 = vpack.c.b16 %v1008, %v998
        %v1259 = vpack.c.b16 %v1009, %v999
        %v1260 = vpack.c.b16 %v1010, %v1000
        %v1261 = vpack.c.b16 %v1011, %v1001
        %v1262 = vpack.c.b16 %v1012, %v1002
        %v1263 = vpack.c.b16 %v1023, %v1013
        %v1264 = vpack.c.b16 %v1024, %v1014
        %v1265 = vpack.c.b16 %v1025, %v1015
        %v1266 = vpack.c.b16 %v1026, %v1016
        %v1267 = vpack.c.b16 %v1027, %v1017
        %v1268 = vpack.c.b16 %v1028, %v1018
        %v1269 = vpack.c.b16 %v1029, %v1019
        %v1270 = vpack.c.b16 %v1030, %v1020
        %v1271 = vpack.c.b16 %v1031, %v1021
        %v1272 = vpack.c.b16 %v1032, %v1022
        %v1273 = vpack.c.b16 %v1043, %v1033
        %v1274 = vpack.c.b16 %v1044, %v1034
        %v1275 = vpack.c.b16 %v1045, %v1035
        %v1276 = vpack.c.b16 %v1046, %v1036
        %v1277 = vpack.c.b16 %v1047, %v1037
        %v1278 = vpack.c.b16 %v1048, %v1038
        %v1279 = vpack.c.b16 %v1049, %v1039
        %v1280 = vpack.c.b16 %v1050, %v1040
        %v1281 = vpack.c.b16 %v1051, %v1041
        %v1282 = vpack.c.b16 %v1052, %v1042
        %v1283 = vpack.c.b16 %v1063, %v1053
        %v1284 = vpack.c.b16 %v1064, %v1054
        %v1285 = vpack.c.b16 %v1065, %v1055
        %v1286 = vpack.c.b16 %v1066, %v1056
        %v1287 = vpack.c.b16 %v1067, %v1057
        %v1288 = vpack.c.b16 %v1068, %v1058
        %v1289 = vpack.c.b16 %v1069, %v1059
        %v1290 = vpack.c.b16 %v1070, %v1060
        %v1291 = vpack.c.b16 %v1071, %v1061
        %v1292 = vpack.c.b16 %v1072, %v1062
        %v1293 = vpack.c.b16 %v1083, %v1073
        %v1294 = vpack.c.b16 %v1084, %v1074
        %v1295 = vpack.c.b16 %v1085, %v1075
        %v1296 = vpack.c.b16 %v1086, %v1076
        %v1297 = vpack.c.b16 %v1087, %v1077
        %v1298 = vpack.c.b16 %v1088, %v1078
        %v1299 = vpack.c.b16 %v1089, %v1079
        %v1300 = vpack.c.b16 %v1090, %v1080
        %v1301 = vpack.c.b16 %v1091, %v1081
        %v1302 = vpack.c.b16 %v1092, %v1082
        %v1303 = vpack.c.b16 %v1103, %v1093
        %v1304 = vpack.c.b16 %v1104, %v1094
        %v1305 = vpack.c.b16 %v1105, %v1095
        %v1306 = vpack.c.b16 %v1106, %v1096
        %v1307 = vpack.c.b16 %v1107, %v1097
        %v1308 = vpack.c.b16 %v1108, %v1098
        %v1309 = vpack.c.b16 %v1109, %v1099
        %v1310 = vpack.c.b16 %v1110, %v1100
        %v1311 = vpack.c.b16 %v1111, %v1101
        %v1312 = vpack.c.b16 %v1112, %v1102
        %v1313 = vpack.c.b16 %v1123, %v1113
        %v1314 = vpack.c.b16 %v1124, %v1114
        %v1315 = vpack.c.b16 %v1125, %v1115
        %v1316 = vpack.c.b16 %v1126, %v1116
        %v1317 = vpack.c.b16 %v1127, %v1117
        %v1318 = vpack.c.b16 %v1128, %v1118
        %v1319 = vpack.c.b16 %v1129, %v1119
        %v1320 = vpack.c.b16 %v1130, %v1120
        %v1321 = vpack.c.b16 %v1131, %v1121
        %v1322 = vpack.c.b16 %v1132, %v1122
        %v1323 = vpack.c.b16 %v1143, %v1133
        %v1324 = vpack.c.b16 %v1144, %v1134
        %v1325 = vpack.c.b16 %v1145, %v1135
        %v1326 = vpack.c.b16 %v1146, %v1136
        %v1327 = vpack.c.b16 %v1147, %v1137
        %v1328 = vpack.c.b16 %v1148, %v1138
        %v1329 = vpack.c.b16 %v1149, %v1139
        %v1330 = vpack.c.b16 %v1150, %v1140
        %v1331 = vpack.c.b16 %v1151, %v1141
        %v1332 = vpack.c.b16 %v1152, %v1142
        %v1333 = vpack.c.b16 %v1163, %v1153
        %v1334 = vpack.c.b16 %v1164, %v1154
        %v1335 = vpack.c.b16 %v1165, %v1155
        %v1336 = vpack.c.b16 %v1166, %v1156
        %v1337 = vpack.c.b16 %v1167, %v1157
        %v1338 = vpack.c.b16 %v1168, %v1158
        %v1339 = vpack.c.b16 %v1169, %v1159
        %v1340 = vpack.c.b16 %v1170, %v1160
        %v1341 = vpack.c.b16 %v1171, %v1161
        %v1342 = vpack.c.b16 %v1172, %v1162
        %v1343 = vpack.c.b16 %v1183, %v1173
        %v1344 = vpack.c.b16 %v1184, %v1174
        %v1345 = vpack.c.b16 %v1185, %v1175
        %v1346 = vpack.c.b16 %v1186, %v1176
        %v1347 = vpack.c.b16 %v1187, %v1177
        %v1348 = vpack.c.b16 %v1188, %v1178
        %v1349 = vpack.c.b16 %v1189, %v1179
        %v1350 = vpack.c.b16 %v1190, %v1180
        %v1351 = vpack.c.b16 %v1191, %v1181
        %v1352 = vpack.c.b16 %v1192, %v1182
        %1513 = vmatprep.subr.bf16.mxu0 %v1264
        %1514 = vmatpush1.bf16.msra.mxu0 %v1263
        %1515 = vmatprep.subr.bf16.mxu0 %v1254
        %1516 = vmatpush1.bf16.msra.mxu0 %v1253
        %1517 = vmatprep.subr.bf16.mxu0 %v1244
        %1518 = vmatpush1.bf16.msra.mxu0 %v1243
        %1519 = vmatprep.subr.bf16.mxu0 %v1234
        %1520 = vmatpush1.bf16.msra.mxu0 %v1233
        %1521 = vmatprep.subr.bf16.mxu0 %v1224
        %1522 = vmatpush1.bf16.msra.mxu0 %v1223
        %1523 = vmatprep.subr.bf16.mxu0 %v1214
        %1524 = vmatpush1.bf16.msra.mxu0 %v1213
        %1525 = vmatprep.subr.bf16.mxu0 %v1204
        %1526 = vmatpush1.bf16.msra.mxu0 %v1203
        %1527 = vmatprep.subr.bf16.mxu0 %v1194
        %1528 = vmatpush1.bf16.msra.mxu0 %v1193
        %1529 = vmatprep.subr.bf16.mxu0 %v1344
        %1530 = vmatpush2.bf16.msra.mxu0 %v1343
        %1531 = vmatprep.subr.bf16.mxu0 %v1334
        %1532 = vmatpush2.bf16.msra.mxu0 %v1333
        %1533 = vmatprep.subr.bf16.mxu0 %v1324
        %1534 = vmatpush2.bf16.msra.mxu0 %v1323
        %1535 = vmatprep.subr.bf16.mxu0 %v1314
        %1536 = vmatpush2.bf16.msra.mxu0 %v1313
        %1537 = vmatprep.subr.bf16.mxu0 %v1304
        %1538 = vmatpush2.bf16.msra.mxu0 %v1303
        %1539 = vmatprep.subr.bf16.mxu0 %v1294
        %1540 = vmatpush2.bf16.msra.mxu0 %v1293
        %1541 = vmatprep.subr.bf16.mxu0 %v1284
        %1542 = vmatpush2.bf16.msra.mxu0 %v1283
        %1543 = vmatprep.subr.bf16.mxu0 %v1274
        %1544 = vmatpush2.bf16.msra.mxu0 %v1273
        %1545 = vmatprep.mubr.bf16.mxu0 %v552
        %1546 = vmatmul.mubr.bf16.gmra.mxu0 %v551
        %v1547 = vpop.f32.mrf.mxu0
        %v1548 = vadd.f32 0.0, %v1547
        %v1549 = vpop.f32.mrf.mxu0
        %v1550 = vadd.f32 0.0, %v1549
        %v1551 = vpop.f32.mrf.mxu0
        %v1552 = vadd.f32 0.0, %v1551
        %v1553 = vpop.f32.mrf.mxu0
        %v1554 = vadd.f32 0.0, %v1553
        %1555 = vdwg.mxu0
        %1556 = vmatprep.subr.bf16.mxu0 %v1266
        %1557 = vmatpush1.bf16.msra.mxu0 %v1265
        %1558 = vmatprep.subr.bf16.mxu0 %v1256
        %1559 = vmatpush1.bf16.msra.mxu0 %v1255
        %1560 = vmatprep.subr.bf16.mxu0 %v1246
        %1561 = vmatpush1.bf16.msra.mxu0 %v1245
        %1562 = vmatprep.subr.bf16.mxu0 %v1236
        %1563 = vmatpush1.bf16.msra.mxu0 %v1235
        %1564 = vmatprep.subr.bf16.mxu0 %v1226
        %1565 = vmatpush1.bf16.msra.mxu0 %v1225
        %1566 = vmatprep.subr.bf16.mxu0 %v1216
        %1567 = vmatpush1.bf16.msra.mxu0 %v1215
        %1568 = vmatprep.subr.bf16.mxu0 %v1206
        %1569 = vmatpush1.bf16.msra.mxu0 %v1205
        %1570 = vmatprep.subr.bf16.mxu0 %v1196
        %1571 = vmatpush1.bf16.msra.mxu0 %v1195
        %1572 = vmatprep.subr.bf16.mxu0 %v1346
        %1573 = vmatpush2.bf16.msra.mxu0 %v1345
        %1574 = vmatprep.subr.bf16.mxu0 %v1336
        %1575 = vmatpush2.bf16.msra.mxu0 %v1335
        %1576 = vmatprep.subr.bf16.mxu0 %v1326
        %1577 = vmatpush2.bf16.msra.mxu0 %v1325
        %1578 = vmatprep.subr.bf16.mxu0 %v1316
        %1579 = vmatpush2.bf16.msra.mxu0 %v1315
        %1580 = vmatprep.subr.bf16.mxu0 %v1306
        %1581 = vmatpush2.bf16.msra.mxu0 %v1305
        %1582 = vmatprep.subr.bf16.mxu0 %v1296
        %1583 = vmatpush2.bf16.msra.mxu0 %v1295
        %1584 = vmatprep.subr.bf16.mxu0 %v1286
        %1585 = vmatpush2.bf16.msra.mxu0 %v1285
        %1586 = vmatprep.subr.bf16.mxu0 %v1276
        %1587 = vmatpush2.bf16.msra.mxu0 %v1275
        %1588 = vmatprep.mubr.bf16.mxu0 %v552
        %1589 = vmatmul.mubr.bf16.gmra.mxu0 %v551
        %v1590 = vpop.f32.mrf.mxu0
        %v1591 = vadd.f32 0.0, %v1590
        %v1592 = vpop.f32.mrf.mxu0
        %v1593 = vadd.f32 0.0, %v1592
        %v1594 = vpop.f32.mrf.mxu0
        %v1595 = vadd.f32 0.0, %v1594
        %v1596 = vpop.f32.mrf.mxu0
        %v1597 = vadd.f32 0.0, %v1596
        %1598 = vdwg.mxu0
        %1599 = vmatprep.subr.bf16.mxu0 %v1268
        %1600 = vmatpush1.bf16.msra.mxu0 %v1267
        %1601 = vmatprep.subr.bf16.mxu0 %v1258
        %1602 = vmatpush1.bf16.msra.mxu0 %v1257
        %1603 = vmatprep.subr.bf16.mxu0 %v1248
        %1604 = vmatpush1.bf16.msra.mxu0 %v1247
        %1605 = vmatprep.subr.bf16.mxu0 %v1238
        %1606 = vmatpush1.bf16.msra.mxu0 %v1237
        %1607 = vmatprep.subr.bf16.mxu0 %v1228
        %1608 = vmatpush1.bf16.msra.mxu0 %v1227
        %1609 = vmatprep.subr.bf16.mxu0 %v1218
        %1610 = vmatpush1.bf16.msra.mxu0 %v1217
        %1611 = vmatprep.subr.bf16.mxu0 %v1208
        %1612 = vmatpush1.bf16.msra.mxu0 %v1207
        %1613 = vmatprep.subr.bf16.mxu0 %v1198
        %1614 = vmatpush1.bf16.msra.mxu0 %v1197
        %1615 = vmatprep.subr.bf16.mxu0 %v1348
        %1616 = vmatpush2.bf16.msra.mxu0 %v1347
        %1617 = vmatprep.subr.bf16.mxu0 %v1338
        %1618 = vmatpush2.bf16.msra.mxu0 %v1337
        %1619 = vmatprep.subr.bf16.mxu0 %v1328
        %1620 = vmatpush2.bf16.msra.mxu0 %v1327
        %1621 = vmatprep.subr.bf16.mxu0 %v1318
        %1622 = vmatpush2.bf16.msra.mxu0 %v1317
        %1623 = vmatprep.subr.bf16.mxu0 %v1308
        %1624 = vmatpush2.bf16.msra.mxu0 %v1307
        %1625 = vmatprep.subr.bf16.mxu0 %v1298
        %1626 = vmatpush2.bf16.msra.mxu0 %v1297
        %1627 = vmatprep.subr.bf16.mxu0 %v1288
        %1628 = vmatpush2.bf16.msra.mxu0 %v1287
        %1629 = vmatprep.subr.bf16.mxu0 %v1278
        %1630 = vmatpush2.bf16.msra.mxu0 %v1277
        %1631 = vmatprep.mubr.bf16.mxu0 %v552
        %1632 = vmatmul.mubr.bf16.gmra.mxu0 %v551
        %v1633 = vpop.f32.mrf.mxu0
        %v1634 = vadd.f32 0.0, %v1633
        %v1635 = vpop.f32.mrf.mxu0
        %v1636 = vadd.f32 0.0, %v1635
        %v1637 = vpop.f32.mrf.mxu0
        %v1638 = vadd.f32 0.0, %v1637
        %v1639 = vpop.f32.mrf.mxu0
        %v1640 = vadd.f32 0.0, %v1639
        %1641 = vdwg.mxu0
        %1642 = vmatprep.subr.bf16.mxu0 %v1270
        %1643 = vmatpush1.bf16.msra.mxu0 %v1269
        %1644 = vmatprep.subr.bf16.mxu0 %v1260
        %1645 = vmatpush1.bf16.msra.mxu0 %v1259
        %1646 = vmatprep.subr.bf16.mxu0 %v1250
        %1647 = vmatpush1.bf16.msra.mxu0 %v1249
        %1648 = vmatprep.subr.bf16.mxu0 %v1240
        %1649 = vmatpush1.bf16.msra.mxu0 %v1239
        %1650 = vmatprep.subr.bf16.mxu0 %v1230
        %1651 = vmatpush1.bf16.msra.mxu0 %v1229
        %1652 = vmatprep.subr.bf16.mxu0 %v1220
        %1653 = vmatpush1.bf16.msra.mxu0 %v1219
        %1654 = vmatprep.subr.bf16.mxu0 %v1210
        %1655 = vmatpush1.bf16.msra.mxu0 %v1209
        %1656 = vmatprep.subr.bf16.mxu0 %v1200
        %1657 = vmatpush1.bf16.msra.mxu0 %v1199
        %1658 = vmatprep.subr.bf16.mxu0 %v1350
        %1659 = vmatpush2.bf16.msra.mxu0 %v1349
        %1660 = vmatprep.subr.bf16.mxu0 %v1340
        %1661 = vmatpush2.bf16.msra.mxu0 %v1339
        %1662 = vmatprep.subr.bf16.mxu0 %v1330
        %1663 = vmatpush2.bf16.msra.mxu0 %v1329
        %1664 = vmatprep.subr.bf16.mxu0 %v1320
        %1665 = vmatpush2.bf16.msra.mxu0 %v1319
        %1666 = vmatprep.subr.bf16.mxu0 %v1310
        %1667 = vmatpush2.bf16.msra.mxu0 %v1309
        %1668 = vmatprep.subr.bf16.mxu0 %v1300
        %1669 = vmatpush2.bf16.msra.mxu0 %v1299
        %1670 = vmatprep.subr.bf16.mxu0 %v1290
        %1671 = vmatpush2.bf16.msra.mxu0 %v1289
        %1672 = vmatprep.subr.bf16.mxu0 %v1280
        %1673 = vmatpush2.bf16.msra.mxu0 %v1279
        %1674 = vmatprep.mubr.bf16.mxu0 %v552
        %1675 = vmatmul.mubr.bf16.gmra.mxu0 %v551
        %v1676 = vpop.f32.mrf.mxu0
        %v1677 = vadd.f32 0.0, %v1676
        %v1678 = vpop.f32.mrf.mxu0
        %v1679 = vadd.f32 0.0, %v1678
        %v1680 = vpop.f32.mrf.mxu0
        %v1681 = vadd.f32 0.0, %v1680
        %v1682 = vpop.f32.mrf.mxu0
        %v1683 = vadd.f32 0.0, %v1682
        %1684 = vdwg.mxu0
        %1685 = vmatprep.subr.bf16.mxu0 %v1272
        %1686 = vmatpush1.bf16.msra.mxu0 %v1271
        %1687 = vmatprep.subr.bf16.mxu0 %v1262
        %1688 = vmatpush1.bf16.msra.mxu0 %v1261
        %1689 = vmatprep.subr.bf16.mxu0 %v1252
        %1690 = vmatpush1.bf16.msra.mxu0 %v1251
        %1691 = vmatprep.subr.bf16.mxu0 %v1242
        %1692 = vmatpush1.bf16.msra.mxu0 %v1241
        %1693 = vmatprep.subr.bf16.mxu0 %v1232
        %1694 = vmatpush1.bf16.msra.mxu0 %v1231
        %1695 = vmatprep.subr.bf16.mxu0 %v1222
        %1696 = vmatpush1.bf16.msra.mxu0 %v1221
        %1697 = vmatprep.subr.bf16.mxu0 %v1212
        %1698 = vmatpush1.bf16.msra.mxu0 %v1211
        %1699 = vmatprep.subr.bf16.mxu0 %v1202
        %1700 = vmatpush1.bf16.msra.mxu0 %v1201
        %1701 = vmatprep.subr.bf16.mxu0 %v1352
        %1702 = vmatpush2.bf16.msra.mxu0 %v1351
        %1703 = vmatprep.subr.bf16.mxu0 %v1342
        %1704 = vmatpush2.bf16.msra.mxu0 %v1341
        %1705 = vmatprep.subr.bf16.mxu0 %v1332
        %1706 = vmatpush2.bf16.msra.mxu0 %v1331
        %1707 = vmatprep.subr.bf16.mxu0 %v1322
        %1708 = vmatpush2.bf16.msra.mxu0 %v1321
        %1709 = vmatprep.subr.bf16.mxu0 %v1312
        %1710 = vmatpush2.bf16.msra.mxu0 %v1311
        %1711 = vmatprep.subr.bf16.mxu0 %v1302
        %1712 = vmatpush2.bf16.msra.mxu0 %v1301
        %1713 = vmatprep.subr.bf16.mxu0 %v1292
        %1714 = vmatpush2.bf16.msra.mxu0 %v1291
        %1715 = vmatprep.subr.bf16.mxu0 %v1282
        %1716 = vmatpush2.bf16.msra.mxu0 %v1281
        %1717 = vmatprep.mubr.bf16.mxu0 %v552
        %1718 = vmatmul.mubr.bf16.gmra.mxu0 %v551
        %v1719 = vpop.f32.mrf.mxu0
        %v1720 = vadd.f32 0.0, %v1719
        %v1721 = vpop.f32.mrf.mxu0
        %v1722 = vadd.f32 0.0, %v1721
        %v1723 = vpop.f32.mrf.mxu0
        %v1724 = vadd.f32 0.0, %v1723
        %v1725 = vpop.f32.mrf.mxu0
        %v1726 = vadd.f32 0.0, %v1725
        %1727 = vdwg.mxu0
        %v1728 = vld [vmem:[#allocation5] sm:$0xff]
        %v1729 = vld [vmem:[#allocation5 + $0x8] sm:$0xff]
        %v1730 = vld [vmem:[#allocation5 + $0x10] sm:$0xff]
        %v1731 = vld [vmem:[#allocation5 + $0x18] sm:$0xff]
        %v1732 = vld [vmem:[#allocation7] sm:$0xff]
        %v1733 = vld [vmem:[#allocation7 + $0x8] sm:$0xff]
        %v1734 = vld [vmem:[#allocation7 + $0x10] sm:$0xff]
        %v1735 = vld [vmem:[#allocation7 + $0x18] sm:$0xff]
        %v1736 = vmul.f32 %v1548, %v1732
        %v1737 = vmul.f32 %v1550, %v1733
        %v1738 = vmul.f32 %v1552, %v1734
        %v1739 = vmul.f32 %v1554, %v1735
        %v1740 = vmul.f32 %v1591, %v1728
        %v1741 = vmul.f32 %v1593, %v1729
        %v1742 = vmul.f32 %v1595, %v1730
        %v1743 = vmul.f32 %v1597, %v1731
        %v1744 = vadd.f32 %v1736, %v1740
        %v1745 = vadd.f32 %v1737, %v1741
        %v1746 = vadd.f32 %v1738, %v1742
        %v1747 = vadd.f32 %v1739, %v1743
        %v1748 = vmul.f32 %v1634, %v1732
        %v1749 = vmul.f32 %v1636, %v1733
        %v1750 = vmul.f32 %v1638, %v1734
        %v1751 = vmul.f32 %v1640, %v1735
        %v1752 = vmul.f32 %v1677, %v1728
        %v1753 = vmul.f32 %v1679, %v1729
        %v1754 = vmul.f32 %v1681, %v1730
        %v1755 = vmul.f32 %v1683, %v1731
        %v1756 = vadd.f32 %v1748, %v1752
        %v1757 = vadd.f32 %v1749, %v1753
        %v1758 = vadd.f32 %v1750, %v1754
        %v1759 = vadd.f32 %v1751, %v1755
        %v1760 = vpack.c.bf16 %v1746, %v1744
        %v1761 = vpack.c.bf16 %v1747, %v1745
        %v1764 = vpack.i.b16 %v1761, %v1760
        %v1766 = vshrl.u32 %v1760, 16
        %v1767 = vshrl.u32 %v1761, 16
        %v1768 = vpack.i.b16 %v1767, %v1766
        %v1771 = vpack.i.b16 0, 0
        %v1773 = vshrl.u32 0, 16
        %v1774 = vpack.i.b16 %v1773, %v1773
        %v1776 = vcombine.high %v1764, %v1771
        %v1778 = vunpack.c.l.s4 1983009808
        %v1779 = vunpack.c.0.s8 %v1778
        %v1780 = vlaneseq
        %v1781 = vshrl.u32 %v1780, 7
        %v1782 = vsub.s32 %v1779, %v1781
        %v1783 = vrot.slane %v1764, %v1782
        %v1785 = vunpack.c.l.s4 1983009808
        %v1786 = vunpack.c.0.s8 %v1785
        %v1787 = vlaneseq
        %v1788 = vshrl.u32 %v1787, 7
        %v1789 = vsub.s32 %v1786, %v1788
        %v1790 = vrot.slane %v1776, %v1789
        %v1791 = vcombine.high %v1783, 0
        %v1793 = vunpack.c.l.s4 1934713408
        %v1794 = vunpack.c.0.s8 %v1793
        %v1795 = vlaneseq
        %v1796 = vshrl.u32 %v1795, 7
        %v1797 = vsub.s32 %v1794, %v1796
        %v1798 = vrot.slane %v1783, %v1797
        %v1800 = vunpack.c.l.s4 1934713408
        %v1801 = vunpack.c.0.s8 %v1800
        %v1802 = vlaneseq
        %v1803 = vshrl.u32 %v1802, 7
        %v1804 = vsub.s32 %v1801, %v1803
        %v1805 = vrot.slane %v1791, %v1804
        %v1806 = vcombine.high %v1790, 0
        %v1808 = vunpack.c.l.s4 1934713408
        %v1809 = vunpack.c.0.s8 %v1808
        %v1810 = vlaneseq
        %v1811 = vshrl.u32 %v1810, 7
        %v1812 = vsub.s32 %v1809, %v1811
        %v1813 = vrot.slane %v1790, %v1812
        %v1815 = vunpack.c.l.s4 1934713408
        %v1816 = vunpack.c.0.s8 %v1815
        %v1817 = vlaneseq
        %v1818 = vshrl.u32 %v1817, 7
        %v1819 = vsub.s32 %v1816, %v1818
        %v1820 = vrot.slane %v1806, %v1819
        %v1821 = vcombine.high %v1798, 0
        %v1822 = vcombine.high %v1805, 0
        %v1823 = vcombine.high %v1813, 0
        %v1824 = vcombine.high %v1820, 0
        %v1825 = vcombine.high %v1768, %v1774
        %v1827 = vunpack.c.l.s4 1983009808
        %v1828 = vunpack.c.0.s8 %v1827
        %v1829 = vlaneseq
        %v1830 = vshrl.u32 %v1829, 7
        %v1831 = vsub.s32 %v1828, %v1830
        %v1832 = vrot.slane %v1768, %v1831
        %v1834 = vunpack.c.l.s4 1983009808
        %v1835 = vunpack.c.0.s8 %v1834
        %v1836 = vlaneseq
        %v1837 = vshrl.u32 %v1836, 7
        %v1838 = vsub.s32 %v1835, %v1837
        %v1839 = vrot.slane %v1825, %v1838
        %v1840 = vcombine.high %v1832, 0
        %v1842 = vunpack.c.l.s4 1934713408
        %v1843 = vunpack.c.0.s8 %v1842
        %v1844 = vlaneseq
        %v1845 = vshrl.u32 %v1844, 7
        %v1846 = vsub.s32 %v1843, %v1845
        %v1847 = vrot.slane %v1832, %v1846
        %v1849 = vunpack.c.l.s4 1934713408
        %v1850 = vunpack.c.0.s8 %v1849
        %v1851 = vlaneseq
        %v1852 = vshrl.u32 %v1851, 7
        %v1853 = vsub.s32 %v1850, %v1852
        %v1854 = vrot.slane %v1840, %v1853
        %v1855 = vcombine.high %v1839, 0
        %v1857 = vunpack.c.l.s4 1934713408
        %v1858 = vunpack.c.0.s8 %v1857
        %v1859 = vlaneseq
        %v1860 = vshrl.u32 %v1859, 7
        %v1861 = vsub.s32 %v1858, %v1860
        %v1862 = vrot.slane %v1839, %v1861
        %v1864 = vunpack.c.l.s4 1934713408
        %v1865 = vunpack.c.0.s8 %v1864
        %v1866 = vlaneseq
        %v1867 = vshrl.u32 %v1866, 7
        %v1868 = vsub.s32 %v1865, %v1867
        %v1869 = vrot.slane %v1855, %v1868
        %v1870 = vcombine.high %v1847, 0
        %v1871 = vcombine.high %v1854, 0
        %v1872 = vcombine.high %v1862, 0
        %v1873 = vcombine.high %v1869, 0
        %v1874 = vcombine.low %v1798, %v1805
        %v1876 = vunpack.c.l.s4 1983009808
        %v1877 = vunpack.c.0.s8 %v1876
        %v1878 = vlaneseq
        %v1879 = vshrl.u32 %v1878, 7
        %v1880 = vsub.s32 %v1877, %v1879
        %v1881 = vrot.slane %v1874, %v1880
        %v1882 = vcombine.low %v1821, %v1822
        %v1884 = vunpack.c.l.s4 1983009808
        %v1885 = vunpack.c.0.s8 %v1884
        %v1886 = vlaneseq
        %v1887 = vshrl.u32 %v1886, 7
        %v1888 = vsub.s32 %v1885, %v1887
        %v1889 = vrot.slane %v1882, %v1888
        %v1890 = vcombine.low %v1813, %v1820
        %v1892 = vunpack.c.l.s4 1983009808
        %v1893 = vunpack.c.0.s8 %v1892
        %v1894 = vlaneseq
        %v1895 = vshrl.u32 %v1894, 7
        %v1896 = vsub.s32 %v1893, %v1895
        %v1897 = vrot.slane %v1890, %v1896
        %v1898 = vcombine.low %v1823, %v1824
        %v1900 = vunpack.c.l.s4 1983009808
        %v1901 = vunpack.c.0.s8 %v1900
        %v1902 = vlaneseq
        %v1903 = vshrl.u32 %v1902, 7
        %v1904 = vsub.s32 %v1901, %v1903
        %v1905 = vrot.slane %v1898, %v1904
        %v1906 = vcombine.low %v1881, %v1889
        %v1908 = vunpack.c.l.s4 1934713408
        %v1909 = vunpack.c.0.s8 %v1908
        %v1910 = vlaneseq
        %v1911 = vshrl.u32 %v1910, 7
        %v1912 = vsub.s32 %v1909, %v1911
        %v1913 = vrot.slane %v1906, %v1912
        %v1914 = vcombine.low %v1897, %v1905
        %v1916 = vunpack.c.l.s4 1934713408
        %v1917 = vunpack.c.0.s8 %v1916
        %v1918 = vlaneseq
        %v1919 = vshrl.u32 %v1918, 7
        %v1920 = vsub.s32 %v1917, %v1919
        %v1921 = vrot.slane %v1914, %v1920
        %v1922 = vcombine.low %v1913, %v1921
        %v1923 = vcombine.low %v1847, %v1854
        %v1925 = vunpack.c.l.s4 1983009808
        %v1926 = vunpack.c.0.s8 %v1925
        %v1927 = vlaneseq
        %v1928 = vshrl.u32 %v1927, 7
        %v1929 = vsub.s32 %v1926, %v1928
        %v1930 = vrot.slane %v1923, %v1929
        %v1931 = vcombine.low %v1870, %v1871
        %v1933 = vunpack.c.l.s4 1983009808
        %v1934 = vunpack.c.0.s8 %v1933
        %v1935 = vlaneseq
        %v1936 = vshrl.u32 %v1935, 7
        %v1937 = vsub.s32 %v1934, %v1936
        %v1938 = vrot.slane %v1931, %v1937
        %v1939 = vcombine.low %v1862, %v1869
        %v1941 = vunpack.c.l.s4 1983009808
        %v1942 = vunpack.c.0.s8 %v1941
        %v1943 = vlaneseq
        %v1944 = vshrl.u32 %v1943, 7
        %v1945 = vsub.s32 %v1942, %v1944
        %v1946 = vrot.slane %v1939, %v1945
        %v1947 = vcombine.low %v1872, %v1873
        %v1949 = vunpack.c.l.s4 1983009808
        %v1950 = vunpack.c.0.s8 %v1949
        %v1951 = vlaneseq
        %v1952 = vshrl.u32 %v1951, 7
        %v1953 = vsub.s32 %v1950, %v1952
        %v1954 = vrot.slane %v1947, %v1953
        %v1955 = vcombine.low %v1930, %v1938
        %v1957 = vunpack.c.l.s4 1934713408
        %v1958 = vunpack.c.0.s8 %v1957
        %v1959 = vlaneseq
        %v1960 = vshrl.u32 %v1959, 7
        %v1961 = vsub.s32 %v1958, %v1960
        %v1962 = vrot.slane %v1955, %v1961
        %v1963 = vcombine.low %v1946, %v1954
        %v1965 = vunpack.c.l.s4 1934713408
        %v1966 = vunpack.c.0.s8 %v1965
        %v1967 = vlaneseq
        %v1968 = vshrl.u32 %v1967, 7
        %v1969 = vsub.s32 %v1966, %v1968
        %v1970 = vrot.slane %v1963, %v1969
        %v1971 = vcombine.low %v1962, %v1970
        %v1974 = vpack.i.b16 %v1971, %v1922
        %v1976 = vshrl.u32 %v1922, 16
        %v1977 = vshrl.u32 %v1971, 16
        %v1978 = vpack.i.b16 %v1977, %v1976
        %v1980 = vpack.c.bf16 %v1758, %v1756
        %v1981 = vpack.c.bf16 %v1759, %v1757
        %v1984 = vpack.i.b16 %v1981, %v1980
        %v1986 = vshrl.u32 %v1980, 16
        %v1987 = vshrl.u32 %v1981, 16
        %v1988 = vpack.i.b16 %v1987, %v1986
        %v1990 = vcombine.high %v1984, %v1771
        %v1992 = vunpack.c.l.s4 1983009808
        %v1993 = vunpack.c.0.s8 %v1992
        %v1994 = vlaneseq
        %v1995 = vshrl.u32 %v1994, 7
        %v1996 = vsub.s32 %v1993, %v1995
        %v1997 = vrot.slane %v1984, %v1996
        %v1999 = vunpack.c.l.s4 1983009808
        %v2000 = vunpack.c.0.s8 %v1999
        %v2001 = vlaneseq
        %v2002 = vshrl.u32 %v2001, 7
        %v2003 = vsub.s32 %v2000, %v2002
        %v2004 = vrot.slane %v1990, %v2003
        %v2005 = vcombine.high %v1997, 0
        %v2007 = vunpack.c.l.s4 1934713408
        %v2008 = vunpack.c.0.s8 %v2007
        %v2009 = vlaneseq
        %v2010 = vshrl.u32 %v2009, 7
        %v2011 = vsub.s32 %v2008, %v2010
        %v2012 = vrot.slane %v1997, %v2011
        %v2014 = vunpack.c.l.s4 1934713408
        %v2015 = vunpack.c.0.s8 %v2014
        %v2016 = vlaneseq
        %v2017 = vshrl.u32 %v2016, 7
        %v2018 = vsub.s32 %v2015, %v2017
        %v2019 = vrot.slane %v2005, %v2018
        %v2020 = vcombine.high %v2004, 0
        %v2022 = vunpack.c.l.s4 1934713408
        %v2023 = vunpack.c.0.s8 %v2022
        %v2024 = vlaneseq
        %v2025 = vshrl.u32 %v2024, 7
        %v2026 = vsub.s32 %v2023, %v2025
        %v2027 = vrot.slane %v2004, %v2026
        %v2029 = vunpack.c.l.s4 1934713408
        %v2030 = vunpack.c.0.s8 %v2029
        %v2031 = vlaneseq
        %v2032 = vshrl.u32 %v2031, 7
        %v2033 = vsub.s32 %v2030, %v2032
        %v2034 = vrot.slane %v2020, %v2033
        %v2035 = vcombine.high %v2012, 0
        %v2036 = vcombine.high %v2019, 0
        %v2037 = vcombine.high %v2027, 0
        %v2038 = vcombine.high %v2034, 0
        %v2039 = vcombine.high %v1988, %v1774
        %v2041 = vunpack.c.l.s4 1983009808
        %v2042 = vunpack.c.0.s8 %v2041
        %v2043 = vlaneseq
        %v2044 = vshrl.u32 %v2043, 7
        %v2045 = vsub.s32 %v2042, %v2044
        %v2046 = vrot.slane %v1988, %v2045
        %v2048 = vunpack.c.l.s4 1983009808
        %v2049 = vunpack.c.0.s8 %v2048
        %v2050 = vlaneseq
        %v2051 = vshrl.u32 %v2050, 7
        %v2052 = vsub.s32 %v2049, %v2051
        %v2053 = vrot.slane %v2039, %v2052
        %v2054 = vcombine.high %v2046, 0
        %v2056 = vunpack.c.l.s4 1934713408
        %v2057 = vunpack.c.0.s8 %v2056
        %v2058 = vlaneseq
        %v2059 = vshrl.u32 %v2058, 7
        %v2060 = vsub.s32 %v2057, %v2059
        %v2061 = vrot.slane %v2046, %v2060
        %v2063 = vunpack.c.l.s4 1934713408
        %v2064 = vunpack.c.0.s8 %v2063
        %v2065 = vlaneseq
        %v2066 = vshrl.u32 %v2065, 7
        %v2067 = vsub.s32 %v2064, %v2066
        %v2068 = vrot.slane %v2054, %v2067
        %v2069 = vcombine.high %v2053, 0
        %v2071 = vunpack.c.l.s4 1934713408
        %v2072 = vunpack.c.0.s8 %v2071
        %v2073 = vlaneseq
        %v2074 = vshrl.u32 %v2073, 7
        %v2075 = vsub.s32 %v2072, %v2074
        %v2076 = vrot.slane %v2053, %v2075
        %v2078 = vunpack.c.l.s4 1934713408
        %v2079 = vunpack.c.0.s8 %v2078
        %v2080 = vlaneseq
        %v2081 = vshrl.u32 %v2080, 7
        %v2082 = vsub.s32 %v2079, %v2081
        %v2083 = vrot.slane %v2069, %v2082
        %v2084 = vcombine.high %v2061, 0
        %v2085 = vcombine.high %v2068, 0
        %v2086 = vcombine.high %v2076, 0
        %v2087 = vcombine.high %v2083, 0
        %v2088 = vcombine.low %v2012, %v2019
        %v2090 = vunpack.c.l.s4 1983009808
        %v2091 = vunpack.c.0.s8 %v2090
        %v2092 = vlaneseq
        %v2093 = vshrl.u32 %v2092, 7
        %v2094 = vsub.s32 %v2091, %v2093
        %v2095 = vrot.slane %v2088, %v2094
        %v2096 = vcombine.low %v2035, %v2036
        %v2098 = vunpack.c.l.s4 1983009808
        %v2099 = vunpack.c.0.s8 %v2098
        %v2100 = vlaneseq
        %v2101 = vshrl.u32 %v2100, 7
        %v2102 = vsub.s32 %v2099, %v2101
        %v2103 = vrot.slane %v2096, %v2102
        %v2104 = vcombine.low %v2027, %v2034
        %v2106 = vunpack.c.l.s4 1983009808
        %v2107 = vunpack.c.0.s8 %v2106
        %v2108 = vlaneseq
        %v2109 = vshrl.u32 %v2108, 7
        %v2110 = vsub.s32 %v2107, %v2109
        %v2111 = vrot.slane %v2104, %v2110
        %v2112 = vcombine.low %v2037, %v2038
        %v2114 = vunpack.c.l.s4 1983009808
        %v2115 = vunpack.c.0.s8 %v2114
        %v2116 = vlaneseq
        %v2117 = vshrl.u32 %v2116, 7
        %v2118 = vsub.s32 %v2115, %v2117
        %v2119 = vrot.slane %v2112, %v2118
        %v2120 = vcombine.low %v2095, %v2103
        %v2122 = vunpack.c.l.s4 1934713408
        %v2123 = vunpack.c.0.s8 %v2122
        %v2124 = vlaneseq
        %v2125 = vshrl.u32 %v2124, 7
        %v2126 = vsub.s32 %v2123, %v2125
        %v2127 = vrot.slane %v2120, %v2126
        %v2128 = vcombine.low %v2111, %v2119
        %v2130 = vunpack.c.l.s4 1934713408
        %v2131 = vunpack.c.0.s8 %v2130
        %v2132 = vlaneseq
        %v2133 = vshrl.u32 %v2132, 7
        %v2134 = vsub.s32 %v2131, %v2133
        %v2135 = vrot.slane %v2128, %v2134
        %v2136 = vcombine.low %v2127, %v2135
        %v2137 = vcombine.low %v2061, %v2068
        %v2139 = vunpack.c.l.s4 1983009808
        %v2140 = vunpack.c.0.s8 %v2139
        %v2141 = vlaneseq
        %v2142 = vshrl.u32 %v2141, 7
        %v2143 = vsub.s32 %v2140, %v2142
        %v2144 = vrot.slane %v2137, %v2143
        %v2145 = vcombine.low %v2084, %v2085
        %v2147 = vunpack.c.l.s4 1983009808
        %v2148 = vunpack.c.0.s8 %v2147
        %v2149 = vlaneseq
        %v2150 = vshrl.u32 %v2149, 7
        %v2151 = vsub.s32 %v2148, %v2150
        %v2152 = vrot.slane %v2145, %v2151
        %v2153 = vcombine.low %v2076, %v2083
        %v2155 = vunpack.c.l.s4 1983009808
        %v2156 = vunpack.c.0.s8 %v2155
        %v2157 = vlaneseq
        %v2158 = vshrl.u32 %v2157, 7
        %v2159 = vsub.s32 %v2156, %v2158
        %v2160 = vrot.slane %v2153, %v2159
        %v2161 = vcombine.low %v2086, %v2087
        %v2163 = vunpack.c.l.s4 1983009808
        %v2164 = vunpack.c.0.s8 %v2163
        %v2165 = vlaneseq
        %v2166 = vshrl.u32 %v2165, 7
        %v2167 = vsub.s32 %v2164, %v2166
        %v2168 = vrot.slane %v2161, %v2167
        %v2169 = vcombine.low %v2144, %v2152
        %v2171 = vunpack.c.l.s4 1934713408
        %v2172 = vunpack.c.0.s8 %v2171
        %v2173 = vlaneseq
        %v2174 = vshrl.u32 %v2173, 7
        %v2175 = vsub.s32 %v2172, %v2174
        %v2176 = vrot.slane %v2169, %v2175
        %v2177 = vcombine.low %v2160, %v2168
        %v2179 = vunpack.c.l.s4 1934713408
        %v2180 = vunpack.c.0.s8 %v2179
        %v2181 = vlaneseq
        %v2182 = vshrl.u32 %v2181, 7
        %v2183 = vsub.s32 %v2180, %v2182
        %v2184 = vrot.slane %v2177, %v2183
        %v2185 = vcombine.low %v2176, %v2184
        %v2188 = vpack.i.b16 %v2185, %v2136
        %v2190 = vshrl.u32 %v2136, 16
        %v2191 = vshrl.u32 %v2185, 16
        %v2192 = vpack.i.b16 %v2191, %v2190
        %v2194 = vpack.c.bf16 %v1724, %v1720
        %v2195 = vpack.c.bf16 %v1726, %v1722
        %v2198 = vpack.i.b16 %v2195, %v2194
        %v2200 = vshrl.u32 %v2194, 16
        %v2201 = vshrl.u32 %v2195, 16
        %v2202 = vpack.i.b16 %v2201, %v2200
        %v2204 = vcombine.high %v2198, %v1771
        %v2206 = vunpack.c.l.s4 1983009808
        %v2207 = vunpack.c.0.s8 %v2206
        %v2208 = vlaneseq
        %v2209 = vshrl.u32 %v2208, 7
        %v2210 = vsub.s32 %v2207, %v2209
        %v2211 = vrot.slane %v2198, %v2210
        %v2213 = vunpack.c.l.s4 1983009808
        %v2214 = vunpack.c.0.s8 %v2213
        %v2215 = vlaneseq
        %v2216 = vshrl.u32 %v2215, 7
        %v2217 = vsub.s32 %v2214, %v2216
        %v2218 = vrot.slane %v2204, %v2217
        %v2219 = vcombine.high %v2211, 0
        %v2221 = vunpack.c.l.s4 1934713408
        %v2222 = vunpack.c.0.s8 %v2221
        %v2223 = vlaneseq
        %v2224 = vshrl.u32 %v2223, 7
        %v2225 = vsub.s32 %v2222, %v2224
        %v2226 = vrot.slane %v2211, %v2225
        %v2228 = vunpack.c.l.s4 1934713408
        %v2229 = vunpack.c.0.s8 %v2228
        %v2230 = vlaneseq
        %v2231 = vshrl.u32 %v2230, 7
        %v2232 = vsub.s32 %v2229, %v2231
        %v2233 = vrot.slane %v2219, %v2232
        %v2234 = vcombine.high %v2218, 0
        %v2236 = vunpack.c.l.s4 1934713408
        %v2237 = vunpack.c.0.s8 %v2236
        %v2238 = vlaneseq
        %v2239 = vshrl.u32 %v2238, 7
        %v2240 = vsub.s32 %v2237, %v2239
        %v2241 = vrot.slane %v2218, %v2240
        %v2243 = vunpack.c.l.s4 1934713408
        %v2244 = vunpack.c.0.s8 %v2243
        %v2245 = vlaneseq
        %v2246 = vshrl.u32 %v2245, 7
        %v2247 = vsub.s32 %v2244, %v2246
        %v2248 = vrot.slane %v2234, %v2247
        %v2249 = vcombine.high %v2226, 0
        %v2250 = vcombine.high %v2233, 0
        %v2251 = vcombine.high %v2241, 0
        %v2252 = vcombine.high %v2248, 0
        %v2253 = vcombine.high %v2202, %v1774
        %v2255 = vunpack.c.l.s4 1983009808
        %v2256 = vunpack.c.0.s8 %v2255
        %v2257 = vlaneseq
        %v2258 = vshrl.u32 %v2257, 7
        %v2259 = vsub.s32 %v2256, %v2258
        %v2260 = vrot.slane %v2202, %v2259
        %v2262 = vunpack.c.l.s4 1983009808
        %v2263 = vunpack.c.0.s8 %v2262
        %v2264 = vlaneseq
        %v2265 = vshrl.u32 %v2264, 7
        %v2266 = vsub.s32 %v2263, %v2265
        %v2267 = vrot.slane %v2253, %v2266
        %v2268 = vcombine.high %v2260, 0
        %v2270 = vunpack.c.l.s4 1934713408
        %v2271 = vunpack.c.0.s8 %v2270
        %v2272 = vlaneseq
        %v2273 = vshrl.u32 %v2272, 7
        %v2274 = vsub.s32 %v2271, %v2273
        %v2275 = vrot.slane %v2260, %v2274
        %v2277 = vunpack.c.l.s4 1934713408
        %v2278 = vunpack.c.0.s8 %v2277
        %v2279 = vlaneseq
        %v2280 = vshrl.u32 %v2279, 7
        %v2281 = vsub.s32 %v2278, %v2280
        %v2282 = vrot.slane %v2268, %v2281
        %v2283 = vcombine.high %v2267, 0
        %v2285 = vunpack.c.l.s4 1934713408
        %v2286 = vunpack.c.0.s8 %v2285
        %v2287 = vlaneseq
        %v2288 = vshrl.u32 %v2287, 7
        %v2289 = vsub.s32 %v2286, %v2288
        %v2290 = vrot.slane %v2267, %v2289
        %v2292 = vunpack.c.l.s4 1934713408
        %v2293 = vunpack.c.0.s8 %v2292
        %v2294 = vlaneseq
        %v2295 = vshrl.u32 %v2294, 7
        %v2296 = vsub.s32 %v2293, %v2295
        %v2297 = vrot.slane %v2283, %v2296
        %v2298 = vcombine.high %v2275, 0
        %v2299 = vcombine.high %v2282, 0
        %v2300 = vcombine.high %v2290, 0
        %v2301 = vcombine.high %v2297, 0
        %v2302 = vcombine.low %v2226, %v2233
        %v2304 = vunpack.c.l.s4 1983009808
        %v2305 = vunpack.c.0.s8 %v2304
        %v2306 = vlaneseq
        %v2307 = vshrl.u32 %v2306, 7
        %v2308 = vsub.s32 %v2305, %v2307
        %v2309 = vrot.slane %v2302, %v2308
        %v2310 = vcombine.low %v2249, %v2250
        %v2312 = vunpack.c.l.s4 1983009808
        %v2313 = vunpack.c.0.s8 %v2312
        %v2314 = vlaneseq
        %v2315 = vshrl.u32 %v2314, 7
        %v2316 = vsub.s32 %v2313, %v2315
        %v2317 = vrot.slane %v2310, %v2316
        %v2318 = vcombine.low %v2241, %v2248
        %v2320 = vunpack.c.l.s4 1983009808
        %v2321 = vunpack.c.0.s8 %v2320
        %v2322 = vlaneseq
        %v2323 = vshrl.u32 %v2322, 7
        %v2324 = vsub.s32 %v2321, %v2323
        %v2325 = vrot.slane %v2318, %v2324
        %v2326 = vcombine.low %v2251, %v2252
        %v2328 = vunpack.c.l.s4 1983009808
        %v2329 = vunpack.c.0.s8 %v2328
        %v2330 = vlaneseq
        %v2331 = vshrl.u32 %v2330, 7
        %v2332 = vsub.s32 %v2329, %v2331
        %v2333 = vrot.slane %v2326, %v2332
        %v2334 = vcombine.low %v2309, %v2317
        %v2336 = vunpack.c.l.s4 1934713408
        %v2337 = vunpack.c.0.s8 %v2336
        %v2338 = vlaneseq
        %v2339 = vshrl.u32 %v2338, 7
        %v2340 = vsub.s32 %v2337, %v2339
        %v2341 = vrot.slane %v2334, %v2340
        %v2342 = vcombine.low %v2325, %v2333
        %v2344 = vunpack.c.l.s4 1934713408
        %v2345 = vunpack.c.0.s8 %v2344
        %v2346 = vlaneseq
        %v2347 = vshrl.u32 %v2346, 7
        %v2348 = vsub.s32 %v2345, %v2347
        %v2349 = vrot.slane %v2342, %v2348
        %v2350 = vcombine.low %v2341, %v2349
        %v2351 = vcombine.low %v2275, %v2282
        %v2353 = vunpack.c.l.s4 1983009808
        %v2354 = vunpack.c.0.s8 %v2353
        %v2355 = vlaneseq
        %v2356 = vshrl.u32 %v2355, 7
        %v2357 = vsub.s32 %v2354, %v2356
        %v2358 = vrot.slane %v2351, %v2357
        %v2359 = vcombine.low %v2298, %v2299
        %v2361 = vunpack.c.l.s4 1983009808
        %v2362 = vunpack.c.0.s8 %v2361
        %v2363 = vlaneseq
        %v2364 = vshrl.u32 %v2363, 7
        %v2365 = vsub.s32 %v2362, %v2364
        %v2366 = vrot.slane %v2359, %v2365
        %v2367 = vcombine.low %v2290, %v2297
        %v2369 = vunpack.c.l.s4 1983009808
        %v2370 = vunpack.c.0.s8 %v2369
        %v2371 = vlaneseq
        %v2372 = vshrl.u32 %v2371, 7
        %v2373 = vsub.s32 %v2370, %v2372
        %v2374 = vrot.slane %v2367, %v2373
        %v2375 = vcombine.low %v2300, %v2301
        %v2377 = vunpack.c.l.s4 1983009808
        %v2378 = vunpack.c.0.s8 %v2377
        %v2379 = vlaneseq
        %v2380 = vshrl.u32 %v2379, 7
        %v2381 = vsub.s32 %v2378, %v2380
        %v2382 = vrot.slane %v2375, %v2381
        %v2383 = vcombine.low %v2358, %v2366
        %v2385 = vunpack.c.l.s4 1934713408
        %v2386 = vunpack.c.0.s8 %v2385
        %v2387 = vlaneseq
        %v2388 = vshrl.u32 %v2387, 7
        %v2389 = vsub.s32 %v2386, %v2388
        %v2390 = vrot.slane %v2383, %v2389
        %v2391 = vcombine.low %v2374, %v2382
        %v2393 = vunpack.c.l.s4 1934713408
        %v2394 = vunpack.c.0.s8 %v2393
        %v2395 = vlaneseq
        %v2396 = vshrl.u32 %v2395, 7
        %v2397 = vsub.s32 %v2394, %v2396
        %v2398 = vrot.slane %v2391, %v2397
        %v2399 = vcombine.low %v2390, %v2398
        %v2402 = vpack.i.b16 %v2399, %v2350
        %v2404 = vshrl.u32 %v2350, 16
        %v2405 = vshrl.u32 %v2399, 16
        %v2406 = vpack.i.b16 %v2405, %v2404
        %2408 = vmatprep.subr.bf16.mxu0 0
        %2409 = vmatpush1.bf16.xpose.msra.mxu0 0
        %2410 = vmatprep.subr.bf16.mxu0 0
        %2411 = vmatpush1.bf16.xpose.msra.mxu0 0
        %2412 = vmatprep.subr.bf16.mxu0 0
        %2413 = vmatpush1.bf16.xpose.msra.mxu0 0
        %2414 = vmatprep.subr.bf16.mxu0 0
        %2415 = vmatpush1.bf16.xpose.msra.mxu0 0
        %2416 = vmatprep.subr.bf16.mxu0 0
        %2417 = vmatpush1.bf16.xpose.msra.mxu0 0
        %2418 = vmatprep.subr.bf16.mxu0 0
        %2419 = vmatpush1.bf16.xpose.msra.mxu0 0
        %2420 = vmatprep.subr.bf16.mxu0 0
        %2421 = vmatpush1.bf16.xpose.msra.mxu0 0
        %2422 = vmatprep.subr.bf16.mxu0 0
        %2423 = vmatpush1.bf16.xpose.msra.mxu0 %v2188
        %2424 = vmatprep.subr.bf16.mxu0 0
        %2425 = vmatpush2.bf16.xpose.msra.mxu0 0
        %2426 = vmatprep.subr.bf16.mxu0 0
        %2427 = vmatpush2.bf16.xpose.msra.mxu0 0
        %2428 = vmatprep.subr.bf16.mxu0 0
        %2429 = vmatpush2.bf16.xpose.msra.mxu0 0
        %2430 = vmatprep.subr.bf16.mxu0 0
        %2431 = vmatpush2.bf16.xpose.msra.mxu0 0
        %2432 = vmatprep.subr.bf16.mxu0 0
        %2433 = vmatpush2.bf16.xpose.msra.mxu0 0
        %2434 = vmatprep.subr.bf16.mxu0 0
        %2435 = vmatpush2.bf16.xpose.msra.mxu0 0
        %2436 = vmatprep.subr.bf16.mxu0 0
        %2437 = vmatpush2.bf16.xpose.msra.mxu0 0
        %2438 = vmatprep.subr.bf16.mxu0 0
        %2439 = vmatpush2.bf16.xpose.msra.mxu0 0
        %2440 = vmatprep.mubr.bf16.mxu0 0
        %2441 = vmatmul.mubr.bf16.gmra.mxu0 %v1974
        %v2442 = vpop.f32.mrf.mxu0
        %v2443 = vadd.f32 0.0, %v2442
        %v2444 = vpop.f32.mrf.mxu0
        %v2445 = vpop.f32.mrf.mxu0
        %v2446 = vadd.f32 0.0, %v2445
        %v2447 = vpop.f32.mrf.mxu0
        %2448 = vdwg.mxu0
        %2449 = vmatprep.subr.bf16.mxu0 0
        %2450 = vmatpush1.bf16.xpose.msra.mxu0 0
        %2451 = vmatprep.subr.bf16.mxu0 0
        %2452 = vmatpush1.bf16.xpose.msra.mxu0 0
        %2453 = vmatprep.subr.bf16.mxu0 0
        %2454 = vmatpush1.bf16.xpose.msra.mxu0 0
        %2455 = vmatprep.subr.bf16.mxu0 0
        %2456 = vmatpush1.bf16.xpose.msra.mxu0 0
        %2457 = vmatprep.subr.bf16.mxu0 0
        %2458 = vmatpush1.bf16.xpose.msra.mxu0 0
        %2459 = vmatprep.subr.bf16.mxu0 0
        %2460 = vmatpush1.bf16.xpose.msra.mxu0 0
        %2461 = vmatprep.subr.bf16.mxu0 0
        %2462 = vmatpush1.bf16.xpose.msra.mxu0 0
        %2463 = vmatprep.subr.bf16.mxu0 0
        %2464 = vmatpush1.bf16.xpose.msra.mxu0 %v2192
        %2465 = vmatprep.subr.bf16.mxu0 0
        %2466 = vmatpush2.bf16.xpose.msra.mxu0 0
        %2467 = vmatprep.subr.bf16.mxu0 0
        %2468 = vmatpush2.bf16.xpose.msra.mxu0 0
        %2469 = vmatprep.subr.bf16.mxu0 0
        %2470 = vmatpush2.bf16.xpose.msra.mxu0 0
        %2471 = vmatprep.subr.bf16.mxu0 0
        %2472 = vmatpush2.bf16.xpose.msra.mxu0 0
        %2473 = vmatprep.subr.bf16.mxu0 0
        %2474 = vmatpush2.bf16.xpose.msra.mxu0 0
        %2475 = vmatprep.subr.bf16.mxu0 0
        %2476 = vmatpush2.bf16.xpose.msra.mxu0 0
        %2477 = vmatprep.subr.bf16.mxu0 0
        %2478 = vmatpush2.bf16.xpose.msra.mxu0 0
        %2479 = vmatprep.subr.bf16.mxu0 0
        %2480 = vmatpush2.bf16.xpose.msra.mxu0 0
        %2481 = vmatprep.mubr.bf16.mxu0 0
        %2482 = vmatmul.mubr.bf16.gmra.mxu0 %v1978
        %v2483 = vpop.f32.mrf.mxu0
        %v2484 = vadd.f32 0.0, %v2483
        %v2485 = vpop.f32.mrf.mxu0
        %v2486 = vpop.f32.mrf.mxu0
        %v2487 = vadd.f32 0.0, %v2486
        %v2488 = vpop.f32.mrf.mxu0
        %2489 = vdwg.mxu0
        %vm2490 = vcmask 130048
        %v2491 = vsel %vm2490, %v2443, -inf
        %2492 = vmax.xlane.f32.xlu0 %v2491
        %v2493 = vpop.xlane.xlu0 %2492
        %v2494 = vsel %vm2490, %v2446, -inf
        %2495 = vmax.xlane.f32.xlu0 %v2494
        %v2496 = vpop.xlane.xlu0 %2495
        %v2497 = vsel %vm2490, %v2484, -inf
        %2498 = vmax.xlane.f32.xlu0 %v2497
        %v2499 = vpop.xlane.xlu0 %2498
        %v2500 = vsel %vm2490, %v2487, -inf
        %2501 = vmax.xlane.f32.xlu0 %v2500
        %v2502 = vpop.xlane.xlu0 %2501
        %v2503 = vsub.f32 %v2443, %v2493
        %v2504 = vsub.f32 %v2446, %v2496
        %v2505 = vsub.f32 %v2484, %v2499
        %v2506 = vsub.f32 %v2487, %v2502
        %v2507 = vmul.f32 %v2503, 1.442695
        %v2508 = vpow.pop %v2507
        %v2509 = vmul.f32 %v2504, 1.442695
        %v2510 = vpow.pop %v2509
        %v2511 = vmul.f32 %v2505, 1.442695
        %v2512 = vpow.pop %v2511
        %v2513 = vmul.f32 %v2506, 1.442695
        %v2514 = vpow.pop %v2513
        %v2515 = vsel %vm2490, %v2508, 0.0
        %2516 = vadd.xlane.f32.xlu0 %v2515
        %v2517 = vpop.xlane.xlu0 %2516
        %v2518 = vsel %vm2490, %v2510, 0.0
        %2519 = vadd.xlane.f32.xlu0 %v2518
        %v2520 = vpop.xlane.xlu0 %2519
        %v2521 = vsel %vm2490, %v2512, 0.0
        %2522 = vadd.xlane.f32.xlu0 %v2521
        %v2523 = vpop.xlane.xlu0 %2522
        %v2524 = vsel %vm2490, %v2514, 0.0
        %2525 = vadd.xlane.f32.xlu0 %v2524
        %v2526 = vpop.xlane.xlu0 %2525
        %v2527 = vpack.c.bf16 %v2510, %v2508
        %v2528 = vpack.c.bf16 %v2514, %v2512
        %v2530 = vsel %vm2490, %v2527, 0
        %2532 = vmatprep.subr.bf16.mxu0 0
        %2533 = vmatpush1.bf16.msra.mxu0 0
        %2534 = vmatprep.subr.bf16.mxu0 0
        %2535 = vmatpush1.bf16.msra.mxu0 0
        %2536 = vmatprep.subr.bf16.mxu0 0
        %2537 = vmatpush1.bf16.msra.mxu0 0
        %2538 = vmatprep.subr.bf16.mxu0 0
        %2539 = vmatpush1.bf16.msra.mxu0 0
        %2540 = vmatprep.subr.bf16.mxu0 0
        %2541 = vmatpush1.bf16.msra.mxu0 0
        %2542 = vmatprep.subr.bf16.mxu0 0
        %2543 = vmatpush1.bf16.msra.mxu0 0
        %2544 = vmatprep.subr.bf16.mxu0 0
        %2545 = vmatpush1.bf16.msra.mxu0 0
        %2546 = vmatprep.subr.bf16.mxu0 0
        %2547 = vmatpush1.bf16.msra.mxu0 %v2402
        %2548 = vmatprep.subr.bf16.mxu0 0
        %2549 = vmatpush2.bf16.msra.mxu0 0
        %2550 = vmatprep.subr.bf16.mxu0 0
        %2551 = vmatpush2.bf16.msra.mxu0 0
        %2552 = vmatprep.subr.bf16.mxu0 0
        %2553 = vmatpush2.bf16.msra.mxu0 0
        %2554 = vmatprep.subr.bf16.mxu0 0
        %2555 = vmatpush2.bf16.msra.mxu0 0
        %2556 = vmatprep.subr.bf16.mxu0 0
        %2557 = vmatpush2.bf16.msra.mxu0 0
        %2558 = vmatprep.subr.bf16.mxu0 0
        %2559 = vmatpush2.bf16.msra.mxu0 0
        %2560 = vmatprep.subr.bf16.mxu0 0
        %2561 = vmatpush2.bf16.msra.mxu0 0
        %2562 = vmatprep.subr.bf16.mxu0 0
        %2563 = vmatpush2.bf16.msra.mxu0 0
        %2564 = vmatprep.mubr.bf16.mxu0 0
        %2565 = vmatmul.mubr.bf16.gmra.mxu0 %v2530
        %v2566 = vpop.f32.mrf.mxu0
        %v2567 = vadd.f32 0.0, %v2566
        %v2568 = vpop.f32.mrf.mxu0
        %v2569 = vpop.f32.mrf.mxu0
        %v2570 = vadd.f32 0.0, %v2569
        %v2571 = vpop.f32.mrf.mxu0
        %2572 = vdwg.mxu0
        %v2574 = vsel %vm2490, %v2528, 0
        %2576 = vmatprep.subr.bf16.mxu0 0
        %2577 = vmatpush1.bf16.msra.mxu0 0
        %2578 = vmatprep.subr.bf16.mxu0 0
        %2579 = vmatpush1.bf16.msra.mxu0 0
        %2580 = vmatprep.subr.bf16.mxu0 0
        %2581 = vmatpush1.bf16.msra.mxu0 0
        %2582 = vmatprep.subr.bf16.mxu0 0
        %2583 = vmatpush1.bf16.msra.mxu0 0
        %2584 = vmatprep.subr.bf16.mxu0 0
        %2585 = vmatpush1.bf16.msra.mxu0 0
        %2586 = vmatprep.subr.bf16.mxu0 0
        %2587 = vmatpush1.bf16.msra.mxu0 0
        %2588 = vmatprep.subr.bf16.mxu0 0
        %2589 = vmatpush1.bf16.msra.mxu0 0
        %2590 = vmatprep.subr.bf16.mxu0 0
        %2591 = vmatpush1.bf16.msra.mxu0 %v2406
        %2592 = vmatprep.subr.bf16.mxu0 0
        %2593 = vmatpush2.bf16.msra.mxu0 0
        %2594 = vmatprep.subr.bf16.mxu0 0
        %2595 = vmatpush2.bf16.msra.mxu0 0
        %2596 = vmatprep.subr.bf16.mxu0 0
        %2597 = vmatpush2.bf16.msra.mxu0 0
        %2598 = vmatprep.subr.bf16.mxu0 0
        %2599 = vmatpush2.bf16.msra.mxu0 0
        %2600 = vmatprep.subr.bf16.mxu0 0
        %2601 = vmatpush2.bf16.msra.mxu0 0
        %2602 = vmatprep.subr.bf16.mxu0 0
        %2603 = vmatpush2.bf16.msra.mxu0 0
        %2604 = vmatprep.subr.bf16.mxu0 0
        %2605 = vmatpush2.bf16.msra.mxu0 0
        %2606 = vmatprep.subr.bf16.mxu0 0
        %2607 = vmatpush2.bf16.msra.mxu0 0
        %2608 = vmatprep.mubr.bf16.mxu0 0
        %2609 = vmatmul.mubr.bf16.gmra.mxu0 %v2574
        %v2610 = vpop.f32.mrf.mxu0
        %v2611 = vadd.f32 0.0, %v2610
        %v2612 = vpop.f32.mrf.mxu0
        %v2613 = vpop.f32.mrf.mxu0
        %v2614 = vadd.f32 0.0, %v2613
        %v2615 = vpop.f32.mrf.mxu0
        %2616 = vdwg.mxu0
        %v2617 = vrcp.pop %v2517
        %v2618 = vrcp.pop %v2520
        %v2619 = vrcp.pop %v2523
        %v2620 = vrcp.pop %v2526
        %v2621 = vmul.f32 %v2567, %v2617
        %v2622 = vmul.f32 %v2570, %v2618
        %v2623 = vmul.f32 %v2611, %v2619
        %v2624 = vmul.f32 %v2614, %v2620
        %v2625 = vcombine.high %v2621, 0.0
        %v2627 = vunpack.c.l.s4 1983009808
        %v2628 = vunpack.c.0.s8 %v2627
        %v2629 = vlaneseq
        %v2630 = vshrl.u32 %v2629, 7
        %v2631 = vsub.s32 %v2628, %v2630
        %v2632 = vrot.slane %v2621, %v2631
        %v2634 = vunpack.c.l.s4 1983009808
        %v2635 = vunpack.c.0.s8 %v2634
        %v2636 = vlaneseq
        %v2637 = vshrl.u32 %v2636, 7
        %v2638 = vsub.s32 %v2635, %v2637
        %v2639 = vrot.slane %v2625, %v2638
        %v2640 = vcombine.high %v2623, 0.0
        %v2642 = vunpack.c.l.s4 1983009808
        %v2643 = vunpack.c.0.s8 %v2642
        %v2644 = vlaneseq
        %v2645 = vshrl.u32 %v2644, 7
        %v2646 = vsub.s32 %v2643, %v2645
        %v2647 = vrot.slane %v2623, %v2646
        %v2649 = vunpack.c.l.s4 1983009808
        %v2650 = vunpack.c.0.s8 %v2649
        %v2651 = vlaneseq
        %v2652 = vshrl.u32 %v2651, 7
        %v2653 = vsub.s32 %v2650, %v2652
        %v2654 = vrot.slane %v2640, %v2653
        %v2655 = vcombine.low %v2632, %v2647
        %v2656 = vcombine.high %v2632, %v2647
        %v2658 = vunpack.c.l.s4 1934713408
        %v2659 = vunpack.c.0.s8 %v2658
        %v2660 = vlaneseq
        %v2661 = vshrl.u32 %v2660, 7
        %v2662 = vsub.s32 %v2659, %v2661
        %v2663 = vrot.slane %v2655, %v2662
        %v2665 = vunpack.c.l.s4 1934713408
        %v2666 = vunpack.c.0.s8 %v2665
        %v2667 = vlaneseq
        %v2668 = vshrl.u32 %v2667, 7
        %v2669 = vsub.s32 %v2666, %v2668
        %v2670 = vrot.slane %v2656, %v2669
        %v2671 = vcombine.low %v2639, %v2654
        %v2672 = vcombine.high %v2639, %v2654
        %v2674 = vunpack.c.l.s4 1934713408
        %v2675 = vunpack.c.0.s8 %v2674
        %v2676 = vlaneseq
        %v2677 = vshrl.u32 %v2676, 7
        %v2678 = vsub.s32 %v2675, %v2677
        %v2679 = vrot.slane %v2671, %v2678
        %v2681 = vunpack.c.l.s4 1934713408
        %v2682 = vunpack.c.0.s8 %v2681
        %v2683 = vlaneseq
        %v2684 = vshrl.u32 %v2683, 7
        %v2685 = vsub.s32 %v2682, %v2684
        %v2686 = vrot.slane %v2672, %v2685
        %v2687 = vcombine.high %v2663, 0.0
        %v2688 = vcombine.high %v2670, 0.0
        %v2689 = vcombine.high %v2679, 0.0
        %v2690 = vcombine.high %v2686, 0.0
        %v2691 = vcombine.high %v2622, 0.0
        %v2693 = vunpack.c.l.s4 1983009808
        %v2694 = vunpack.c.0.s8 %v2693
        %v2695 = vlaneseq
        %v2696 = vshrl.u32 %v2695, 7
        %v2697 = vsub.s32 %v2694, %v2696
        %v2698 = vrot.slane %v2622, %v2697
        %v2700 = vunpack.c.l.s4 1983009808
        %v2701 = vunpack.c.0.s8 %v2700
        %v2702 = vlaneseq
        %v2703 = vshrl.u32 %v2702, 7
        %v2704 = vsub.s32 %v2701, %v2703
        %v2705 = vrot.slane %v2691, %v2704
        %v2706 = vcombine.high %v2624, 0.0
        %v2708 = vunpack.c.l.s4 1983009808
        %v2709 = vunpack.c.0.s8 %v2708
        %v2710 = vlaneseq
        %v2711 = vshrl.u32 %v2710, 7
        %v2712 = vsub.s32 %v2709, %v2711
        %v2713 = vrot.slane %v2624, %v2712
        %v2715 = vunpack.c.l.s4 1983009808
        %v2716 = vunpack.c.0.s8 %v2715
        %v2717 = vlaneseq
        %v2718 = vshrl.u32 %v2717, 7
        %v2719 = vsub.s32 %v2716, %v2718
        %v2720 = vrot.slane %v2706, %v2719
        %v2721 = vcombine.low %v2698, %v2713
        %v2722 = vcombine.high %v2698, %v2713
        %v2724 = vunpack.c.l.s4 1934713408
        %v2725 = vunpack.c.0.s8 %v2724
        %v2726 = vlaneseq
        %v2727 = vshrl.u32 %v2726, 7
        %v2728 = vsub.s32 %v2725, %v2727
        %v2729 = vrot.slane %v2721, %v2728
        %v2731 = vunpack.c.l.s4 1934713408
        %v2732 = vunpack.c.0.s8 %v2731
        %v2733 = vlaneseq
        %v2734 = vshrl.u32 %v2733, 7
        %v2735 = vsub.s32 %v2732, %v2734
        %v2736 = vrot.slane %v2722, %v2735
        %v2737 = vcombine.low %v2705, %v2720
        %v2738 = vcombine.high %v2705, %v2720
        %v2740 = vunpack.c.l.s4 1934713408
        %v2741 = vunpack.c.0.s8 %v2740
        %v2742 = vlaneseq
        %v2743 = vshrl.u32 %v2742, 7
        %v2744 = vsub.s32 %v2741, %v2743
        %v2745 = vrot.slane %v2737, %v2744
        %v2747 = vunpack.c.l.s4 1934713408
        %v2748 = vunpack.c.0.s8 %v2747
        %v2749 = vlaneseq
        %v2750 = vshrl.u32 %v2749, 7
        %v2751 = vsub.s32 %v2748, %v2750
        %v2752 = vrot.slane %v2738, %v2751
        %v2753 = vcombine.high %v2729, 0.0
        %v2754 = vcombine.high %v2736, 0.0
        %v2755 = vcombine.high %v2745, 0.0
        %v2756 = vcombine.high %v2752, 0.0
        %v2757 = vcombine.low %v2663, %v2670
        %v2759 = vunpack.c.l.s4 1983009808
        %v2760 = vunpack.c.0.s8 %v2759
        %v2761 = vlaneseq
        %v2762 = vshrl.u32 %v2761, 7
        %v2763 = vsub.s32 %v2760, %v2762
        %v2764 = vrot.slane %v2757, %v2763
        %v2765 = vcombine.low %v2687, %v2688
        %v2767 = vunpack.c.l.s4 1983009808
        %v2768 = vunpack.c.0.s8 %v2767
        %v2769 = vlaneseq
        %v2770 = vshrl.u32 %v2769, 7
        %v2771 = vsub.s32 %v2768, %v2770
        %v2772 = vrot.slane %v2765, %v2771
        %v2773 = vcombine.low %v2679, %v2686
        %v2775 = vunpack.c.l.s4 1983009808
        %v2776 = vunpack.c.0.s8 %v2775
        %v2777 = vlaneseq
        %v2778 = vshrl.u32 %v2777, 7
        %v2779 = vsub.s32 %v2776, %v2778
        %v2780 = vrot.slane %v2773, %v2779
        %v2781 = vcombine.low %v2689, %v2690
        %v2783 = vunpack.c.l.s4 1983009808
        %v2784 = vunpack.c.0.s8 %v2783
        %v2785 = vlaneseq
        %v2786 = vshrl.u32 %v2785, 7
        %v2787 = vsub.s32 %v2784, %v2786
        %v2788 = vrot.slane %v2781, %v2787
        %v2789 = vcombine.low %v2764, %v2772
        %v2791 = vunpack.c.l.s4 1934713408
        %v2792 = vunpack.c.0.s8 %v2791
        %v2793 = vlaneseq
        %v2794 = vshrl.u32 %v2793, 7
        %v2795 = vsub.s32 %v2792, %v2794
        %v2796 = vrot.slane %v2789, %v2795
        %v2797 = vcombine.low %v2780, %v2788
        %v2799 = vunpack.c.l.s4 1934713408
        %v2800 = vunpack.c.0.s8 %v2799
        %v2801 = vlaneseq
        %v2802 = vshrl.u32 %v2801, 7
        %v2803 = vsub.s32 %v2800, %v2802
        %v2804 = vrot.slane %v2797, %v2803
        %v2805 = vcombine.low %v2796, %v2804
        %v2806 = vcombine.high %v2796, %v2804
        %v2807 = vcombine.low %v2729, %v2736
        %v2809 = vunpack.c.l.s4 1983009808
        %v2810 = vunpack.c.0.s8 %v2809
        %v2811 = vlaneseq
        %v2812 = vshrl.u32 %v2811, 7
        %v2813 = vsub.s32 %v2810, %v2812
        %v2814 = vrot.slane %v2807, %v2813
        %v2815 = vcombine.low %v2753, %v2754
        %v2817 = vunpack.c.l.s4 1983009808
        %v2818 = vunpack.c.0.s8 %v2817
        %v2819 = vlaneseq
        %v2820 = vshrl.u32 %v2819, 7
        %v2821 = vsub.s32 %v2818, %v2820
        %v2822 = vrot.slane %v2815, %v2821
        %v2823 = vcombine.low %v2745, %v2752
        %v2825 = vunpack.c.l.s4 1983009808
        %v2826 = vunpack.c.0.s8 %v2825
        %v2827 = vlaneseq
        %v2828 = vshrl.u32 %v2827, 7
        %v2829 = vsub.s32 %v2826, %v2828
        %v2830 = vrot.slane %v2823, %v2829
        %v2831 = vcombine.low %v2755, %v2756
        %v2833 = vunpack.c.l.s4 1983009808
        %v2834 = vunpack.c.0.s8 %v2833
        %v2835 = vlaneseq
        %v2836 = vshrl.u32 %v2835, 7
        %v2837 = vsub.s32 %v2834, %v2836
        %v2838 = vrot.slane %v2831, %v2837
        %v2839 = vcombine.low %v2814, %v2822
        %v2841 = vunpack.c.l.s4 1934713408
        %v2842 = vunpack.c.0.s8 %v2841
        %v2843 = vlaneseq
        %v2844 = vshrl.u32 %v2843, 7
        %v2845 = vsub.s32 %v2842, %v2844
        %v2846 = vrot.slane %v2839, %v2845
        %v2847 = vcombine.low %v2830, %v2838
        %v2849 = vunpack.c.l.s4 1934713408
        %v2850 = vunpack.c.0.s8 %v2849
        %v2851 = vlaneseq
        %v2852 = vshrl.u32 %v2851, 7
        %v2853 = vsub.s32 %v2850, %v2852
        %v2854 = vrot.slane %v2847, %v2853
        %v2855 = vcombine.low %v2846, %v2854
        %v2856 = vcombine.high %v2846, %v2854
        %v2857 = vpack.c.bf16 %v2855, %v2805
        %v2858 = vpack.c.bf16 %v2856, %v2806
        %v2859 = vld [vmem:[#allocation10] sm:$0xff]
        %v2860 = vld [vmem:[#allocation10 + $0x8] sm:$0xff]
        %v2861 = vld [vmem:[#allocation10 + $0x10] sm:$0xff]
        %v2862 = vld [vmem:[#allocation10 + $0x18] sm:$0xff]
        %v2863 = vld [vmem:[#allocation10 + $0x20] sm:$0xff]
        %v2864 = vld [vmem:[#allocation10 + $0x28] sm:$0xff]
        %v2865 = vld [vmem:[#allocation10 + $0x30] sm:$0xff]
        %v2866 = vld [vmem:[#allocation10 + $0x38] sm:$0xff]
        %v2867 = vld [vmem:[#allocation10 + $0x40] sm:$0xff]
        %v2868 = vld [vmem:[#allocation10 + $0x48] sm:$0xff]
        %v2869 = vld [vmem:[#allocation10 + $0x50] sm:$0xff]
        %v2870 = vld [vmem:[#allocation10 + $0x58] sm:$0xff]
        %v2871 = vld [vmem:[#allocation10 + $0x60] sm:$0xff]
        %v2872 = vld [vmem:[#allocation10 + $0x68] sm:$0xff]
        %v2873 = vld [vmem:[#allocation10 + $0x70] sm:$0xff]
        %v2874 = vld [vmem:[#allocation10 + $0x78] sm:$0xff]
        %v2875 = vld [vmem:[#allocation10 + $0x80] sm:$0xff]
        %v2876 = vld [vmem:[#allocation10 + $0x88] sm:$0xff]
        %v2877 = vld [vmem:[#allocation10 + $0x90] sm:$0xff]
        %v2878 = vld [vmem:[#allocation10 + $0x98] sm:$0xff]
        %v2879 = vld [vmem:[#allocation10 + $0xa0] sm:$0xff]
        %v2880 = vld [vmem:[#allocation10 + $0xa8] sm:$0xff]
        %v2881 = vld [vmem:[#allocation10 + $0xb0] sm:$0xff]
        %v2882 = vld [vmem:[#allocation10 + $0xb8] sm:$0xff]
        %v2883 = vld [vmem:[#allocation10 + $0xc0] sm:$0xff]
        %v2884 = vld [vmem:[#allocation10 + $0xc8] sm:$0xff]
        %v2885 = vld [vmem:[#allocation10 + $0xd0] sm:$0xff]
        %v2886 = vld [vmem:[#allocation10 + $0xd8] sm:$0xff]
        %v2887 = vld [vmem:[#allocation10 + $0xe0] sm:$0xff]
        %v2888 = vld [vmem:[#allocation10 + $0xe8] sm:$0xff]
        %v2889 = vld [vmem:[#allocation10 + $0xf0] sm:$0xff]
        %v2890 = vld [vmem:[#allocation10 + $0xf8] sm:$0xff]
        %v2923 = vunpack.c.l.b16 %v2859
        %v2924 = vunpack.c.h.b16 %v2859
        %v2925 = vunpack.c.l.b16 %v2860
        %v2926 = vunpack.c.h.b16 %v2860
        %v2927 = vunpack.c.l.b16 %v2861
        %v2928 = vunpack.c.h.b16 %v2861
        %v2929 = vunpack.c.l.b16 %v2862
        %v2930 = vunpack.c.h.b16 %v2862
        %v2931 = vunpack.c.l.b16 %v2863
        %v2932 = vunpack.c.h.b16 %v2863
        %v2933 = vunpack.c.l.b16 %v2864
        %v2934 = vunpack.c.h.b16 %v2864
        %v2935 = vunpack.c.l.b16 %v2865
        %v2936 = vunpack.c.h.b16 %v2865
        %v2937 = vunpack.c.l.b16 %v2866
        %v2938 = vunpack.c.h.b16 %v2866
        %v2939 = vunpack.c.l.b16 %v2867
        %v2940 = vunpack.c.h.b16 %v2867
        %v2941 = vunpack.c.l.b16 %v2868
        %v2942 = vunpack.c.h.b16 %v2868
        %v2943 = vunpack.c.l.b16 %v2869
        %v2944 = vunpack.c.h.b16 %v2869
        %v2945 = vunpack.c.l.b16 %v2870
        %v2946 = vunpack.c.h.b16 %v2870
        %v2947 = vunpack.c.l.b16 %v2871
        %v2948 = vunpack.c.h.b16 %v2871
        %v2949 = vunpack.c.l.b16 %v2872
        %v2950 = vunpack.c.h.b16 %v2872
        %v2951 = vunpack.c.l.b16 %v2873
        %v2952 = vunpack.c.h.b16 %v2873
        %v2953 = vunpack.c.l.b16 %v2874
        %v2954 = vunpack.c.h.b16 %v2874
        %v2955 = vunpack.c.l.b16 %v2875
        %v2956 = vunpack.c.h.b16 %v2875
        %v2957 = vunpack.c.l.b16 %v2876
        %v2958 = vunpack.c.h.b16 %v2876
        %v2959 = vunpack.c.l.b16 %v2877
        %v2960 = vunpack.c.h.b16 %v2877
        %v2961 = vunpack.c.l.b16 %v2878
        %v2962 = vunpack.c.h.b16 %v2878
        %v2963 = vunpack.c.l.b16 %v2879
        %v2964 = vunpack.c.h.b16 %v2879
        %v2965 = vunpack.c.l.b16 %v2880
        %v2966 = vunpack.c.h.b16 %v2880
        %v2967 = vunpack.c.l.b16 %v2881
        %v2968 = vunpack.c.h.b16 %v2881
        %v2969 = vunpack.c.l.b16 %v2882
        %v2970 = vunpack.c.h.b16 %v2882
        %v2971 = vunpack.c.l.b16 %v2883
        %v2972 = vunpack.c.h.b16 %v2883
        %v2973 = vunpack.c.l.b16 %v2884
        %v2974 = vunpack.c.h.b16 %v2884
        %v2975 = vunpack.c.l.b16 %v2885
        %v2976 = vunpack.c.h.b16 %v2885
        %v2977 = vunpack.c.l.b16 %v2886
        %v2978 = vunpack.c.h.b16 %v2886
        %v2979 = vunpack.c.l.b16 %v2887
        %v2980 = vunpack.c.h.b16 %v2887
        %v2981 = vunpack.c.l.b16 %v2888
        %v2982 = vunpack.c.h.b16 %v2888
        %v2983 = vunpack.c.l.b16 %v2889
        %v2984 = vunpack.c.h.b16 %v2889
        %v2985 = vunpack.c.l.b16 %v2890
        %v2986 = vunpack.c.h.b16 %v2890
        %v2987 = vpack.c.b16 %v2925, %v2923
        %v2988 = vpack.c.b16 %v2926, %v2924
        %v2989 = vpack.c.b16 %v2929, %v2927
        %v2990 = vpack.c.b16 %v2930, %v2928
        %v2991 = vpack.c.b16 %v2933, %v2931
        %v2992 = vpack.c.b16 %v2934, %v2932
        %v2993 = vpack.c.b16 %v2937, %v2935
        %v2994 = vpack.c.b16 %v2938, %v2936
        %v2995 = vpack.c.b16 %v2941, %v2939
        %v2996 = vpack.c.b16 %v2942, %v2940
        %v2997 = vpack.c.b16 %v2945, %v2943
        %v2998 = vpack.c.b16 %v2946, %v2944
        %v2999 = vpack.c.b16 %v2949, %v2947
        %v3000 = vpack.c.b16 %v2950, %v2948
        %v3001 = vpack.c.b16 %v2953, %v2951
        %v3002 = vpack.c.b16 %v2954, %v2952
        %v3003 = vpack.c.b16 %v2957, %v2955
        %v3004 = vpack.c.b16 %v2958, %v2956
        %v3005 = vpack.c.b16 %v2961, %v2959
        %v3006 = vpack.c.b16 %v2962, %v2960
        %v3007 = vpack.c.b16 %v2965, %v2963
        %v3008 = vpack.c.b16 %v2966, %v2964
        %v3009 = vpack.c.b16 %v2969, %v2967
        %v3010 = vpack.c.b16 %v2970, %v2968
        %v3011 = vpack.c.b16 %v2973, %v2971
        %v3012 = vpack.c.b16 %v2974, %v2972
        %v3013 = vpack.c.b16 %v2977, %v2975
        %v3014 = vpack.c.b16 %v2978, %v2976
        %v3015 = vpack.c.b16 %v2981, %v2979
        %v3016 = vpack.c.b16 %v2982, %v2980
        %v3017 = vpack.c.b16 %v2985, %v2983
        %v3018 = vpack.c.b16 %v2986, %v2984
        %3051 = vmatprep.subr.bf16.mxu0 %v3002
        %3052 = vmatpush1.bf16.msra.mxu0 %v3001
        %3053 = vmatprep.subr.bf16.mxu0 %v3000
        %3054 = vmatpush1.bf16.msra.mxu0 %v2999
        %3055 = vmatprep.subr.bf16.mxu0 %v2998
        %3056 = vmatpush1.bf16.msra.mxu0 %v2997
        %3057 = vmatprep.subr.bf16.mxu0 %v2996
        %3058 = vmatpush1.bf16.msra.mxu0 %v2995
        %3059 = vmatprep.subr.bf16.mxu0 %v2994
        %3060 = vmatpush1.bf16.msra.mxu0 %v2993
        %3061 = vmatprep.subr.bf16.mxu0 %v2992
        %3062 = vmatpush1.bf16.msra.mxu0 %v2991
        %3063 = vmatprep.subr.bf16.mxu0 %v2990
        %3064 = vmatpush1.bf16.msra.mxu0 %v2989
        %3065 = vmatprep.subr.bf16.mxu0 %v2988
        %3066 = vmatpush1.bf16.msra.mxu0 %v2987
        %3067 = vmatprep.subr.bf16.mxu0 %v3018
        %3068 = vmatpush2.bf16.msra.mxu0 %v3017
        %3069 = vmatprep.subr.bf16.mxu0 %v3016
        %3070 = vmatpush2.bf16.msra.mxu0 %v3015
        %3071 = vmatprep.subr.bf16.mxu0 %v3014
        %3072 = vmatpush2.bf16.msra.mxu0 %v3013
        %3073 = vmatprep.subr.bf16.mxu0 %v3012
        %3074 = vmatpush2.bf16.msra.mxu0 %v3011
        %3075 = vmatprep.subr.bf16.mxu0 %v3010
        %3076 = vmatpush2.bf16.msra.mxu0 %v3009
        %3077 = vmatprep.subr.bf16.mxu0 %v3008
        %3078 = vmatpush2.bf16.msra.mxu0 %v3007
        %3079 = vmatprep.subr.bf16.mxu0 %v3006
        %3080 = vmatpush2.bf16.msra.mxu0 %v3005
        %3081 = vmatprep.subr.bf16.mxu0 %v3004
        %3082 = vmatpush2.bf16.msra.mxu0 %v3003
        %3083 = vmatprep.mubr.bf16.mxu0 %v2858
        %3084 = vmatmul.mubr.bf16.gmra.mxu0 %v2857
        %v3085 = vpop.f32.mrf.mxu0
        %v3086 = vadd.f32 0.0, %v3085
        %v3087 = vpop.f32.mrf.mxu0
        %v3088 = vadd.f32 0.0, %v3087
        %v3089 = vpop.f32.mrf.mxu0
        %v3090 = vadd.f32 0.0, %v3089
        %v3091 = vpop.f32.mrf.mxu0
        %v3092 = vadd.f32 0.0, %v3091
        %3093 = vdwg.mxu0
        %v3094 = vadd.f32 %v547, %v3086
        %v3095 = vadd.f32 %v548, %v3088
        %v3096 = vadd.f32 %v549, %v3090
        %v3097 = vadd.f32 %v550, %v3092
        %v3098 = vld [vmem:[%s9] sm:$0x3]
        %v3099 = vld [vmem:[%s10] sm:$0x3]
        %v3100 = vadd.f32 %v3094, %v3095
        %3101 = vadd.xlane.f32.xlu0 %v3100
        %v3102 = vpop.xlane.xlu0 %3101
        %v3103 = vadd.f32 %v3096, %v3097
        %3104 = vadd.xlane.f32.xlu0 %v3103
        %v3105 = vpop.xlane.xlu0 %3104
        %v3106 = vrcp.pop 256.0
        %v3107 = vmul.f32 %v3102, %v3106
        %v3108 = vmul.f32 %v3105, %v3106
        %v3109 = vsub.f32 %v3094, %v3107
        %v3110 = vsub.f32 %v3095, %v3107
        %v3111 = vsub.f32 %v3096, %v3108
        %v3112 = vsub.f32 %v3097, %v3108
        %v3113 = vmul.f32 %v3109, %v3109
        %v3114 = vmul.f32 %v3110, %v3110
        %v3115 = vmul.f32 %v3111, %v3111
        %v3116 = vmul.f32 %v3112, %v3112
        %v3117 = vadd.f32 %v3113, %v3114
        %3118 = vadd.xlane.f32.xlu0 %v3117
        %v3119 = vpop.xlane.xlu0 %3118
        %v3120 = vadd.f32 %v3115, %v3116
        %3121 = vadd.xlane.f32.xlu0 %v3120
        %v3122 = vpop.xlane.xlu0 %3121
        %v3123 = vmul.f32 %v3119, %v3106
        %v3124 = vmul.f32 %v3122, %v3106
        %v3125 = vadd.f32 %v3123, 1e-05
        %v3126 = vadd.f32 %v3124, 1e-05
        %v3127 = vrsqrt.pop %v3125
        %v3128 = vrsqrt.pop %v3126
        %v3129 = vmul.f32 %v3109, %v3127
        %v3130 = vmul.f32 %v3110, %v3127
        %v3131 = vmul.f32 %v3111, %v3128
        %v3132 = vmul.f32 %v3112, %v3128
        %v3134 = vlaneseq
        %v3135 = vshrl.u32 %v3134, 7
        %v3136 = vsub.s32 0, %v3135
        %v3137 = vrot.slane %v3098, %v3136
        %v3138 = vlaneseq
        %v3139 = vshrl.u32 %v3138, 7
        %v3140 = vsub.s32 1, %v3139
        %v3141 = vrot.slane %v3098, %v3140
        %v3144 = vmul.f32 %v3129, %v3137
        %v3145 = vmul.f32 %v3130, %v3141
        %v3146 = vmul.f32 %v3131, %v3137
        %v3147 = vmul.f32 %v3132, %v3141
        %v3149 = vlaneseq
        %v3150 = vshrl.u32 %v3149, 7
        %v3151 = vsub.s32 0, %v3150
        %v3152 = vrot.slane %v3099, %v3151
        %v3153 = vlaneseq
        %v3154 = vshrl.u32 %v3153, 7
        %v3155 = vsub.s32 1, %v3154
        %v3156 = vrot.slane %v3099, %v3155
        %v3159 = vadd.f32 %v3144, %v3152
        %v3160 = vadd.f32 %v3145, %v3156
        %v3161 = vadd.f32 %v3146, %v3152
        %v3162 = vadd.f32 %v3147, %v3156
        %v3163 = vpack.c.bf16 %v3161, %v3159
        %v3164 = vpack.c.bf16 %v3162, %v3160
        %v3165 = vld [vmem:[#allocation11] sm:$0xff]
        %v3166 = vld [vmem:[#allocation11 + $0x8] sm:$0xff]
        %v3167 = vld [vmem:[#allocation11 + $0x10] sm:$0xff]
        %v3168 = vld [vmem:[#allocation11 + $0x18] sm:$0xff]
        %v3169 = vld [vmem:[#allocation11 + $0x20] sm:$0xff]
        %v3170 = vld [vmem:[#allocation11 + $0x28] sm:$0xff]
        %v3171 = vld [vmem:[#allocation11 + $0x30] sm:$0xff]
        %v3172 = vld [vmem:[#allocation11 + $0x38] sm:$0xff]
        %v3173 = vld [vmem:[#allocation11 + $0x40] sm:$0xff]
        %v3174 = vld [vmem:[#allocation11 + $0x48] sm:$0xff]
        %v3175 = vld [vmem:[#allocation11 + $0x50] sm:$0xff]
        %v3176 = vld [vmem:[#allocation11 + $0x58] sm:$0xff]
        %v3177 = vld [vmem:[#allocation11 + $0x60] sm:$0xff]
        %v3178 = vld [vmem:[#allocation11 + $0x68] sm:$0xff]
        %v3179 = vld [vmem:[#allocation11 + $0x70] sm:$0xff]
        %v3180 = vld [vmem:[#allocation11 + $0x78] sm:$0xff]
        %v3181 = vld [vmem:[#allocation11 + $0x80] sm:$0xff]
        %v3182 = vld [vmem:[#allocation11 + $0x88] sm:$0xff]
        %v3183 = vld [vmem:[#allocation11 + $0x90] sm:$0xff]
        %v3184 = vld [vmem:[#allocation11 + $0x98] sm:$0xff]
        %v3185 = vld [vmem:[#allocation11 + $0xa0] sm:$0xff]
        %v3186 = vld [vmem:[#allocation11 + $0xa8] sm:$0xff]
        %v3187 = vld [vmem:[#allocation11 + $0xb0] sm:$0xff]
        %v3188 = vld [vmem:[#allocation11 + $0xb8] sm:$0xff]
        %v3189 = vld [vmem:[#allocation11 + $0xc0] sm:$0xff]
        %v3190 = vld [vmem:[#allocation11 + $0xc8] sm:$0xff]
        %v3191 = vld [vmem:[#allocation11 + $0xd0] sm:$0xff]
        %v3192 = vld [vmem:[#allocation11 + $0xd8] sm:$0xff]
        %v3193 = vld [vmem:[#allocation11 + $0xe0] sm:$0xff]
        %v3194 = vld [vmem:[#allocation11 + $0xe8] sm:$0xff]
        %v3195 = vld [vmem:[#allocation11 + $0xf0] sm:$0xff]
        %v3196 = vld [vmem:[#allocation11 + $0xf8] sm:$0xff]
        %v3197 = vld [vmem:[#allocation11 + $0x100] sm:$0xff]
        %v3198 = vld [vmem:[#allocation11 + $0x108] sm:$0xff]
        %v3199 = vld [vmem:[#allocation11 + $0x110] sm:$0xff]
        %v3200 = vld [vmem:[#allocation11 + $0x118] sm:$0xff]
        %v3201 = vld [vmem:[#allocation11 + $0x120] sm:$0xff]
        %v3202 = vld [vmem:[#allocation11 + $0x128] sm:$0xff]
        %v3203 = vld [vmem:[#allocation11 + $0x130] sm:$0xff]
        %v3204 = vld [vmem:[#allocation11 + $0x138] sm:$0xff]
        %v3205 = vld [vmem:[#allocation11 + $0x140] sm:$0xff]
        %v3206 = vld [vmem:[#allocation11 + $0x148] sm:$0xff]
        %v3207 = vld [vmem:[#allocation11 + $0x150] sm:$0xff]
        %v3208 = vld [vmem:[#allocation11 + $0x158] sm:$0xff]
        %v3209 = vld [vmem:[#allocation11 + $0x160] sm:$0xff]
        %v3210 = vld [vmem:[#allocation11 + $0x168] sm:$0xff]
        %v3211 = vld [vmem:[#allocation11 + $0x170] sm:$0xff]
        %v3212 = vld [vmem:[#allocation11 + $0x178] sm:$0xff]
        %v3213 = vld [vmem:[#allocation11 + $0x180] sm:$0xff]
        %v3214 = vld [vmem:[#allocation11 + $0x188] sm:$0xff]
        %v3215 = vld [vmem:[#allocation11 + $0x190] sm:$0xff]
        %v3216 = vld [vmem:[#allocation11 + $0x198] sm:$0xff]
        %v3217 = vld [vmem:[#allocation11 + $0x1a0] sm:$0xff]
        %v3218 = vld [vmem:[#allocation11 + $0x1a8] sm:$0xff]
        %v3219 = vld [vmem:[#allocation11 + $0x1b0] sm:$0xff]
        %v3220 = vld [vmem:[#allocation11 + $0x1b8] sm:$0xff]
        %v3221 = vld [vmem:[#allocation11 + $0x1c0] sm:$0xff]
        %v3222 = vld [vmem:[#allocation11 + $0x1c8] sm:$0xff]
        %v3223 = vld [vmem:[#allocation11 + $0x1d0] sm:$0xff]
        %v3224 = vld [vmem:[#allocation11 + $0x1d8] sm:$0xff]
        %v3225 = vld [vmem:[#allocation11 + $0x1e0] sm:$0xff]
        %v3226 = vld [vmem:[#allocation11 + $0x1e8] sm:$0xff]
        %v3227 = vld [vmem:[#allocation11 + $0x1f0] sm:$0xff]
        %v3228 = vld [vmem:[#allocation11 + $0x1f8] sm:$0xff]
        %v3229 = vld [vmem:[%s6] sm:$0xf]
        %v3231 = vlaneseq
        %v3232 = vshrl.u32 %v3231, 7
        %v3233 = vsub.s32 0, %v3232
        %v3234 = vrot.slane %v3229, %v3233
        %v3235 = vlaneseq
        %v3236 = vshrl.u32 %v3235, 7
        %v3237 = vsub.s32 1, %v3236
        %v3238 = vrot.slane %v3229, %v3237
        %v3239 = vlaneseq
        %v3240 = vshrl.u32 %v3239, 7
        %v3241 = vsub.s32 2, %v3240
        %v3242 = vrot.slane %v3229, %v3241
        %v3243 = vlaneseq
        %v3244 = vshrl.u32 %v3243, 7
        %v3245 = vsub.s32 3, %v3244
        %v3246 = vrot.slane %v3229, %v3245
        %v3315 = vunpack.c.l.b16 %v3165
        %v3316 = vunpack.c.h.b16 %v3165
        %v3317 = vunpack.c.l.b16 %v3166
        %v3318 = vunpack.c.h.b16 %v3166
        %v3319 = vunpack.c.l.b16 %v3167
        %v3320 = vunpack.c.h.b16 %v3167
        %v3321 = vunpack.c.l.b16 %v3168
        %v3322 = vunpack.c.h.b16 %v3168
        %v3323 = vunpack.c.l.b16 %v3169
        %v3324 = vunpack.c.h.b16 %v3169
        %v3325 = vunpack.c.l.b16 %v3170
        %v3326 = vunpack.c.h.b16 %v3170
        %v3327 = vunpack.c.l.b16 %v3171
        %v3328 = vunpack.c.h.b16 %v3171
        %v3329 = vunpack.c.l.b16 %v3172
        %v3330 = vunpack.c.h.b16 %v3172
        %v3331 = vunpack.c.l.b16 %v3173
        %v3332 = vunpack.c.h.b16 %v3173
        %v3333 = vunpack.c.l.b16 %v3174
        %v3334 = vunpack.c.h.b16 %v3174
        %v3335 = vunpack.c.l.b16 %v3175
        %v3336 = vunpack.c.h.b16 %v3175
        %v3337 = vunpack.c.l.b16 %v3176
        %v3338 = vunpack.c.h.b16 %v3176
        %v3339 = vunpack.c.l.b16 %v3177
        %v3340 = vunpack.c.h.b16 %v3177
        %v3341 = vunpack.c.l.b16 %v3178
        %v3342 = vunpack.c.h.b16 %v3178
        %v3343 = vunpack.c.l.b16 %v3179
        %v3344 = vunpack.c.h.b16 %v3179
        %v3345 = vunpack.c.l.b16 %v3180
        %v3346 = vunpack.c.h.b16 %v3180
        %v3347 = vunpack.c.l.b16 %v3181
        %v3348 = vunpack.c.h.b16 %v3181
        %v3349 = vunpack.c.l.b16 %v3182
        %v3350 = vunpack.c.h.b16 %v3182
        %v3351 = vunpack.c.l.b16 %v3183
        %v3352 = vunpack.c.h.b16 %v3183
        %v3353 = vunpack.c.l.b16 %v3184
        %v3354 = vunpack.c.h.b16 %v3184
        %v3355 = vunpack.c.l.b16 %v3185
        %v3356 = vunpack.c.h.b16 %v3185
        %v3357 = vunpack.c.l.b16 %v3186
        %v3358 = vunpack.c.h.b16 %v3186
        %v3359 = vunpack.c.l.b16 %v3187
        %v3360 = vunpack.c.h.b16 %v3187
        %v3361 = vunpack.c.l.b16 %v3188
        %v3362 = vunpack.c.h.b16 %v3188
        %v3363 = vunpack.c.l.b16 %v3189
        %v3364 = vunpack.c.h.b16 %v3189
        %v3365 = vunpack.c.l.b16 %v3190
        %v3366 = vunpack.c.h.b16 %v3190
        %v3367 = vunpack.c.l.b16 %v3191
        %v3368 = vunpack.c.h.b16 %v3191
        %v3369 = vunpack.c.l.b16 %v3192
        %v3370 = vunpack.c.h.b16 %v3192
        %v3371 = vunpack.c.l.b16 %v3193
        %v3372 = vunpack.c.h.b16 %v3193
        %v3373 = vunpack.c.l.b16 %v3194
        %v3374 = vunpack.c.h.b16 %v3194
        %v3375 = vunpack.c.l.b16 %v3195
        %v3376 = vunpack.c.h.b16 %v3195
        %v3377 = vunpack.c.l.b16 %v3196
        %v3378 = vunpack.c.h.b16 %v3196
        %v3379 = vunpack.c.l.b16 %v3197
        %v3380 = vunpack.c.h.b16 %v3197
        %v3381 = vunpack.c.l.b16 %v3198
        %v3382 = vunpack.c.h.b16 %v3198
        %v3383 = vunpack.c.l.b16 %v3199
        %v3384 = vunpack.c.h.b16 %v3199
        %v3385 = vunpack.c.l.b16 %v3200
        %v3386 = vunpack.c.h.b16 %v3200
        %v3387 = vunpack.c.l.b16 %v3201
        %v3388 = vunpack.c.h.b16 %v3201
        %v3389 = vunpack.c.l.b16 %v3202
        %v3390 = vunpack.c.h.b16 %v3202
        %v3391 = vunpack.c.l.b16 %v3203
        %v3392 = vunpack.c.h.b16 %v3203
        %v3393 = vunpack.c.l.b16 %v3204
        %v3394 = vunpack.c.h.b16 %v3204
        %v3395 = vunpack.c.l.b16 %v3205
        %v3396 = vunpack.c.h.b16 %v3205
        %v3397 = vunpack.c.l.b16 %v3206
        %v3398 = vunpack.c.h.b16 %v3206
        %v3399 = vunpack.c.l.b16 %v3207
        %v3400 = vunpack.c.h.b16 %v3207
        %v3401 = vunpack.c.l.b16 %v3208
        %v3402 = vunpack.c.h.b16 %v3208
        %v3403 = vunpack.c.l.b16 %v3209
        %v3404 = vunpack.c.h.b16 %v3209
        %v3405 = vunpack.c.l.b16 %v3210
        %v3406 = vunpack.c.h.b16 %v3210
        %v3407 = vunpack.c.l.b16 %v3211
        %v3408 = vunpack.c.h.b16 %v3211
        %v3409 = vunpack.c.l.b16 %v3212
        %v3410 = vunpack.c.h.b16 %v3212
        %v3411 = vunpack.c.l.b16 %v3213
        %v3412 = vunpack.c.h.b16 %v3213
        %v3413 = vunpack.c.l.b16 %v3214
        %v3414 = vunpack.c.h.b16 %v3214
        %v3415 = vunpack.c.l.b16 %v3215
        %v3416 = vunpack.c.h.b16 %v3215
        %v3417 = vunpack.c.l.b16 %v3216
        %v3418 = vunpack.c.h.b16 %v3216
        %v3419 = vunpack.c.l.b16 %v3217
        %v3420 = vunpack.c.h.b16 %v3217
        %v3421 = vunpack.c.l.b16 %v3218
        %v3422 = vunpack.c.h.b16 %v3218
        %v3423 = vunpack.c.l.b16 %v3219
        %v3424 = vunpack.c.h.b16 %v3219
        %v3425 = vunpack.c.l.b16 %v3220
        %v3426 = vunpack.c.h.b16 %v3220
        %v3427 = vunpack.c.l.b16 %v3221
        %v3428 = vunpack.c.h.b16 %v3221
        %v3429 = vunpack.c.l.b16 %v3222
        %v3430 = vunpack.c.h.b16 %v3222
        %v3431 = vunpack.c.l.b16 %v3223
        %v3432 = vunpack.c.h.b16 %v3223
        %v3433 = vunpack.c.l.b16 %v3224
        %v3434 = vunpack.c.h.b16 %v3224
        %v3435 = vunpack.c.l.b16 %v3225
        %v3436 = vunpack.c.h.b16 %v3225
        %v3437 = vunpack.c.l.b16 %v3226
        %v3438 = vunpack.c.h.b16 %v3226
        %v3439 = vunpack.c.l.b16 %v3227
        %v3440 = vunpack.c.h.b16 %v3227
        %v3441 = vunpack.c.l.b16 %v3228
        %v3442 = vunpack.c.h.b16 %v3228
        %v3443 = vpack.c.b16 %v3319, %v3315
        %v3444 = vpack.c.b16 %v3320, %v3316
        %v3445 = vpack.c.b16 %v3321, %v3317
        %v3446 = vpack.c.b16 %v3322, %v3318
        %v3447 = vpack.c.b16 %v3327, %v3323
        %v3448 = vpack.c.b16 %v3328, %v3324
        %v3449 = vpack.c.b16 %v3329, %v3325
        %v3450 = vpack.c.b16 %v3330, %v3326
        %v3451 = vpack.c.b16 %v3335, %v3331
        %v3452 = vpack.c.b16 %v3336, %v3332
        %v3453 = vpack.c.b16 %v3337, %v3333
        %v3454 = vpack.c.b16 %v3338, %v3334
        %v3455 = vpack.c.b16 %v3343, %v3339
        %v3456 = vpack.c.b16 %v3344, %v3340
        %v3457 = vpack.c.b16 %v3345, %v3341
        %v3458 = vpack.c.b16 %v3346, %v3342
        %v3459 = vpack.c.b16 %v3351, %v3347
        %v3460 = vpack.c.b16 %v3352, %v3348
        %v3461 = vpack.c.b16 %v3353, %v3349
        %v3462 = vpack.c.b16 %v3354, %v3350
        %v3463 = vpack.c.b16 %v3359, %v3355
        %v3464 = vpack.c.b16 %v3360, %v3356
        %v3465 = vpack.c.b16 %v3361, %v3357
        %v3466 = vpack.c.b16 %v3362, %v3358
        %v3467 = vpack.c.b16 %v3367, %v3363
        %v3468 = vpack.c.b16 %v3368, %v3364
        %v3469 = vpack.c.b16 %v3369, %v3365
        %v3470 = vpack.c.b16 %v3370, %v3366
        %v3471 = vpack.c.b16 %v3375, %v3371
        %v3472 = vpack.c.b16 %v3376, %v3372
        %v3473 = vpack.c.b16 %v3377, %v3373
        %v3474 = vpack.c.b16 %v3378, %v3374
        %v3475 = vpack.c.b16 %v3383, %v3379
        %v3476 = vpack.c.b16 %v3384, %v3380
        %v3477 = vpack.c.b16 %v3385, %v3381
        %v3478 = vpack.c.b16 %v3386, %v3382
        %v3479 = vpack.c.b16 %v3391, %v3387
        %v3480 = vpack.c.b16 %v3392, %v3388
        %v3481 = vpack.c.b16 %v3393, %v3389
        %v3482 = vpack.c.b16 %v3394, %v3390
        %v3483 = vpack.c.b16 %v3399, %v3395
        %v3484 = vpack.c.b16 %v3400, %v3396
        %v3485 = vpack.c.b16 %v3401, %v3397
        %v3486 = vpack.c.b16 %v3402, %v3398
        %v3487 = vpack.c.b16 %v3407, %v3403
        %v3488 = vpack.c.b16 %v3408, %v3404
        %v3489 = vpack.c.b16 %v3409, %v3405
        %v3490 = vpack.c.b16 %v3410, %v3406
        %v3491 = vpack.c.b16 %v3415, %v3411
        %v3492 = vpack.c.b16 %v3416, %v3412
        %v3493 = vpack.c.b16 %v3417, %v3413
        %v3494 = vpack.c.b16 %v3418, %v3414
        %v3495 = vpack.c.b16 %v3423, %v3419
        %v3496 = vpack.c.b16 %v3424, %v3420
        %v3497 = vpack.c.b16 %v3425, %v3421
        %v3498 = vpack.c.b16 %v3426, %v3422
        %v3499 = vpack.c.b16 %v3431, %v3427
        %v3500 = vpack.c.b16 %v3432, %v3428
        %v3501 = vpack.c.b16 %v3433, %v3429
        %v3502 = vpack.c.b16 %v3434, %v3430
        %v3503 = vpack.c.b16 %v3439, %v3435
        %v3504 = vpack.c.b16 %v3440, %v3436
        %v3505 = vpack.c.b16 %v3441, %v3437
        %v3506 = vpack.c.b16 %v3442, %v3438
        %3571 = vmatprep.subr.bf16.mxu0 %v3472
        %3572 = vmatpush1.bf16.msra.mxu0 %v3471
        %3573 = vmatprep.subr.bf16.mxu0 %v3468
        %3574 = vmatpush1.bf16.msra.mxu0 %v3467
        %3575 = vmatprep.subr.bf16.mxu0 %v3464
        %3576 = vmatpush1.bf16.msra.mxu0 %v3463
        %3577 = vmatprep.subr.bf16.mxu0 %v3460
        %3578 = vmatpush1.bf16.msra.mxu0 %v3459
        %3579 = vmatprep.subr.bf16.mxu0 %v3456
        %3580 = vmatpush1.bf16.msra.mxu0 %v3455
        %3581 = vmatprep.subr.bf16.mxu0 %v3452
        %3582 = vmatpush1.bf16.msra.mxu0 %v3451
        %3583 = vmatprep.subr.bf16.mxu0 %v3448
        %3584 = vmatpush1.bf16.msra.mxu0 %v3447
        %3585 = vmatprep.subr.bf16.mxu0 %v3444
        %3586 = vmatpush1.bf16.msra.mxu0 %v3443
        %3587 = vmatprep.subr.bf16.mxu0 %v3504
        %3588 = vmatpush2.bf16.msra.mxu0 %v3503
        %3589 = vmatprep.subr.bf16.mxu0 %v3500
        %3590 = vmatpush2.bf16.msra.mxu0 %v3499
        %3591 = vmatprep.subr.bf16.mxu0 %v3496
        %3592 = vmatpush2.bf16.msra.mxu0 %v3495
        %3593 = vmatprep.subr.bf16.mxu0 %v3492
        %3594 = vmatpush2.bf16.msra.mxu0 %v3491
        %3595 = vmatprep.subr.bf16.mxu0 %v3488
        %3596 = vmatpush2.bf16.msra.mxu0 %v3487
        %3597 = vmatprep.subr.bf16.mxu0 %v3484
        %3598 = vmatpush2.bf16.msra.mxu0 %v3483
        %3599 = vmatprep.subr.bf16.mxu0 %v3480
        %3600 = vmatpush2.bf16.msra.mxu0 %v3479
        %3601 = vmatprep.subr.bf16.mxu0 %v3476
        %3602 = vmatpush2.bf16.msra.mxu0 %v3475
        %3603 = vmatprep.mubr.bf16.mxu0 %v3164
        %3604 = vmatmul.mubr.bf16.gmra.mxu0 %v3163
        %v3605 = vpop.f32.mrf.mxu0
        %v3606 = vadd.f32 %v3234, %v3605
        %v3607 = vpop.f32.mrf.mxu0
        %v3608 = vadd.f32 %v3238, %v3607
        %v3609 = vpop.f32.mrf.mxu0
        %v3610 = vadd.f32 %v3234, %v3609
        %v3611 = vpop.f32.mrf.mxu0
        %v3612 = vadd.f32 %v3238, %v3611
        %3613 = vdwg.mxu0
        %3614 = vmatprep.subr.bf16.mxu0 %v3474
        %3615 = vmatpush1.bf16.msra.mxu0 %v3473
        %3616 = vmatprep.subr.bf16.mxu0 %v3470
        %3617 = vmatpush1.bf16.msra.mxu0 %v3469
        %3618 = vmatprep.subr.bf16.mxu0 %v3466
        %3619 = vmatpush1.bf16.msra.mxu0 %v3465
        %3620 = vmatprep.subr.bf16.mxu0 %v3462
        %3621 = vmatpush1.bf16.msra.mxu0 %v3461
        %3622 = vmatprep.subr.bf16.mxu0 %v3458
        %3623 = vmatpush1.bf16.msra.mxu0 %v3457
        %3624 = vmatprep.subr.bf16.mxu0 %v3454
        %3625 = vmatpush1.bf16.msra.mxu0 %v3453
        %3626 = vmatprep.subr.bf16.mxu0 %v3450
        %3627 = vmatpush1.bf16.msra.mxu0 %v3449
        %3628 = vmatprep.subr.bf16.mxu0 %v3446
        %3629 = vmatpush1.bf16.msra.mxu0 %v3445
        %3630 = vmatprep.subr.bf16.mxu0 %v3506
        %3631 = vmatpush2.bf16.msra.mxu0 %v3505
        %3632 = vmatprep.subr.bf16.mxu0 %v3502
        %3633 = vmatpush2.bf16.msra.mxu0 %v3501
        %3634 = vmatprep.subr.bf16.mxu0 %v3498
        %3635 = vmatpush2.bf16.msra.mxu0 %v3497
        %3636 = vmatprep.subr.bf16.mxu0 %v3494
        %3637 = vmatpush2.bf16.msra.mxu0 %v3493
        %3638 = vmatprep.subr.bf16.mxu0 %v3490
        %3639 = vmatpush2.bf16.msra.mxu0 %v3489
        %3640 = vmatprep.subr.bf16.mxu0 %v3486
        %3641 = vmatpush2.bf16.msra.mxu0 %v3485
        %3642 = vmatprep.subr.bf16.mxu0 %v3482
        %3643 = vmatpush2.bf16.msra.mxu0 %v3481
        %3644 = vmatprep.subr.bf16.mxu0 %v3478
        %3645 = vmatpush2.bf16.msra.mxu0 %v3477
        %3646 = vmatprep.mubr.bf16.mxu0 %v3164
        %3647 = vmatmul.mubr.bf16.gmra.mxu0 %v3163
        %v3648 = vpop.f32.mrf.mxu0
        %v3649 = vadd.f32 %v3242, %v3648
        %v3650 = vpop.f32.mrf.mxu0
        %v3651 = vadd.f32 %v3246, %v3650
        %v3652 = vpop.f32.mrf.mxu0
        %v3653 = vadd.f32 %v3242, %v3652
        %v3654 = vpop.f32.mrf.mxu0
        %v3655 = vadd.f32 %v3246, %v3654
        %3656 = vdwg.mxu0
        %v3657 = vmax.f32 %v3606, 0.0
        %v3658 = vmax.f32 %v3608, 0.0
        %v3659 = vmax.f32 %v3649, 0.0
        %v3660 = vmax.f32 %v3651, 0.0
        %v3661 = vmax.f32 %v3610, 0.0
        %v3662 = vmax.f32 %v3612, 0.0
        %v3663 = vmax.f32 %v3653, 0.0
        %v3664 = vmax.f32 %v3655, 0.0
        %v3665 = vpack.c.bf16 %v3661, %v3657
        %v3666 = vpack.c.bf16 %v3662, %v3658
        %v3667 = vpack.c.bf16 %v3663, %v3659
        %v3668 = vpack.c.bf16 %v3664, %v3660
        %v3669 = vld [vmem:[#allocation13] sm:$0xff]
        %v3670 = vld [vmem:[#allocation13 + $0x8] sm:$0xff]
        %v3671 = vld [vmem:[#allocation13 + $0x10] sm:$0xff]
        %v3672 = vld [vmem:[#allocation13 + $0x18] sm:$0xff]
        %v3673 = vld [vmem:[#allocation13 + $0x20] sm:$0xff]
        %v3674 = vld [vmem:[#allocation13 + $0x28] sm:$0xff]
        %v3675 = vld [vmem:[#allocation13 + $0x30] sm:$0xff]
        %v3676 = vld [vmem:[#allocation13 + $0x38] sm:$0xff]
        %v3677 = vld [vmem:[#allocation13 + $0x40] sm:$0xff]
        %v3678 = vld [vmem:[#allocation13 + $0x48] sm:$0xff]
        %v3679 = vld [vmem:[#allocation13 + $0x50] sm:$0xff]
        %v3680 = vld [vmem:[#allocation13 + $0x58] sm:$0xff]
        %v3681 = vld [vmem:[#allocation13 + $0x60] sm:$0xff]
        %v3682 = vld [vmem:[#allocation13 + $0x68] sm:$0xff]
        %v3683 = vld [vmem:[#allocation13 + $0x70] sm:$0xff]
        %v3684 = vld [vmem:[#allocation13 + $0x78] sm:$0xff]
        %v3685 = vld [vmem:[#allocation13 + $0x80] sm:$0xff]
        %v3686 = vld [vmem:[#allocation13 + $0x88] sm:$0xff]
        %v3687 = vld [vmem:[#allocation13 + $0x90] sm:$0xff]
        %v3688 = vld [vmem:[#allocation13 + $0x98] sm:$0xff]
        %v3689 = vld [vmem:[#allocation13 + $0xa0] sm:$0xff]
        %v3690 = vld [vmem:[#allocation13 + $0xa8] sm:$0xff]
        %v3691 = vld [vmem:[#allocation13 + $0xb0] sm:$0xff]
        %v3692 = vld [vmem:[#allocation13 + $0xb8] sm:$0xff]
        %v3693 = vld [vmem:[#allocation13 + $0xc0] sm:$0xff]
        %v3694 = vld [vmem:[#allocation13 + $0xc8] sm:$0xff]
        %v3695 = vld [vmem:[#allocation13 + $0xd0] sm:$0xff]
        %v3696 = vld [vmem:[#allocation13 + $0xd8] sm:$0xff]
        %v3697 = vld [vmem:[#allocation13 + $0xe0] sm:$0xff]
        %v3698 = vld [vmem:[#allocation13 + $0xe8] sm:$0xff]
        %v3699 = vld [vmem:[#allocation13 + $0xf0] sm:$0xff]
        %v3700 = vld [vmem:[#allocation13 + $0xf8] sm:$0xff]
        %v3701 = vld [vmem:[#allocation13 + $0x100] sm:$0xff]
        %v3702 = vld [vmem:[#allocation13 + $0x108] sm:$0xff]
        %v3703 = vld [vmem:[#allocation13 + $0x110] sm:$0xff]
        %v3704 = vld [vmem:[#allocation13 + $0x118] sm:$0xff]
        %v3705 = vld [vmem:[#allocation13 + $0x120] sm:$0xff]
        %v3706 = vld [vmem:[#allocation13 + $0x128] sm:$0xff]
        %v3707 = vld [vmem:[#allocation13 + $0x130] sm:$0xff]
        %v3708 = vld [vmem:[#allocation13 + $0x138] sm:$0xff]
        %v3709 = vld [vmem:[#allocation13 + $0x140] sm:$0xff]
        %v3710 = vld [vmem:[#allocation13 + $0x148] sm:$0xff]
        %v3711 = vld [vmem:[#allocation13 + $0x150] sm:$0xff]
        %v3712 = vld [vmem:[#allocation13 + $0x158] sm:$0xff]
        %v3713 = vld [vmem:[#allocation13 + $0x160] sm:$0xff]
        %v3714 = vld [vmem:[#allocation13 + $0x168] sm:$0xff]
        %v3715 = vld [vmem:[#allocation13 + $0x170] sm:$0xff]
        %v3716 = vld [vmem:[#allocation13 + $0x178] sm:$0xff]
        %v3717 = vld [vmem:[#allocation13 + $0x180] sm:$0xff]
        %v3718 = vld [vmem:[#allocation13 + $0x188] sm:$0xff]
        %v3719 = vld [vmem:[#allocation13 + $0x190] sm:$0xff]
        %v3720 = vld [vmem:[#allocation13 + $0x198] sm:$0xff]
        %v3721 = vld [vmem:[#allocation13 + $0x1a0] sm:$0xff]
        %v3722 = vld [vmem:[#allocation13 + $0x1a8] sm:$0xff]
        %v3723 = vld [vmem:[#allocation13 + $0x1b0] sm:$0xff]
        %v3724 = vld [vmem:[#allocation13 + $0x1b8] sm:$0xff]
        %v3725 = vld [vmem:[#allocation13 + $0x1c0] sm:$0xff]
        %v3726 = vld [vmem:[#allocation13 + $0x1c8] sm:$0xff]
        %v3727 = vld [vmem:[#allocation13 + $0x1d0] sm:$0xff]
        %v3728 = vld [vmem:[#allocation13 + $0x1d8] sm:$0xff]
        %v3729 = vld [vmem:[#allocation13 + $0x1e0] sm:$0xff]
        %v3730 = vld [vmem:[#allocation13 + $0x1e8] sm:$0xff]
        %v3731 = vld [vmem:[#allocation13 + $0x1f0] sm:$0xff]
        %v3732 = vld [vmem:[#allocation13 + $0x1f8] sm:$0xff]
        %v3733 = vld [vmem:[%s8] sm:$0x3]
        %v3735 = vlaneseq
        %v3736 = vshrl.u32 %v3735, 7
        %v3737 = vsub.s32 0, %v3736
        %v3738 = vrot.slane %v3733, %v3737
        %v3739 = vlaneseq
        %v3740 = vshrl.u32 %v3739, 7
        %v3741 = vsub.s32 1, %v3740
        %v3742 = vrot.slane %v3733, %v3741
        %v3809 = vunpack.c.l.b16 %v3669
        %v3810 = vunpack.c.h.b16 %v3669
        %v3811 = vunpack.c.l.b16 %v3670
        %v3812 = vunpack.c.h.b16 %v3670
        %v3813 = vunpack.c.l.b16 %v3671
        %v3814 = vunpack.c.h.b16 %v3671
        %v3815 = vunpack.c.l.b16 %v3672
        %v3816 = vunpack.c.h.b16 %v3672
        %v3817 = vunpack.c.l.b16 %v3673
        %v3818 = vunpack.c.h.b16 %v3673
        %v3819 = vunpack.c.l.b16 %v3674
        %v3820 = vunpack.c.h.b16 %v3674
        %v3821 = vunpack.c.l.b16 %v3675
        %v3822 = vunpack.c.h.b16 %v3675
        %v3823 = vunpack.c.l.b16 %v3676
        %v3824 = vunpack.c.h.b16 %v3676
        %v3825 = vunpack.c.l.b16 %v3677
        %v3826 = vunpack.c.h.b16 %v3677
        %v3827 = vunpack.c.l.b16 %v3678
        %v3828 = vunpack.c.h.b16 %v3678
        %v3829 = vunpack.c.l.b16 %v3679
        %v3830 = vunpack.c.h.b16 %v3679
        %v3831 = vunpack.c.l.b16 %v3680
        %v3832 = vunpack.c.h.b16 %v3680
        %v3833 = vunpack.c.l.b16 %v3681
        %v3834 = vunpack.c.h.b16 %v3681
        %v3835 = vunpack.c.l.b16 %v3682
        %v3836 = vunpack.c.h.b16 %v3682
        %v3837 = vunpack.c.l.b16 %v3683
        %v3838 = vunpack.c.h.b16 %v3683
        %v3839 = vunpack.c.l.b16 %v3684
        %v3840 = vunpack.c.h.b16 %v3684
        %v3841 = vunpack.c.l.b16 %v3685
        %v3842 = vunpack.c.h.b16 %v3685
        %v3843 = vunpack.c.l.b16 %v3686
        %v3844 = vunpack.c.h.b16 %v3686
        %v3845 = vunpack.c.l.b16 %v3687
        %v3846 = vunpack.c.h.b16 %v3687
        %v3847 = vunpack.c.l.b16 %v3688
        %v3848 = vunpack.c.h.b16 %v3688
        %v3849 = vunpack.c.l.b16 %v3689
        %v3850 = vunpack.c.h.b16 %v3689
        %v3851 = vunpack.c.l.b16 %v3690
        %v3852 = vunpack.c.h.b16 %v3690
        %v3853 = vunpack.c.l.b16 %v3691
        %v3854 = vunpack.c.h.b16 %v3691
        %v3855 = vunpack.c.l.b16 %v3692
        %v3856 = vunpack.c.h.b16 %v3692
        %v3857 = vunpack.c.l.b16 %v3693
        %v3858 = vunpack.c.h.b16 %v3693
        %v3859 = vunpack.c.l.b16 %v3694
        %v3860 = vunpack.c.h.b16 %v3694
        %v3861 = vunpack.c.l.b16 %v3695
        %v3862 = vunpack.c.h.b16 %v3695
        %v3863 = vunpack.c.l.b16 %v3696
        %v3864 = vunpack.c.h.b16 %v3696
        %v3865 = vunpack.c.l.b16 %v3697
        %v3866 = vunpack.c.h.b16 %v3697
        %v3867 = vunpack.c.l.b16 %v3698
        %v3868 = vunpack.c.h.b16 %v3698
        %v3869 = vunpack.c.l.b16 %v3699
        %v3870 = vunpack.c.h.b16 %v3699
        %v3871 = vunpack.c.l.b16 %v3700
        %v3872 = vunpack.c.h.b16 %v3700
        %v3873 = vunpack.c.l.b16 %v3701
        %v3874 = vunpack.c.h.b16 %v3701
        %v3875 = vunpack.c.l.b16 %v3702
        %v3876 = vunpack.c.h.b16 %v3702
        %v3877 = vunpack.c.l.b16 %v3703
        %v3878 = vunpack.c.h.b16 %v3703
        %v3879 = vunpack.c.l.b16 %v3704
        %v3880 = vunpack.c.h.b16 %v3704
        %v3881 = vunpack.c.l.b16 %v3705
        %v3882 = vunpack.c.h.b16 %v3705
        %v3883 = vunpack.c.l.b16 %v3706
        %v3884 = vunpack.c.h.b16 %v3706
        %v3885 = vunpack.c.l.b16 %v3707
        %v3886 = vunpack.c.h.b16 %v3707
        %v3887 = vunpack.c.l.b16 %v3708
        %v3888 = vunpack.c.h.b16 %v3708
        %v3889 = vunpack.c.l.b16 %v3709
        %v3890 = vunpack.c.h.b16 %v3709
        %v3891 = vunpack.c.l.b16 %v3710
        %v3892 = vunpack.c.h.b16 %v3710
        %v3893 = vunpack.c.l.b16 %v3711
        %v3894 = vunpack.c.h.b16 %v3711
        %v3895 = vunpack.c.l.b16 %v3712
        %v3896 = vunpack.c.h.b16 %v3712
        %v3897 = vunpack.c.l.b16 %v3713
        %v3898 = vunpack.c.h.b16 %v3713
        %v3899 = vunpack.c.l.b16 %v3714
        %v3900 = vunpack.c.h.b16 %v3714
        %v3901 = vunpack.c.l.b16 %v3715
        %v3902 = vunpack.c.h.b16 %v3715
        %v3903 = vunpack.c.l.b16 %v3716
        %v3904 = vunpack.c.h.b16 %v3716
        %v3905 = vunpack.c.l.b16 %v3717
        %v3906 = vunpack.c.h.b16 %v3717
        %v3907 = vunpack.c.l.b16 %v3718
        %v3908 = vunpack.c.h.b16 %v3718
        %v3909 = vunpack.c.l.b16 %v3719
        %v3910 = vunpack.c.h.b16 %v3719
        %v3911 = vunpack.c.l.b16 %v3720
        %v3912 = vunpack.c.h.b16 %v3720
        %v3913 = vunpack.c.l.b16 %v3721
        %v3914 = vunpack.c.h.b16 %v3721
        %v3915 = vunpack.c.l.b16 %v3722
        %v3916 = vunpack.c.h.b16 %v3722
        %v3917 = vunpack.c.l.b16 %v3723
        %v3918 = vunpack.c.h.b16 %v3723
        %v3919 = vunpack.c.l.b16 %v3724
        %v3920 = vunpack.c.h.b16 %v3724
        %v3921 = vunpack.c.l.b16 %v3725
        %v3922 = vunpack.c.h.b16 %v3725
        %v3923 = vunpack.c.l.b16 %v3726
        %v3924 = vunpack.c.h.b16 %v3726
        %v3925 = vunpack.c.l.b16 %v3727
        %v3926 = vunpack.c.h.b16 %v3727
        %v3927 = vunpack.c.l.b16 %v3728
        %v3928 = vunpack.c.h.b16 %v3728
        %v3929 = vunpack.c.l.b16 %v3729
        %v3930 = vunpack.c.h.b16 %v3729
        %v3931 = vunpack.c.l.b16 %v3730
        %v3932 = vunpack.c.h.b16 %v3730
        %v3933 = vunpack.c.l.b16 %v3731
        %v3934 = vunpack.c.h.b16 %v3731
        %v3935 = vunpack.c.l.b16 %v3732
        %v3936 = vunpack.c.h.b16 %v3732
        %v3937 = vpack.c.b16 %v3811, %v3809
        %v3938 = vpack.c.b16 %v3812, %v3810
        %v3939 = vpack.c.b16 %v3815, %v3813
        %v3940 = vpack.c.b16 %v3816, %v3814
        %v3941 = vpack.c.b16 %v3819, %v3817
        %v3942 = vpack.c.b16 %v3820, %v3818
        %v3943 = vpack.c.b16 %v3823, %v3821
        %v3944 = vpack.c.b16 %v3824, %v3822
        %v3945 = vpack.c.b16 %v3827, %v3825
        %v3946 = vpack.c.b16 %v3828, %v3826
        %v3947 = vpack.c.b16 %v3831, %v3829
        %v3948 = vpack.c.b16 %v3832, %v3830
        %v3949 = vpack.c.b16 %v3835, %v3833
        %v3950 = vpack.c.b16 %v3836, %v3834
        %v3951 = vpack.c.b16 %v3839, %v3837
        %v3952 = vpack.c.b16 %v3840, %v3838
        %v3953 = vpack.c.b16 %v3843, %v3841
        %v3954 = vpack.c.b16 %v3844, %v3842
        %v3955 = vpack.c.b16 %v3847, %v3845
        %v3956 = vpack.c.b16 %v3848, %v3846
        %v3957 = vpack.c.b16 %v3851, %v3849
        %v3958 = vpack.c.b16 %v3852, %v3850
        %v3959 = vpack.c.b16 %v3855, %v3853
        %v3960 = vpack.c.b16 %v3856, %v3854
        %v3961 = vpack.c.b16 %v3859, %v3857
        %v3962 = vpack.c.b16 %v3860, %v3858
        %v3963 = vpack.c.b16 %v3863, %v3861
        %v3964 = vpack.c.b16 %v3864, %v3862
        %v3965 = vpack.c.b16 %v3867, %v3865
        %v3966 = vpack.c.b16 %v3868, %v3866
        %v3967 = vpack.c.b16 %v3871, %v3869
        %v3968 = vpack.c.b16 %v3872, %v3870
        %v3969 = vpack.c.b16 %v3875, %v3873
        %v3970 = vpack.c.b16 %v3876, %v3874
        %v3971 = vpack.c.b16 %v3879, %v3877
        %v3972 = vpack.c.b16 %v3880, %v3878
        %v3973 = vpack.c.b16 %v3883, %v3881
        %v3974 = vpack.c.b16 %v3884, %v3882
        %v3975 = vpack.c.b16 %v3887, %v3885
        %v3976 = vpack.c.b16 %v3888, %v3886
        %v3977 = vpack.c.b16 %v3891, %v3889
        %v3978 = vpack.c.b16 %v3892, %v3890
        %v3979 = vpack.c.b16 %v3895, %v3893
        %v3980 = vpack.c.b16 %v3896, %v3894
        %v3981 = vpack.c.b16 %v3899, %v3897
        %v3982 = vpack.c.b16 %v3900, %v3898
        %v3983 = vpack.c.b16 %v3903, %v3901
        %v3984 = vpack.c.b16 %v3904, %v3902
        %v3985 = vpack.c.b16 %v3907, %v3905
        %v3986 = vpack.c.b16 %v3908, %v3906
        %v3987 = vpack.c.b16 %v3911, %v3909
        %v3988 = vpack.c.b16 %v3912, %v3910
        %v3989 = vpack.c.b16 %v3915, %v3913
        %v3990 = vpack.c.b16 %v3916, %v3914
        %v3991 = vpack.c.b16 %v3919, %v3917
        %v3992 = vpack.c.b16 %v3920, %v3918
        %v3993 = vpack.c.b16 %v3923, %v3921
        %v3994 = vpack.c.b16 %v3924, %v3922
        %v3995 = vpack.c.b16 %v3927, %v3925
        %v3996 = vpack.c.b16 %v3928, %v3926
        %v3997 = vpack.c.b16 %v3931, %v3929
        %v3998 = vpack.c.b16 %v3932, %v3930
        %v3999 = vpack.c.b16 %v3935, %v3933
        %v4000 = vpack.c.b16 %v3936, %v3934
        %4065 = vmatprep.subr.bf16.mxu0 %v3952
        %4066 = vmatpush1.bf16.msra.mxu0 %v3951
        %4067 = vmatprep.subr.bf16.mxu0 %v3950
        %4068 = vmatpush1.bf16.msra.mxu0 %v3949
        %4069 = vmatprep.subr.bf16.mxu0 %v3948
        %4070 = vmatpush1.bf16.msra.mxu0 %v3947
        %4071 = vmatprep.subr.bf16.mxu0 %v3946
        %4072 = vmatpush1.bf16.msra.mxu0 %v3945
        %4073 = vmatprep.subr.bf16.mxu0 %v3944
        %4074 = vmatpush1.bf16.msra.mxu0 %v3943
        %4075 = vmatprep.subr.bf16.mxu0 %v3942
        %4076 = vmatpush1.bf16.msra.mxu0 %v3941
        %4077 = vmatprep.subr.bf16.mxu0 %v3940
        %4078 = vmatpush1.bf16.msra.mxu0 %v3939
        %4079 = vmatprep.subr.bf16.mxu0 %v3938
        %4080 = vmatpush1.bf16.msra.mxu0 %v3937
        %4081 = vmatprep.subr.bf16.mxu0 %v3968
        %4082 = vmatpush2.bf16.msra.mxu0 %v3967
        %4083 = vmatprep.subr.bf16.mxu0 %v3966
        %4084 = vmatpush2.bf16.msra.mxu0 %v3965
        %4085 = vmatprep.subr.bf16.mxu0 %v3964
        %4086 = vmatpush2.bf16.msra.mxu0 %v3963
        %4087 = vmatprep.subr.bf16.mxu0 %v3962
        %4088 = vmatpush2.bf16.msra.mxu0 %v3961
        %4089 = vmatprep.subr.bf16.mxu0 %v3960
        %4090 = vmatpush2.bf16.msra.mxu0 %v3959
        %4091 = vmatprep.subr.bf16.mxu0 %v3958
        %4092 = vmatpush2.bf16.msra.mxu0 %v3957
        %4093 = vmatprep.subr.bf16.mxu0 %v3956
        %4094 = vmatpush2.bf16.msra.mxu0 %v3955
        %4095 = vmatprep.subr.bf16.mxu0 %v3954
        %4096 = vmatpush2.bf16.msra.mxu0 %v3953
        %4097 = vmatprep.mubr.bf16.mxu0 %v3666
        %4098 = vmatmul.mubr.bf16.gmra.mxu0 %v3665
        %v4099 = vpop.f32.mrf.mxu0
        %v4100 = vadd.f32 %v3738, %v4099
        %v4101 = vpop.f32.mrf.mxu0
        %v4102 = vadd.f32 %v3742, %v4101
        %v4103 = vpop.f32.mrf.mxu0
        %v4104 = vadd.f32 %v3738, %v4103
        %v4105 = vpop.f32.mrf.mxu0
        %v4106 = vadd.f32 %v3742, %v4105
        %4107 = vdwg.mxu0
        %4108 = vmatprep.subr.bf16.mxu0 %v3984
        %4109 = vmatpush1.bf16.msra.mxu0 %v3983
        %4110 = vmatprep.subr.bf16.mxu0 %v3982
        %4111 = vmatpush1.bf16.msra.mxu0 %v3981
        %4112 = vmatprep.subr.bf16.mxu0 %v3980
        %4113 = vmatpush1.bf16.msra.mxu0 %v3979
        %4114 = vmatprep.subr.bf16.mxu0 %v3978
        %4115 = vmatpush1.bf16.msra.mxu0 %v3977
        %4116 = vmatprep.subr.bf16.mxu0 %v3976
        %4117 = vmatpush1.bf16.msra.mxu0 %v3975
        %4118 = vmatprep.subr.bf16.mxu0 %v3974
        %4119 = vmatpush1.bf16.msra.mxu0 %v3973
        %4120 = vmatprep.subr.bf16.mxu0 %v3972
        %4121 = vmatpush1.bf16.msra.mxu0 %v3971
        %4122 = vmatprep.subr.bf16.mxu0 %v3970
        %4123 = vmatpush1.bf16.msra.mxu0 %v3969
        %4124 = vmatprep.subr.bf16.mxu0 %v4000
        %4125 = vmatpush2.bf16.msra.mxu0 %v3999
        %4126 = vmatprep.subr.bf16.mxu0 %v3998
        %4127 = vmatpush2.bf16.msra.mxu0 %v3997
        %4128 = vmatprep.subr.bf16.mxu0 %v3996
        %4129 = vmatpush2.bf16.msra.mxu0 %v3995
        %4130 = vmatprep.subr.bf16.mxu0 %v3994
        %4131 = vmatpush2.bf16.msra.mxu0 %v3993
        %4132 = vmatprep.subr.bf16.mxu0 %v3992
        %4133 = vmatpush2.bf16.msra.mxu0 %v3991
        %4134 = vmatprep.subr.bf16.mxu0 %v3990
        %4135 = vmatpush2.bf16.msra.mxu0 %v3989
        %4136 = vmatprep.subr.bf16.mxu0 %v3988
        %4137 = vmatpush2.bf16.msra.mxu0 %v3987
        %4138 = vmatprep.subr.bf16.mxu0 %v3986
        %4139 = vmatpush2.bf16.msra.mxu0 %v3985
        %4140 = vmatprep.mubr.bf16.mxu0 %v3668
        %4141 = vmatmul.mubr.bf16.gmra.mxu0 %v3667
        %v4142 = vpop.f32.mrf.mxu0
        %v4143 = vadd.f32 %v4100, %v4142
        %v4144 = vpop.f32.mrf.mxu0
        %v4145 = vadd.f32 %v4102, %v4144
        %v4146 = vpop.f32.mrf.mxu0
        %v4147 = vadd.f32 %v4104, %v4146
        %v4148 = vpop.f32.mrf.mxu0
        %v4149 = vadd.f32 %v4106, %v4148
        %4150 = vdwg.mxu0
        %v4151 = vadd.f32 %v3159, %v4143
        %v4152 = vadd.f32 %v3160, %v4145
        %v4153 = vadd.f32 %v3161, %v4147
        %v4154 = vadd.f32 %v3162, %v4149
        %v4155 = vld [vmem:[%s11] sm:$0x3]
        %v4156 = vld [vmem:[%s12] sm:$0x3]
        %v4157 = vadd.f32 %v4151, %v4152
        %4158 = vadd.xlane.f32.xlu0 %v4157
        %v4159 = vpop.xlane.xlu0 %4158
        %v4160 = vadd.f32 %v4153, %v4154
        %4161 = vadd.xlane.f32.xlu0 %v4160
        %v4162 = vpop.xlane.xlu0 %4161
        %v4163 = vmul.f32 %v4159, %v3106
        %v4164 = vmul.f32 %v4162, %v3106
        %v4165 = vsub.f32 %v4151, %v4163
        %v4166 = vsub.f32 %v4152, %v4163
        %v4167 = vsub.f32 %v4153, %v4164
        %v4168 = vsub.f32 %v4154, %v4164
        %v4169 = vmul.f32 %v4165, %v4165
        %v4170 = vmul.f32 %v4166, %v4166
        %v4171 = vmul.f32 %v4167, %v4167
        %v4172 = vmul.f32 %v4168, %v4168
        %v4173 = vadd.f32 %v4169, %v4170
        %4174 = vadd.xlane.f32.xlu0 %v4173
        %v4175 = vpop.xlane.xlu0 %4174
        %v4176 = vadd.f32 %v4171, %v4172
        %4177 = vadd.xlane.f32.xlu0 %v4176
        %v4178 = vpop.xlane.xlu0 %4177
        %v4179 = vmul.f32 %v4175, %v3106
        %v4180 = vmul.f32 %v4178, %v3106
        %v4181 = vadd.f32 %v4179, 1e-05
        %v4182 = vadd.f32 %v4180, 1e-05
        %v4183 = vrsqrt.pop %v4181
        %v4184 = vrsqrt.pop %v4182
        %v4185 = vmul.f32 %v4165, %v4183
        %v4186 = vmul.f32 %v4166, %v4183
        %v4187 = vmul.f32 %v4167, %v4184
        %v4188 = vmul.f32 %v4168, %v4184
        %v4190 = vlaneseq
        %v4191 = vshrl.u32 %v4190, 7
        %v4192 = vsub.s32 0, %v4191
        %v4193 = vrot.slane %v4155, %v4192
        %v4194 = vlaneseq
        %v4195 = vshrl.u32 %v4194, 7
        %v4196 = vsub.s32 1, %v4195
        %v4197 = vrot.slane %v4155, %v4196
        %v4200 = vmul.f32 %v4185, %v4193
        %v4201 = vmul.f32 %v4186, %v4197
        %v4202 = vmul.f32 %v4187, %v4193
        %v4203 = vmul.f32 %v4188, %v4197
        %v4205 = vlaneseq
        %v4206 = vshrl.u32 %v4205, 7
        %v4207 = vsub.s32 0, %v4206
        %v4208 = vrot.slane %v4156, %v4207
        %v4209 = vlaneseq
        %v4210 = vshrl.u32 %v4209, 7
        %v4211 = vsub.s32 1, %v4210
        %v4212 = vrot.slane %v4156, %v4211
        %v4215 = vadd.f32 %v4200, %v4208
        %v4216 = vadd.f32 %v4201, %v4212
        %v4217 = vadd.f32 %v4202, %v4208
        %v4218 = vadd.f32 %v4203, %v4212
        %4219 = vst [vmem:[%s545] sm:$0xff] %v4215
        %4220 = vst [vmem:[%s545 + $0x8] sm:$0xff] %v4216
        %4221 = vst [vmem:[%s545 + $0x10] sm:$0xff] %v4217
        %4222 = vst [vmem:[%s545 + $0x18] sm:$0xff] %v4218
        %s4223 = sand.u32 %s319, 1
        %s4224 = scalar_lea.sflag [#allocation4], %s4223
        %s4225 = sand.u32 %s319, 1
        %s4226 = smul.addr %s4225, 32
        %s4227 = scalar_lea.vmem [#allocation14], %s4226
        // Predicated region
        $region101: #{tpu_custom_call.1} parent=71 // pred_check
          %p4228 = pneg %p329
        $region102: #{tpu_custom_call.1} parent=71 // pred_check_branch
          %4230 = sbr.rel (%p4228) target = $region104
        $region103: #{tpu_custom_call.1} parent=71 // pred_region
          %s4232 = ssub.s32 512, 512
          %4233 = vsyncadd %s4224, %s4232
          %s4234 = smul.addr %s33, 4
          %s4235 = smul.addr %s4234, 128
          %s4236 = scalar_lea.hbm %s13, %s4235
          %s4237 = sshll.u32 %s4227, 4
          %s4238 = int_to_ptr.vmem [resolvable:$true] %s4237
          %4243 = dma.vmem_to_hbm [thread:$0]  %s4238, 512, %s4236, %s4224, 256, 256, 16
        $region104: #{tpu_custom_call.1} parent=71 // pred_fallthru
          _
      $region72: #{tpu_custom_call.1} parent=5 // pred_fallthru
        _
      %p4244 = scmp.le.s32.totalorder 2, %s28
      // Predicated region
      $region105: #{tpu_custom_call.1} parent=5 // pred_check
        %p4245 = pneg %p4244
      $region106: #{tpu_custom_call.1} parent=5 // pred_check_branch
        %4247 = sbr.rel (%p4245) target = $region108
      $region107: #{tpu_custom_call.1} parent=5 // pred_region
        %s4248 = ssub.s32 %s28, 2
        // Predicated region
        $region109: #{tpu_custom_call.1} parent=107 // pred_check
          %p4249 = pneg %p335
        $region110: #{tpu_custom_call.1} parent=107 // pred_check_branch
          %4251 = sbr.rel (%p4249) target = $region112
        $region111: #{tpu_custom_call.1} parent=107 // pred_region
          %s4252 = sand.u32 %s320, 1
          %s4253 = scalar_lea.sflag [#allocation4], %s4252
          %s4254 = sand.u32 %s320, 1
          %s4255 = smul.addr %s4254, 32
          %s4256 = scalar_lea.vmem [#allocation14], %s4255
          %4257 = dma.done %s4253, 512
        $region112: #{tpu_custom_call.1} parent=107 // pred_fallthru
          _
      $region108: #{tpu_custom_call.1} parent=5 // pred_fallthru
        _
    $region6: #{tpu_custom_call.1} parent=1 // loop_footer
      %s32 = sadd.s32 1, %s28
    $region7: #{tpu_custom_call.1} parent=1 // loop_footer_branch
      %27 = sbr.rel target = $region3
    $region8: #{tpu_custom_call.1} parent=1 // loop_exit
      _
    %4258 = vsyncpa [#allocation3], 1
    %s4259 = scalar_lea.sflag [#allocation3], 1
    %4260 = vsyncpa %s4259, 1
    %4261 = vsyncpa [#allocation6], 1
    %4262 = vsyncpa [#allocation9], 1
    %4263 = vsyncpa [#allocation12], 1
    %4264 = vsyncpa [#allocation4], 1
    %s4265 = scalar_lea.sflag [#allocation4], 1
    %4266 = vsyncpa %s4265, 1

</llo_original>
